<compile_context>
chip_gen: v6e
topology: v6e:2x2x1
jax: 0.10.0
libtpu: 0.0.40
codegen_flags: <defaults>
</compile_context>

<pallas_src>
import math

import jax
import jax.numpy as jnp
from jax.experimental import pallas as pl
from jax.experimental.pallas import tpu as pltpu

HEADS = 3
HIDDEN = 128                       # per-head out channels (GATConv(feature_dim, 128, heads=3))
OUT_DIM = HEADS * HIDDEN           # 384
NEG_SLOPE = 0.2
NEG_INF = -1e30


def _gat_kernel(xd_ref, xs_ref, xsT_ref, w_ref, wasrc_ref, wadst_ref, bias_ref,
                adj_ref, pool_ref, fcw_ref, fcb_ref, out_ref,
                m_ref, l_ref, acc_ref, pooled_ref):
    i = pl.program_id(0)            # dst-row tile
    k = pl.program_id(1)            # src-col tile (reduction axis, innermost)
    ni = pl.num_programs(0)
    nk = pl.num_programs(1)

    # ---- per-dst-tile init (online softmax state) ----
    @pl.when(k == 0)
    def _():
        m_ref[...] = jnp.full_like(m_ref, NEG_INF)
        l_ref[...] = jnp.zeros_like(l_ref)
        acc_ref[...] = jnp.zeros_like(acc_ref)

    # ---- whole-grid init (pooled accumulator) ----
    @pl.when(jnp.logical_and(i == 0, k == 0))
    def _():
        pooled_ref[...] = jnp.zeros_like(pooled_ref)

    # ---- shared per-tile quantities (computed once, reused by all 3 heads) ----
    mask_f = adj_ref[...].astype(jnp.float32)        # 0/1 int8 mask -> f32, [TM, TS]
    neg_bias = (mask_f - 1.0) * (-NEG_INF)           # 0 on edges, -1e30 elsewhere

    # src hidden features for this src tile: [TS, 384] (MXU; K = feature_dim is tiny)
    h_src = jnp.dot(xs_ref[...], w_ref[...], preferred_element_type=jnp.float32)

    for hd in range(HEADS):                          # static unrolled, HEADS = 3
        sl = slice(hd * HIDDEN, (hd + 1) * HIDDEN)   # lane-aligned slice of the 384 slab

        # attention logits via tiny MXU matmuls (a = x @ (W_head @ a_head))
        a_dst = jnp.dot(xd_ref[...], wadst_ref[hd],
                        preferred_element_type=jnp.float32)          # [TM, 1]
        a_src = jnp.dot(wasrc_ref[hd], xsT_ref[...],
                        preferred_element_type=jnp.float32)          # [1, TS]

        e = a_dst + a_src                                            # [TM, TS]
        e = jnp.maximum(e, NEG_SLOPE * e)                            # leaky_relu (slope < 1)
        e = e + neg_bias                                             # mask non-edges

        m_prev = m_ref[hd]                                           # [TM, 1]
        m_new = jnp.maximum(m_prev, jnp.max(e, axis=-1, keepdims=True))
        corr = jnp.exp(m_prev - m_new)                               # [TM, 1]
        p = jnp.exp(e - m_new) * mask_f                              # [TM, TS], exact zeros off-edge

        l_ref[hd] = corr * l_ref[hd] + jnp.sum(p, axis=-1, keepdims=True)
        acc_ref[:, sl] = corr * acc_ref[:, sl] + jnp.dot(
            p, h_src[:, sl], preferred_element_type=jnp.float32)
        m_ref[hd] = m_new

    # ---- finalize this dst tile after the last src tile: normalize, bias, ReLU, pool ----
    @pl.when(k == nk - 1)
    def _():
        for hd in range(HEADS):
            sl = slice(hd * HIDDEN, (hd + 1) * HIDDEN)
            acc_ref[:, sl] = acc_ref[:, sl] * (1.0 / l_ref[hd])
        o = jnp.maximum(acc_ref[...] + bias_ref[...], 0.0)           # [TM, 384]
        pooled_ref[...] += jnp.dot(pool_ref[...], o,
                                   preferred_element_type=jnp.float32)  # [G, 384]

    # ---- final FC once, at the very last grid step ----
    @pl.when(jnp.logical_and(i == ni - 1, k == nk - 1))
    def _():
        out_ref[...] = (jnp.dot(pooled_ref[...], fcw_ref[...],
                                preferred_element_type=jnp.float32) + fcb_ref[...])


def graph_bot_detector(x, edge_index, batch, params, num_graphs,
                       *, block_m=128, block_s=128):
    """x: [N, F] f32, edge_index: [2, E] int32 (row0=src, row1=dst), batch: [N] int32."""
    N, feat = x.shape
    lcm = math.lcm(block_m, block_s)
    n_pad = ((N + lcm - 1) // lcm) * lcm

    # ---- glue: padded node features (row-major and transposed views) ----
    x = x.astype(jnp.float32)
    x_pad = jnp.zeros((n_pad, feat), jnp.float32).at[:N].set(x)
    xT = x_pad.T                                                     # [F, n_pad]

    # ---- glue: dense int8 adjacency mask, adj[dst, src] = 1, with self loops ----
    adj = jnp.zeros((n_pad, n_pad), jnp.int8)
    adj = adj.at[edge_index[1], edge_index[0]].set(1)
    diag = jnp.arange(n_pad)
    adj = adj.at[diag, diag].set(1)   # self loops for every (incl. padded) row -> no empty softmax

    # ---- glue: mean-pool matrix [G, n_pad] (padded nodes match no graph) ----
    batch_pad = jnp.concatenate(
        [batch.astype(jnp.int32), jnp.full((n_pad - N,), -1, jnp.int32)])
    onehot = (batch_pad[None, :] == jnp.arange(num_graphs)[:, None]).astype(jnp.float32)
    counts = jnp.maximum(onehot.sum(axis=1, keepdims=True), 1.0)
    pool = onehot / counts

    # ---- parameters; fold attention vectors through W once (tiny) ----
    w, a_src, a_dst = params["w"], params["a_src"], params["a_dst"]
    bias, fc_w, fc_b = params["bias"], params["fc_w"], params["fc_b"]
    num_classes = fc_w.shape[1]

    w_heads = w.reshape(feat, HEADS, HIDDEN)
    wasrc_h = jnp.einsum("fhc,hc->hf", w_heads, a_src)[:, None, :]   # [H, 1, F]
    wadst_h = jnp.einsum("fhc,hc->hf", w_heads, a_dst)[:, :, None]   # [H, F, 1]

    tm, ts = block_m, block_s
    grid = (n_pad // tm, n_pad // ts)

    grid_spec = pltpu.PrefetchScalarGridSpec(
        num_scalar_prefetch=0,
        grid=grid,
        in_specs=[
            pl.BlockSpec((tm, feat), lambda i, k: (i, 0)),           # x rows for dst tile
            pl.BlockSpec((ts, feat), lambda i, k: (k, 0)),           # x rows for src tile
            pl.BlockSpec((feat, ts), lambda i, k: (0, k)),           # x^T cols for src tile
            pl.BlockSpec((feat, OUT_DIM), lambda i, k: (0, 0)),      # W
            pl.BlockSpec((HEADS, 1, feat), lambda i, k: (0, 0, 0)),  # (W_head @ a_src)^T per head
            pl.BlockSpec((HEADS, feat, 1), lambda i, k: (0, 0, 0)),  # W_head @ a_dst per head
            pl.BlockSpec((1, OUT_DIM), lambda i, k: (0, 0)),         # GAT bias
            pl.BlockSpec((tm, ts), lambda i, k: (i, k)),             # int8 adjacency tile
            pl.BlockSpec((num_graphs, tm), lambda i, k: (0, i)),     # pool cols for dst tile
            pl.BlockSpec((OUT_DIM, num_classes), lambda i, k: (0, 0)),  # fc_w
            pl.BlockSpec((1, num_classes), lambda i, k: (0, 0)),        # fc_b
        ],
        out_specs=pl.BlockSpec((num_graphs, num_classes), lambda i, k: (0, 0)),
        scratch_shapes=[
            pltpu.VMEM((HEADS, tm, 1), jnp.float32),        # running max per head
            pltpu.VMEM((HEADS, tm, 1), jnp.float32),        # running denom per head
            pltpu.VMEM((tm, OUT_DIM), jnp.float32),         # unnormalized head outputs (384 slab)
            pltpu.VMEM((num_graphs, OUT_DIM), jnp.float32), # pooled accumulator
        ],
    )

    return pl.pallas_call(
        _gat_kernel,
        out_shape=jax.ShapeDtypeStruct((num_graphs, num_classes), jnp.float32),
        grid_spec=grid_spec,
        compiler_params=pltpu.CompilerParams(
            # Both axes sequential: src axis is a reduction, dst axis feeds the
            # shared pooled accumulator + single final FC (see TODO for v7x megacore).
            dimension_semantics=("arbitrary", "arbitrary"),
            vmem_limit_bytes=48 * 1024 * 1024,
        ),
    )(x_pad, x_pad, xT, w, wasrc_h, wadst_h, bias, adj, pool, fc_w, fc_b)


def reference(x, edge_index, batch, params, num_graphs):
    """Pure-JAX reference with identical semantics (for sanity checking)."""
    N = x.shape[0]
    h = x @ params["w"]                                              # [N, H*C]
    adj = jnp.zeros((N, N), jnp.float32).at[edge_index[1], edge_index[0]].set(1.0)
    adj = jnp.maximum(adj, jnp.eye(N, dtype=jnp.float32))
    outs = []
    for hd in range(HEADS):
        hh = h[:, hd * HIDDEN:(hd + 1) * HIDDEN]
        a_s = (hh * params["a_src"][hd]).sum(-1)
        a_d = (hh * params["a_dst"][hd]).sum(-1)
        e = a_d[:, None] + a_s[None, :]
        e = jnp.where(e > 0, e, NEG_SLOPE * e)
        e = jnp.where(adj > 0, e, -1e30)
        p = jnp.where(adj > 0, jnp.exp(e - e.max(-1, keepdims=True)), 0.0)
        attn = p / p.sum(-1, keepdims=True)
        outs.append(attn @ hh)
    o = jnp.maximum(jnp.concatenate(outs, -1) + params["bias"][0], 0.0)
    onehot = (batch[None, :] == jnp.arange(num_graphs)[:, None]).astype(jnp.float32)
    pool = onehot / jnp.maximum(onehot.sum(1, keepdims=True), 1.0)
    return (pool @ o) @ params["fc_w"] + params["fc_b"][0]


if __name__ == "__main__":
    # small shapes, but big enough that the grid has multiple dst/src tiles
    # (N=300 -> padded to 384 -> 3x3 grid with 128x128 tiles).
    N, F_IN, E, NUM_GRAPHS, NUM_CLASSES = 300, 8, 900, 3, 4

    key = jax.random.PRNGKey(0)
    k = jax.random.split(key, 10)

    params = {
        "w":     0.1 * jax.random.normal(k[0], (F_IN, HEADS * HIDDEN), jnp.float32),
        "a_src": 0.1 * jax.random.normal(k[1], (HEADS, HIDDEN), jnp.float32),
        "a_dst": 0.1 * jax.random.normal(k[2], (HEADS, HIDDEN), jnp.float32),
        "bias":  0.1 * jax.random.normal(k[3], (1, HEADS * HIDDEN), jnp.float32),
        "fc_w":  0.1 * jax.random.normal(k[4], (HEADS * HIDDEN, NUM_CLASSES), jnp.float32),
        "fc_b":  0.1 * jax.random.normal(k[5], (1, NUM_CLASSES), jnp.float32),
    }

    x = jax.random.normal(k[6], (N, F_IN), jnp.float32)
    src = jax.random.randint(k[7], (E,), 0, N, jnp.int32)
    dst = jax.random.randint(k[8], (E,), 0, N, jnp.int32)
    edge_index = jnp.stack([src, dst], axis=0)                       # [2, E]
    batch = jnp.clip((jnp.arange(N, dtype=jnp.int32) * NUM_GRAPHS) // N,
                     0, NUM_GRAPHS - 1).astype(jnp.int32)            # contiguous graph ids

    out = graph_bot_detector(x, edge_index, batch, params, NUM_GRAPHS,
                             block_m=128, block_s=128)
    out = jax.block_until_ready(out)

    ref = jax.block_until_ready(reference(x, edge_index, batch, params, NUM_GRAPHS))
    assert out.shape == (NUM_GRAPHS, NUM_CLASSES)
    assert jnp.allclose(out, ref, atol=1e-3, rtol=1e-3), (out, ref)

    print("KERNEL_OK")
</pallas_src>

<mosaic_0001>
module attributes {stable_mosaic.version = 11 : i64} {
  func.func @_gat_kernel(%arg0: i32, %arg1: i32, %arg2: memref<128x8xf32, #tpu.memory_space<vmem>>, %arg3: memref<128x8xf32, #tpu.memory_space<vmem>>, %arg4: memref<8x128xf32, #tpu.memory_space<vmem>>, %arg5: memref<8x384xf32, #tpu.memory_space<vmem>>, %arg6: memref<3x1x8xf32, #tpu.memory_space<vmem>>, %arg7: memref<3x8x1xf32, #tpu.memory_space<vmem>>, %arg8: memref<1x384xf32, #tpu.memory_space<vmem>>, %arg9: memref<128x128xi8, #tpu.memory_space<vmem>>, %arg10: memref<3x128xf32, #tpu.memory_space<vmem>>, %arg11: memref<384x4xf32, #tpu.memory_space<vmem>>, %arg12: memref<1x4xf32, #tpu.memory_space<vmem>>, %arg13: memref<3x4xf32, #tpu.memory_space<vmem>>, %arg14: memref<3x128x1xf32, #tpu.memory_space<vmem>>, %arg15: memref<3x128x1xf32, #tpu.memory_space<vmem>>, %arg16: memref<128x384xf32, #tpu.memory_space<vmem>>, %arg17: memref<3x384xf32, #tpu.memory_space<vmem>>) attributes {dimension_semantics = [#tpu.dimension_semantics<arbitrary>, #tpu.dimension_semantics<arbitrary>], iteration_bounds = array<i64: 3, 3>, scalar_prefetch = 0 : i64, scratch_operands = 4 : i64, tpu.core_type = #tpu.core_type<tc>, window_params = [{transform_indices = @transform_0, window_bounds = array<i64: 128, 8>}, {transform_indices = @transform_1, window_bounds = array<i64: 128, 8>}, {transform_indices = @transform_2, window_bounds = array<i64: 8, 128>}, {pipeline_mode = #tpu.pipeline_mode<synchronous>, transform_indices = @transform_3, window_bounds = array<i64: 8, 384>}, {pipeline_mode = #tpu.pipeline_mode<synchronous>, transform_indices = @transform_4, window_bounds = array<i64: 3, 1, 8>}, {pipeline_mode = #tpu.pipeline_mode<synchronous>, transform_indices = @transform_5, window_bounds = array<i64: 3, 8, 1>}, {pipeline_mode = #tpu.pipeline_mode<synchronous>, transform_indices = @transform_6, window_bounds = array<i64: 1, 384>}, {transform_indices = @transform_7, window_bounds = array<i64: 128, 128>}, {transform_indices = @transform_8, window_bounds = array<i64: 3, 128>}, {pipeline_mode = #tpu.pipeline_mode<synchronous>, transform_indices = @transform_9, window_bounds = array<i64: 384, 4>}, {pipeline_mode = #tpu.pipeline_mode<synchronous>, transform_indices = @transform_10, window_bounds = array<i64: 1, 4>}, {pipeline_mode = #tpu.pipeline_mode<synchronous>, transform_indices = @transform_11, window_bounds = array<i64: 3, 4>}]} {
    %c0_i32 = arith.constant 0 : i32
    %0 = arith.cmpi eq, %arg1, %c0_i32 : i32
    %1 = arith.extui %0 : i1 to i32
    %c0_i32_0 = arith.constant 0 : i32
    %2 = arith.cmpi ne, %1, %c0_i32_0 : i32
    scf.if %2 {
      %cst_107 = arith.constant -1.000000e+30 : f32
      %160 = vector.broadcast %cst_107 : f32 to vector<3x128x1xf32>
      %c0_108 = arith.constant 0 : index
      %c0_109 = arith.constant 0 : index
      %c0_110 = arith.constant 0 : index
      %161 = vector.load %arg14[%c0_108, %c0_109, %c0_110] : memref<3x128x1xf32, #tpu.memory_space<vmem>>, vector<3x128x1xf32>
      tpu.vector_store %arg14[%c0_108, %c0_109, %c0_110], %160 {strides = array<i32>} : memref<3x128x1xf32, #tpu.memory_space<vmem>>, vector<3x128x1xf32>,
      %cst_111 = arith.constant 0.000000e+00 : f32
      %162 = vector.broadcast %cst_111 : f32 to vector<3x128x1xf32>
      %c0_112 = arith.constant 0 : index
      %c0_113 = arith.constant 0 : index
      %c0_114 = arith.constant 0 : index
      %163 = vector.load %arg15[%c0_112, %c0_113, %c0_114] : memref<3x128x1xf32, #tpu.memory_space<vmem>>, vector<3x128x1xf32>
      tpu.vector_store %arg15[%c0_112, %c0_113, %c0_114], %162 {strides = array<i32>} : memref<3x128x1xf32, #tpu.memory_space<vmem>>, vector<3x128x1xf32>,
      %cst_115 = arith.constant 0.000000e+00 : f32
      %164 = vector.broadcast %cst_115 : f32 to vector<128x384xf32>
      %c0_116 = arith.constant 0 : index
      %c0_117 = arith.constant 0 : index
      %165 = vector.load %arg16[%c0_116, %c0_117] : memref<128x384xf32, #tpu.memory_space<vmem>>, vector<128x384xf32>
      tpu.vector_store %arg16[%c0_116, %c0_117], %164 {strides = array<i32>} : memref<128x384xf32, #tpu.memory_space<vmem>>, vector<128x384xf32>,
    } else {
    }
    %c0_i32_1 = arith.constant 0 : i32
    %3 = arith.cmpi eq, %arg0, %c0_i32_1 : i32
    %c0_i32_2 = arith.constant 0 : i32
    %4 = arith.cmpi eq, %arg1, %c0_i32_2 : i32
    %5 = arith.andi %3, %4 : i1
    %6 = arith.extui %5 : i1 to i32
    %c0_i32_3 = arith.constant 0 : i32
    %7 = arith.cmpi ne, %6, %c0_i32_3 : i32
    scf.if %7 {
      %cst_107 = arith.constant 0.000000e+00 : f32
      %160 = vector.broadcast %cst_107 : f32 to vector<3x384xf32>
      %c0_108 = arith.constant 0 : index
      %c0_109 = arith.constant 0 : index
      %161 = vector.load %arg17[%c0_108, %c0_109] : memref<3x384xf32, #tpu.memory_space<vmem>>, vector<3x384xf32>
      tpu.vector_store %arg17[%c0_108, %c0_109], %160 {strides = array<i32>} : memref<3x384xf32, #tpu.memory_space<vmem>>, vector<3x384xf32>,
    } else {
    }
    %c0 = arith.constant 0 : index
    %c0_4 = arith.constant 0 : index
    %8 = vector.load %arg9[%c0, %c0_4] : memref<128x128xi8, #tpu.memory_space<vmem>>, vector<128x128xi8>
    %9 = arith.sitofp %8 : vector<128x128xi8> to vector<128x128xf32>
    %cst = arith.constant 1.000000e+00 : f32
    %10 = vector.broadcast %cst : f32 to vector<128x128xf32>
    %11 = arith.subf %9, %10 : vector<128x128xf32>
    %cst_5 = arith.constant 1.000000e+30 : f32
    %12 = vector.broadcast %cst_5 : f32 to vector<128x128xf32>
    %13 = arith.mulf %11, %12 : vector<128x128xf32>
    %c0_6 = arith.constant 0 : index
    %c0_7 = arith.constant 0 : index
    %14 = vector.load %arg3[%c0_6, %c0_7] : memref<128x8xf32, #tpu.memory_space<vmem>>, vector<128x8xf32>
    %c0_8 = arith.constant 0 : index
    %c0_9 = arith.constant 0 : index
    %15 = vector.load %arg5[%c0_8, %c0_9] : memref<8x384xf32, #tpu.memory_space<vmem>>, vector<8x384xf32>
    %cst_10 = arith.constant dense<0.000000e+00> : vector<128x384xf32>
    %16 = tpu.matmul %14, %15, %cst_10 {dimension_numbers = #tpu.dot_dimension_numbers<[1], [0], [0], [1], [0, 0, 1, 1], [], []>} : vector<128x8xf32>, vector<8x384xf32>, vector<128x384xf32> -> vector<128x384xf32>
    %c0_11 = arith.constant 0 : index
    %c0_12 = arith.constant 0 : index
    %17 = vector.load %arg2[%c0_11, %c0_12] : memref<128x8xf32, #tpu.memory_space<vmem>>, vector<128x8xf32>
    %c0_13 = arith.constant 0 : index
    %c0_14 = arith.constant 0 : index
    %c0_15 = arith.constant 0 : index
    %18 = vector.load %arg7[%c0_13, %c0_14, %c0_15] : memref<3x8x1xf32, #tpu.memory_space<vmem>>, vector<1x8x1xf32>
    %19 = vector.shape_cast %18 : vector<1x8x1xf32> to vector<8x1xf32>
    %cst_16 = arith.constant dense<0.000000e+00> : vector<128x1xf32>
    %20 = tpu.matmul %17, %19, %cst_16 {dimension_numbers = #tpu.dot_dimension_numbers<[1], [0], [0], [1], [0, 0, 1, 1], [], []>} : vector<128x8xf32>, vector<8x1xf32>, vector<128x1xf32> -> vector<128x1xf32>
    %c0_17 = arith.constant 0 : index
    %c0_18 = arith.constant 0 : index
    %c0_19 = arith.constant 0 : index
    %21 = vector.load %arg6[%c0_17, %c0_18, %c0_19] : memref<3x1x8xf32, #tpu.memory_space<vmem>>, vector<1x1x8xf32>
    %22 = vector.shape_cast %21 : vector<1x1x8xf32> to vector<1x8xf32>
    %c0_20 = arith.constant 0 : index
    %c0_21 = arith.constant 0 : index
    %23 = vector.load %arg4[%c0_20, %c0_21] : memref<8x128xf32, #tpu.memory_space<vmem>>, vector<8x128xf32>
    %cst_22 = arith.constant dense<0.000000e+00> : vector<1x128xf32>
    %24 = tpu.matmul %22, %23, %cst_22 {dimension_numbers = #tpu.dot_dimension_numbers<[1], [0], [0], [1], [0, 0, 1, 1], [], []>} : vector<1x8xf32>, vector<8x128xf32>, vector<1x128xf32> -> vector<1x128xf32>
    %25 = vector.broadcast %20 : vector<128x1xf32> to vector<128x128xf32>
    %26 = vector.broadcast %24 : vector<1x128xf32> to vector<128x128xf32>
    %27 = arith.addf %25, %26 : vector<128x128xf32>
    %cst_23 = arith.constant 2.000000e-01 : f32
    %28 = vector.broadcast %cst_23 : f32 to vector<128x128xf32>
    %29 = arith.mulf %28, %27 : vector<128x128xf32>
    %30 = arith.maximumf %27, %29 : vector<128x128xf32>
    %31 = arith.addf %30, %13 : vector<128x128xf32>
    %c0_24 = arith.constant 0 : index
    %c0_25 = arith.constant 0 : index
    %c0_26 = arith.constant 0 : index
    %32 = vector.load %arg14[%c0_24, %c0_25, %c0_26] : memref<3x128x1xf32, #tpu.memory_space<vmem>>, vector<1x128x1xf32>
    %33 = vector.shape_cast %32 : vector<1x128x1xf32> to vector<128x1xf32>
    %cst_27 = arith.constant dense<0xFF800000> : vector<128xf32>
    %34 = vector.multi_reduction <maximumf>, %31, %cst_27 [1] : vector<128x128xf32> to vector<128xf32>
    %35 = vector.shape_cast %34 : vector<128xf32> to vector<128x1xf32>
    %36 = arith.maximumf %33, %35 : vector<128x1xf32>
    %37 = arith.subf %33, %36 : vector<128x1xf32>
    %38 = math.exp %37 : vector<128x1xf32>
    %39 = vector.broadcast %36 : vector<128x1xf32> to vector<128x128xf32>
    %40 = arith.subf %31, %39 : vector<128x128xf32>
    %41 = math.exp %40 : vector<128x128xf32>
    %42 = arith.mulf %41, %9 : vector<128x128xf32>
    %c0_28 = arith.constant 0 : index
    %c0_29 = arith.constant 0 : index
    %c0_30 = arith.constant 0 : index
    %43 = vector.load %arg15[%c0_28, %c0_29, %c0_30] : memref<3x128x1xf32, #tpu.memory_space<vmem>>, vector<1x128x1xf32>
    %44 = vector.shape_cast %43 : vector<1x128x1xf32> to vector<128x1xf32>
    %45 = arith.mulf %38, %44 : vector<128x1xf32>
    %cst_31 = arith.constant dense<0.000000e+00> : vector<128xf32>
    %46 = vector.multi_reduction <add>, %42, %cst_31 [1] : vector<128x128xf32> to vector<128xf32>
    %47 = vector.shape_cast %46 : vector<128xf32> to vector<128x1xf32>
    %48 = arith.addf %45, %47 : vector<128x1xf32>
    %c0_32 = arith.constant 0 : index
    %c0_33 = arith.constant 0 : index
    %c0_34 = arith.constant 0 : index
    %49 = vector.load %arg15[%c0_32, %c0_33, %c0_34] : memref<3x128x1xf32, #tpu.memory_space<vmem>>, vector<1x128x1xf32>
    %50 = vector.shape_cast %49 : vector<1x128x1xf32> to vector<128x1xf32>
    %51 = vector.shape_cast %48 : vector<128x1xf32> to vector<1x128x1xf32>
    tpu.vector_store %arg15[%c0_32, %c0_33, %c0_34], %51 {strides = array<i32>} : memref<3x128x1xf32, #tpu.memory_space<vmem>>, vector<1x128x1xf32>,
    %c0_35 = arith.constant 0 : index
    %c0_36 = arith.constant 0 : index
    %52 = vector.load %arg16[%c0_35, %c0_36] : memref<128x384xf32, #tpu.memory_space<vmem>>, vector<128x128xf32>
    %53 = vector.broadcast %38 : vector<128x1xf32> to vector<128x128xf32>
    %54 = arith.mulf %53, %52 : vector<128x128xf32>
    %55 = vector.extract_strided_slice %16 {offsets = [0, 0], sizes = [128, 128], strides = [1, 1]} : vector<128x384xf32> to vector<128x128xf32>
    %cst_37 = arith.constant dense<0.000000e+00> : vector<128x128xf32>
    %56 = tpu.matmul %42, %55, %cst_37 {dimension_numbers = #tpu.dot_dimension_numbers<[1], [0], [0], [1], [0, 0, 1, 1], [], []>} : vector<128x128xf32>, vector<128x128xf32>, vector<128x128xf32> -> vector<128x128xf32>
    %57 = arith.addf %54, %56 : vector<128x128xf32>
    %c0_38 = arith.constant 0 : index
    %c0_39 = arith.constant 0 : index
    %58 = vector.load %arg16[%c0_38, %c0_39] : memref<128x384xf32, #tpu.memory_space<vmem>>, vector<128x128xf32>
    tpu.vector_store %arg16[%c0_38, %c0_39], %57 {strides = array<i32>} : memref<128x384xf32, #tpu.memory_space<vmem>>, vector<128x128xf32>,
    %c0_40 = arith.constant 0 : index
    %c0_41 = arith.constant 0 : index
    %c0_42 = arith.constant 0 : index
    %59 = vector.load %arg14[%c0_40, %c0_41, %c0_42] : memref<3x128x1xf32, #tpu.memory_space<vmem>>, vector<1x128x1xf32>
    %60 = vector.shape_cast %59 : vector<1x128x1xf32> to vector<128x1xf32>
    %61 = vector.shape_cast %36 : vector<128x1xf32> to vector<1x128x1xf32>
    tpu.vector_store %arg14[%c0_40, %c0_41, %c0_42], %61 {strides = array<i32>} : memref<3x128x1xf32, #tpu.memory_space<vmem>>, vector<1x128x1xf32>,
    %c0_43 = arith.constant 0 : index
    %c0_44 = arith.constant 0 : index
    %62 = vector.load %arg2[%c0_43, %c0_44] : memref<128x8xf32, #tpu.memory_space<vmem>>, vector<128x8xf32>
    %c1 = arith.constant 1 : index
    %c0_45 = arith.constant 0 : index
    %c0_46 = arith.constant 0 : index
    %63 = vector.load %arg7[%c1, %c0_45, %c0_46] : memref<3x8x1xf32, #tpu.memory_space<vmem>>, vector<1x8x1xf32>
    %64 = vector.shape_cast %63 : vector<1x8x1xf32> to vector<8x1xf32>
    %cst_47 = arith.constant dense<0.000000e+00> : vector<128x1xf32>
    %65 = tpu.matmul %62, %64, %cst_47 {dimension_numbers = #tpu.dot_dimension_numbers<[1], [0], [0], [1], [0, 0, 1, 1], [], []>} : vector<128x8xf32>, vector<8x1xf32>, vector<128x1xf32> -> vector<128x1xf32>
    %c1_48 = arith.constant 1 : index
    %c0_49 = arith.constant 0 : index
    %c0_50 = arith.constant 0 : index
    %66 = vector.load %arg6[%c1_48, %c0_49, %c0_50] : memref<3x1x8xf32, #tpu.memory_space<vmem>>, vector<1x1x8xf32>
    %67 = vector.shape_cast %66 : vector<1x1x8xf32> to vector<1x8xf32>
    %c0_51 = arith.constant 0 : index
    %c0_52 = arith.constant 0 : index
    %68 = vector.load %arg4[%c0_51, %c0_52] : memref<8x128xf32, #tpu.memory_space<vmem>>, vector<8x128xf32>
    %cst_53 = arith.constant dense<0.000000e+00> : vector<1x128xf32>
    %69 = tpu.matmul %67, %68, %cst_53 {dimension_numbers = #tpu.dot_dimension_numbers<[1], [0], [0], [1], [0, 0, 1, 1], [], []>} : vector<1x8xf32>, vector<8x128xf32>, vector<1x128xf32> -> vector<1x128xf32>
    %70 = vector.broadcast %65 : vector<128x1xf32> to vector<128x128xf32>
    %71 = vector.broadcast %69 : vector<1x128xf32> to vector<128x128xf32>
    %72 = arith.addf %70, %71 : vector<128x128xf32>
    %cst_54 = arith.constant 2.000000e-01 : f32
    %73 = vector.broadcast %cst_54 : f32 to vector<128x128xf32>
    %74 = arith.mulf %73, %72 : vector<128x128xf32>
    %75 = arith.maximumf %72, %74 : vector<128x128xf32>
    %76 = arith.addf %75, %13 : vector<128x128xf32>
    %c1_55 = arith.constant 1 : index
    %c0_56 = arith.constant 0 : index
    %c0_57 = arith.constant 0 : index
    %77 = vector.load %arg14[%c1_55, %c0_56, %c0_57] : memref<3x128x1xf32, #tpu.memory_space<vmem>>, vector<1x128x1xf32>
    %78 = vector.shape_cast %77 : vector<1x128x1xf32> to vector<128x1xf32>
    %cst_58 = arith.constant dense<0xFF800000> : vector<128xf32>
    %79 = vector.multi_reduction <maximumf>, %76, %cst_58 [1] : vector<128x128xf32> to vector<128xf32>
    %80 = vector.shape_cast %79 : vector<128xf32> to vector<128x1xf32>
    %81 = arith.maximumf %78, %80 : vector<128x1xf32>
    %82 = arith.subf %78, %81 : vector<128x1xf32>
    %83 = math.exp %82 : vector<128x1xf32>
    %84 = vector.broadcast %81 : vector<128x1xf32> to vector<128x128xf32>
    %85 = arith.subf %76, %84 : vector<128x128xf32>
    %86 = math.exp %85 : vector<128x128xf32>
    %87 = arith.mulf %86, %9 : vector<128x128xf32>
    %c1_59 = arith.constant 1 : index
    %c0_60 = arith.constant 0 : index
    %c0_61 = arith.constant 0 : index
    %88 = vector.load %arg15[%c1_59, %c0_60, %c0_61] : memref<3x128x1xf32, #tpu.memory_space<vmem>>, vector<1x128x1xf32>
    %89 = vector.shape_cast %88 : vector<1x128x1xf32> to vector<128x1xf32>
    %90 = arith.mulf %83, %89 : vector<128x1xf32>
    %cst_62 = arith.constant dense<0.000000e+00> : vector<128xf32>
    %91 = vector.multi_reduction <add>, %87, %cst_62 [1] : vector<128x128xf32> to vector<128xf32>
    %92 = vector.shape_cast %91 : vector<128xf32> to vector<128x1xf32>
    %93 = arith.addf %90, %92 : vector<128x1xf32>
    %c1_63 = arith.constant 1 : index
    %c0_64 = arith.constant 0 : index
    %c0_65 = arith.constant 0 : index
    %94 = vector.load %arg15[%c1_63, %c0_64, %c0_65] : memref<3x128x1xf32, #tpu.memory_space<vmem>>, vector<1x128x1xf32>
    %95 = vector.shape_cast %94 : vector<1x128x1xf32> to vector<128x1xf32>
    %96 = vector.shape_cast %93 : vector<128x1xf32> to vector<1x128x1xf32>
    tpu.vector_store %arg15[%c1_63, %c0_64, %c0_65], %96 {strides = array<i32>} : memref<3x128x1xf32, #tpu.memory_space<vmem>>, vector<1x128x1xf32>,
    %c0_66 = arith.constant 0 : index
    %c128 = arith.constant 128 : index
    %97 = vector.load %arg16[%c0_66, %c128] : memref<128x384xf32, #tpu.memory_space<vmem>>, vector<128x128xf32>
    %98 = vector.broadcast %83 : vector<128x1xf32> to vector<128x128xf32>
    %99 = arith.mulf %98, %97 : vector<128x128xf32>
    %100 = vector.extract_strided_slice %16 {offsets = [0, 128], sizes = [128, 128], strides = [1, 1]} : vector<128x384xf32> to vector<128x128xf32>
    %cst_67 = arith.constant dense<0.000000e+00> : vector<128x128xf32>
    %101 = tpu.matmul %87, %100, %cst_67 {dimension_numbers = #tpu.dot_dimension_numbers<[1], [0], [0], [1], [0, 0, 1, 1], [], []>} : vector<128x128xf32>, vector<128x128xf32>, vector<128x128xf32> -> vector<128x128xf32>
    %102 = arith.addf %99, %101 : vector<128x128xf32>
    %c0_68 = arith.constant 0 : index
    %c128_69 = arith.constant 128 : index
    %103 = vector.load %arg16[%c0_68, %c128_69] : memref<128x384xf32, #tpu.memory_space<vmem>>, vector<128x128xf32>
    tpu.vector_store %arg16[%c0_68, %c128_69], %102 {strides = array<i32>} : memref<128x384xf32, #tpu.memory_space<vmem>>, vector<128x128xf32>,
    %c1_70 = arith.constant 1 : index
    %c0_71 = arith.constant 0 : index
    %c0_72 = arith.constant 0 : index
    %104 = vector.load %arg14[%c1_70, %c0_71, %c0_72] : memref<3x128x1xf32, #tpu.memory_space<vmem>>, vector<1x128x1xf32>
    %105 = vector.shape_cast %104 : vector<1x128x1xf32> to vector<128x1xf32>
    %106 = vector.shape_cast %81 : vector<128x1xf32> to vector<1x128x1xf32>
    tpu.vector_store %arg14[%c1_70, %c0_71, %c0_72], %106 {strides = array<i32>} : memref<3x128x1xf32, #tpu.memory_space<vmem>>, vector<1x128x1xf32>,
    %c0_73 = arith.constant 0 : index
    %c0_74 = arith.constant 0 : index
    %107 = vector.load %arg2[%c0_73, %c0_74] : memref<128x8xf32, #tpu.memory_space<vmem>>, vector<128x8xf32>
    %c2 = arith.constant 2 : index
    %c0_75 = arith.constant 0 : index
    %c0_76 = arith.constant 0 : index
    %108 = vector.load %arg7[%c2, %c0_75, %c0_76] : memref<3x8x1xf32, #tpu.memory_space<vmem>>, vector<1x8x1xf32>
    %109 = vector.shape_cast %108 : vector<1x8x1xf32> to vector<8x1xf32>
    %cst_77 = arith.constant dense<0.000000e+00> : vector<128x1xf32>
    %110 = tpu.matmul %107, %109, %cst_77 {dimension_numbers = #tpu.dot_dimension_numbers<[1], [0], [0], [1], [0, 0, 1, 1], [], []>} : vector<128x8xf32>, vector<8x1xf32>, vector<128x1xf32> -> vector<128x1xf32>
    %c2_78 = arith.constant 2 : index
    %c0_79 = arith.constant 0 : index
    %c0_80 = arith.constant 0 : index
    %111 = vector.load %arg6[%c2_78, %c0_79, %c0_80] : memref<3x1x8xf32, #tpu.memory_space<vmem>>, vector<1x1x8xf32>
    %112 = vector.shape_cast %111 : vector<1x1x8xf32> to vector<1x8xf32>
    %c0_81 = arith.constant 0 : index
    %c0_82 = arith.constant 0 : index
    %113 = vector.load %arg4[%c0_81, %c0_82] : memref<8x128xf32, #tpu.memory_space<vmem>>, vector<8x128xf32>
    %cst_83 = arith.constant dense<0.000000e+00> : vector<1x128xf32>
    %114 = tpu.matmul %112, %113, %cst_83 {dimension_numbers = #tpu.dot_dimension_numbers<[1], [0], [0], [1], [0, 0, 1, 1], [], []>} : vector<1x8xf32>, vector<8x128xf32>, vector<1x128xf32> -> vector<1x128xf32>
    %115 = vector.broadcast %110 : vector<128x1xf32> to vector<128x128xf32>
    %116 = vector.broadcast %114 : vector<1x128xf32> to vector<128x128xf32>
    %117 = arith.addf %115, %116 : vector<128x128xf32>
    %cst_84 = arith.constant 2.000000e-01 : f32
    %118 = vector.broadcast %cst_84 : f32 to vector<128x128xf32>
    %119 = arith.mulf %118, %117 : vector<128x128xf32>
    %120 = arith.maximumf %117, %119 : vector<128x128xf32>
    %121 = arith.addf %120, %13 : vector<128x128xf32>
    %c2_85 = arith.constant 2 : index
    %c0_86 = arith.constant 0 : index
    %c0_87 = arith.constant 0 : index
    %122 = vector.load %arg14[%c2_85, %c0_86, %c0_87] : memref<3x128x1xf32, #tpu.memory_space<vmem>>, vector<1x128x1xf32>
    %123 = vector.shape_cast %122 : vector<1x128x1xf32> to vector<128x1xf32>
    %cst_88 = arith.constant dense<0xFF800000> : vector<128xf32>
    %124 = vector.multi_reduction <maximumf>, %121, %cst_88 [1] : vector<128x128xf32> to vector<128xf32>
    %125 = vector.shape_cast %124 : vector<128xf32> to vector<128x1xf32>
    %126 = arith.maximumf %123, %125 : vector<128x1xf32>
    %127 = arith.subf %123, %126 : vector<128x1xf32>
    %128 = math.exp %127 : vector<128x1xf32>
    %129 = vector.broadcast %126 : vector<128x1xf32> to vector<128x128xf32>
    %130 = arith.subf %121, %129 : vector<128x128xf32>
    %131 = math.exp %130 : vector<128x128xf32>
    %132 = arith.mulf %131, %9 : vector<128x128xf32>
    %c2_89 = arith.constant 2 : index
    %c0_90 = arith.constant 0 : index
    %c0_91 = arith.constant 0 : index
    %133 = vector.load %arg15[%c2_89, %c0_90, %c0_91] : memref<3x128x1xf32, #tpu.memory_space<vmem>>, vector<1x128x1xf32>
    %134 = vector.shape_cast %133 : vector<1x128x1xf32> to vector<128x1xf32>
    %135 = arith.mulf %128, %134 : vector<128x1xf32>
    %cst_92 = arith.constant dense<0.000000e+00> : vector<128xf32>
    %136 = vector.multi_reduction <add>, %132, %cst_92 [1] : vector<128x128xf32> to vector<128xf32>
    %137 = vector.shape_cast %136 : vector<128xf32> to vector<128x1xf32>
    %138 = arith.addf %135, %137 : vector<128x1xf32>
    %c2_93 = arith.constant 2 : index
    %c0_94 = arith.constant 0 : index
    %c0_95 = arith.constant 0 : index
    %139 = vector.load %arg15[%c2_93, %c0_94, %c0_95] : memref<3x128x1xf32, #tpu.memory_space<vmem>>, vector<1x128x1xf32>
    %140 = vector.shape_cast %139 : vector<1x128x1xf32> to vector<128x1xf32>
    %141 = vector.shape_cast %138 : vector<128x1xf32> to vector<1x128x1xf32>
    tpu.vector_store %arg15[%c2_93, %c0_94, %c0_95], %141 {strides = array<i32>} : memref<3x128x1xf32, #tpu.memory_space<vmem>>, vector<1x128x1xf32>,
    %c0_96 = arith.constant 0 : index
    %c256 = arith.constant 256 : index
    %142 = vector.load %arg16[%c0_96, %c256] : memref<128x384xf32, #tpu.memory_space<vmem>>, vector<128x128xf32>
    %143 = vector.broadcast %128 : vector<128x1xf32> to vector<128x128xf32>
    %144 = arith.mulf %143, %142 : vector<128x128xf32>
    %145 = vector.extract_strided_slice %16 {offsets = [0, 256], sizes = [128, 128], strides = [1, 1]} : vector<128x384xf32> to vector<128x128xf32>
    %cst_97 = arith.constant dense<0.000000e+00> : vector<128x128xf32>
    %146 = tpu.matmul %132, %145, %cst_97 {dimension_numbers = #tpu.dot_dimension_numbers<[1], [0], [0], [1], [0, 0, 1, 1], [], []>} : vector<128x128xf32>, vector<128x128xf32>, vector<128x128xf32> -> vector<128x128xf32>
    %147 = arith.addf %144, %146 : vector<128x128xf32>
    %c0_98 = arith.constant 0 : index
    %c256_99 = arith.constant 256 : index
    %148 = vector.load %arg16[%c0_98, %c256_99] : memref<128x384xf32, #tpu.memory_space<vmem>>, vector<128x128xf32>
    tpu.vector_store %arg16[%c0_98, %c256_99], %147 {strides = array<i32>} : memref<128x384xf32, #tpu.memory_space<vmem>>, vector<128x128xf32>,
    %c2_100 = arith.constant 2 : index
    %c0_101 = arith.constant 0 : index
    %c0_102 = arith.constant 0 : index
    %149 = vector.load %arg14[%c2_100, %c0_101, %c0_102] : memref<3x128x1xf32, #tpu.memory_space<vmem>>, vector<1x128x1xf32>
    %150 = vector.shape_cast %149 : vector<1x128x1xf32> to vector<128x1xf32>
    %151 = vector.shape_cast %126 : vector<128x1xf32> to vector<1x128x1xf32>
    tpu.vector_store %arg14[%c2_100, %c0_101, %c0_102], %151 {strides = array<i32>} : memref<3x128x1xf32, #tpu.memory_space<vmem>>, vector<1x128x1xf32>,
    %c2_i32 = arith.constant 2 : i32
    %152 = arith.cmpi eq, %arg1, %c2_i32 : i32
    %153 = arith.extui %152 : i1 to i32
    %c0_i32_103 = arith.constant 0 : i32
    %154 = arith.cmpi ne, %153, %c0_i32_103 : i32
    scf.if %154 {
      %c0_107 = arith.constant 0 : index
      %c0_108 = arith.constant 0 : index
      %160 = vector.load %arg16[%c0_107, %c0_108] : memref<128x384xf32, #tpu.memory_space<vmem>>, vector<128x128xf32>
      %c0_109 = arith.constant 0 : index
      %c0_110 = arith.constant 0 : index
      %c0_111 = arith.constant 0 : index
      %161 = vector.load %arg15[%c0_109, %c0_110, %c0_111] : memref<3x128x1xf32, #tpu.memory_space<vmem>>, vector<1x128x1xf32>
      %162 = vector.shape_cast %161 : vector<1x128x1xf32> to vector<128x1xf32>
      %cst_112 = arith.constant 1.000000e+00 : f32
      %163 = vector.broadcast %cst_112 : f32 to vector<128x1xf32>
      %164 = arith.divf %163, %162 : vector<128x1xf32>
      %165 = vector.broadcast %164 : vector<128x1xf32> to vector<128x128xf32>
      %166 = arith.mulf %160, %165 : vector<128x128xf32>
      %c0_113 = arith.constant 0 : index
      %c0_114 = arith.constant 0 : index
      %167 = vector.load %arg16[%c0_113, %c0_114] : memref<128x384xf32, #tpu.memory_space<vmem>>, vector<128x128xf32>
      tpu.vector_store %arg16[%c0_113, %c0_114], %166 {strides = array<i32>} : memref<128x384xf32, #tpu.memory_space<vmem>>, vector<128x128xf32>,
      %c0_115 = arith.constant 0 : index
      %c128_116 = arith.constant 128 : index
      %168 = vector.load %arg16[%c0_115, %c128_116] : memref<128x384xf32, #tpu.memory_space<vmem>>, vector<128x128xf32>
      %c1_117 = arith.constant 1 : index
      %c0_118 = arith.constant 0 : index
      %c0_119 = arith.constant 0 : index
      %169 = vector.load %arg15[%c1_117, %c0_118, %c0_119] : memref<3x128x1xf32, #tpu.memory_space<vmem>>, vector<1x128x1xf32>
      %170 = vector.shape_cast %169 : vector<1x128x1xf32> to vector<128x1xf32>
      %cst_120 = arith.constant 1.000000e+00 : f32
      %171 = vector.broadcast %cst_120 : f32 to vector<128x1xf32>
      %172 = arith.divf %171, %170 : vector<128x1xf32>
      %173 = vector.broadcast %172 : vector<128x1xf32> to vector<128x128xf32>
      %174 = arith.mulf %168, %173 : vector<128x128xf32>
      %c0_121 = arith.constant 0 : index
      %c128_122 = arith.constant 128 : index
      %175 = vector.load %arg16[%c0_121, %c128_122] : memref<128x384xf32, #tpu.memory_space<vmem>>, vector<128x128xf32>
      tpu.vector_store %arg16[%c0_121, %c128_122], %174 {strides = array<i32>} : memref<128x384xf32, #tpu.memory_space<vmem>>, vector<128x128xf32>,
      %c0_123 = arith.constant 0 : index
      %c256_124 = arith.constant 256 : index
      %176 = vector.load %arg16[%c0_123, %c256_124] : memref<128x384xf32, #tpu.memory_space<vmem>>, vector<128x128xf32>
      %c2_125 = arith.constant 2 : index
      %c0_126 = arith.constant 0 : index
      %c0_127 = arith.constant 0 : index
      %177 = vector.load %arg15[%c2_125, %c0_126, %c0_127] : memref<3x128x1xf32, #tpu.memory_space<vmem>>, vector<1x128x1xf32>
      %178 = vector.shape_cast %177 : vector<1x128x1xf32> to vector<128x1xf32>
      %cst_128 = arith.constant 1.000000e+00 : f32
      %179 = vector.broadcast %cst_128 : f32 to vector<128x1xf32>
      %180 = arith.divf %179, %178 : vector<128x1xf32>
      %181 = vector.broadcast %180 : vector<128x1xf32> to vector<128x128xf32>
      %182 = arith.mulf %176, %181 : vector<128x128xf32>
      %c0_129 = arith.constant 0 : index
      %c256_130 = arith.constant 256 : index
      %183 = vector.load %arg16[%c0_129, %c256_130] : memref<128x384xf32, #tpu.memory_space<vmem>>, vector<128x128xf32>
      tpu.vector_store %arg16[%c0_129, %c256_130], %182 {strides = array<i32>} : memref<128x384xf32, #tpu.memory_space<vmem>>, vector<128x128xf32>,
      %c0_131 = arith.constant 0 : index
      %c0_132 = arith.constant 0 : index
      %184 = vector.load %arg16[%c0_131, %c0_132] : memref<128x384xf32, #tpu.memory_space<vmem>>, vector<128x384xf32>
      %c0_133 = arith.constant 0 : index
      %c0_134 = arith.constant 0 : index
      %185 = vector.load %arg8[%c0_133, %c0_134] : memref<1x384xf32, #tpu.memory_space<vmem>>, vector<1x384xf32>
      %186 = vector.broadcast %185 : vector<1x384xf32> to vector<128x384xf32>
      %187 = arith.addf %184, %186 : vector<128x384xf32>
      %cst_135 = arith.constant 0.000000e+00 : f32
      %188 = vector.broadcast %cst_135 : f32 to vector<128x384xf32>
      %189 = arith.maximumf %187, %188 : vector<128x384xf32>
      %c0_136 = arith.constant 0 : index
      %c0_137 = arith.constant 0 : index
      %190 = vector.load %arg17[%c0_136, %c0_137] : memref<3x384xf32, #tpu.memory_space<vmem>>, vector<3x384xf32>
      %c0_138 = arith.constant 0 : index
      %c0_139 = arith.constant 0 : index
      %191 = vector.load %arg10[%c0_138, %c0_139] : memref<3x128xf32, #tpu.memory_space<vmem>>, vector<3x128xf32>
      %cst_140 = arith.constant dense<0.000000e+00> : vector<3x384xf32>
      %192 = tpu.matmul %191, %189, %cst_140 {dimension_numbers = #tpu.dot_dimension_numbers<[1], [0], [0], [1], [0, 0, 1, 1], [], []>} : vector<3x128xf32>, vector<128x384xf32>, vector<3x384xf32> -> vector<3x384xf32>
      %193 = arith.addf %190, %192 : vector<3x384xf32>
      %c0_141 = arith.constant 0 : index
      %c0_142 = arith.constant 0 : index
      %194 = vector.load %arg17[%c0_141, %c0_142] : memref<3x384xf32, #tpu.memory_space<vmem>>, vector<3x384xf32>
      tpu.vector_store %arg17[%c0_141, %c0_142], %193 {strides = array<i32>} : memref<3x384xf32, #tpu.memory_space<vmem>>, vector<3x384xf32>,
    } else {
    }
    %c2_i32_104 = arith.constant 2 : i32
    %155 = arith.cmpi eq, %arg0, %c2_i32_104 : i32
    %c2_i32_105 = arith.constant 2 : i32
    %156 = arith.cmpi eq, %arg1, %c2_i32_105 : i32
    %157 = arith.andi %155, %156 : i1
    %158 = arith.extui %157 : i1 to i32
    %c0_i32_106 = arith.constant 0 : i32
    %159 = arith.cmpi ne, %158, %c0_i32_106 : i32
    scf.if %159 {
      %c0_107 = arith.constant 0 : index
      %c0_108 = arith.constant 0 : index
      %160 = vector.load %arg17[%c0_107, %c0_108] : memref<3x384xf32, #tpu.memory_space<vmem>>, vector<3x384xf32>
      %c0_109 = arith.constant 0 : index
      %c0_110 = arith.constant 0 : index
      %161 = vector.load %arg11[%c0_109, %c0_110] : memref<384x4xf32, #tpu.memory_space<vmem>>, vector<384x4xf32>
      %cst_111 = arith.constant dense<0.000000e+00> : vector<3x4xf32>
      %162 = tpu.matmul %160, %161, %cst_111 {dimension_numbers = #tpu.dot_dimension_numbers<[1], [0], [0], [1], [0, 0, 1, 1], [], []>} : vector<3x384xf32>, vector<384x4xf32>, vector<3x4xf32> -> vector<3x4xf32>
      %c0_112 = arith.constant 0 : index
      %c0_113 = arith.constant 0 : index
      %163 = vector.load %arg12[%c0_112, %c0_113] : memref<1x4xf32, #tpu.memory_space<vmem>>, vector<1x4xf32>
      %164 = vector.broadcast %163 : vector<1x4xf32> to vector<3x4xf32>
      %165 = arith.addf %162, %164 : vector<3x4xf32>
      %c0_114 = arith.constant 0 : index
      %c0_115 = arith.constant 0 : index
      %166 = vector.load %arg13[%c0_114, %c0_115] : memref<3x4xf32, #tpu.memory_space<vmem>>, vector<3x4xf32>
      tpu.vector_store %arg13[%c0_114, %c0_115], %165 {strides = array<i32>} : memref<3x4xf32, #tpu.memory_space<vmem>>, vector<3x4xf32>,
    } else {
    }
    return
  }
  func.func @transform_0(%arg0: i32, %arg1: i32) -> (i32, i32) {
    %c0_i32 = arith.constant 0 : i32
    %c0_i32_0 = arith.constant 0 : i32
    return %arg0, %c0_i32 : i32, i32
  }
  func.func @transform_1(%arg0: i32, %arg1: i32) -> (i32, i32) {
    %c0_i32 = arith.constant 0 : i32
    %c0_i32_0 = arith.constant 0 : i32
    return %arg1, %c0_i32 : i32, i32
  }
  func.func @transform_2(%arg0: i32, %arg1: i32) -> (i32, i32) {
    %c0_i32 = arith.constant 0 : i32
    %c0_i32_0 = arith.constant 0 : i32
    return %c0_i32, %arg1 : i32, i32
  }
  func.func @transform_3(%arg0: i32, %arg1: i32) -> (i32, i32) {
    %c0_i32 = arith.constant 0 : i32
    %c0_i32_0 = arith.constant 0 : i32
    %c0_i32_1 = arith.constant 0 : i32
    return %c0_i32, %c0_i32_0 : i32, i32
  }
  func.func @transform_4(%arg0: i32, %arg1: i32) -> (i32, i32, i32) {
    %c0_i32 = arith.constant 0 : i32
    %c0_i32_0 = arith.constant 0 : i32
    %c0_i32_1 = arith.constant 0 : i32
    %c0_i32_2 = arith.constant 0 : i32
    return %c0_i32, %c0_i32_0, %c0_i32_1 : i32, i32, i32
  }
  func.func @transform_5(%arg0: i32, %arg1: i32) -> (i32, i32, i32) {
    %c0_i32 = arith.constant 0 : i32
    %c0_i32_0 = arith.constant 0 : i32
    %c0_i32_1 = arith.constant 0 : i32
    %c0_i32_2 = arith.constant 0 : i32
    return %c0_i32, %c0_i32_0, %c0_i32_1 : i32, i32, i32
  }
  func.func @transform_6(%arg0: i32, %arg1: i32) -> (i32, i32) {
    %c0_i32 = arith.constant 0 : i32
    %c0_i32_0 = arith.constant 0 : i32
    %c0_i32_1 = arith.constant 0 : i32
    return %c0_i32, %c0_i32_0 : i32, i32
  }
  func.func @transform_7(%arg0: i32, %arg1: i32) -> (i32, i32) {
    %c0_i32 = arith.constant 0 : i32
    return %arg0, %arg1 : i32, i32
  }
  func.func @transform_8(%arg0: i32, %arg1: i32) -> (i32, i32) {
    %c0_i32 = arith.constant 0 : i32
    %c0_i32_0 = arith.constant 0 : i32
    return %c0_i32, %arg0 : i32, i32
  }
  func.func @transform_9(%arg0: i32, %arg1: i32) -> (i32, i32) {
    %c0_i32 = arith.constant 0 : i32
    %c0_i32_0 = arith.constant 0 : i32
    %c0_i32_1 = arith.constant 0 : i32
    return %c0_i32, %c0_i32_0 : i32, i32
  }
  func.func @transform_10(%arg0: i32, %arg1: i32) -> (i32, i32) {
    %c0_i32 = arith.constant 0 : i32
    %c0_i32_0 = arith.constant 0 : i32
    %c0_i32_1 = arith.constant 0 : i32
    return %c0_i32, %c0_i32_0 : i32, i32
  }
  func.func @transform_11(%arg0: i32, %arg1: i32) -> (i32, i32) {
    %c0_i32 = arith.constant 0 : i32
    %c0_i32_0 = arith.constant 0 : i32
    %c0_i32_1 = arith.constant 0 : i32
    return %c0_i32, %c0_i32_0 : i32, i32
  }
}

</mosaic_0001>

<llo_original>
// kernel: tpu_custom_call.1
$region0: #{tpu_custom_call.1}
  #allocation0 [shape = 'u32[]', space=smem, size = 0x4, offset = 0x4, fixed_abs, tag = 'smem constant byte address 0x4 - core index']
  #allocation1 [shape = 'u32[144,128]{1,0:T(1,128)}', space=vmem, size = 0x12000, scoped, tag = 'internal scratch']
  #allocation2 [shape = 'f32[3,128,1]{2,1,0:T(8,128)}', space=vmem, size = 0x30000, scoped, tag = 'scratch operand']
  #allocation3 [shape = 'f32[3,128,1]{2,1,0:T(8,128)}', space=vmem, size = 0x30000, scoped, tag = 'scratch operand']
  #allocation4 [shape = 'f32[128,384]{1,0:T(8,128)}', space=vmem, size = 0x30000, scoped, tag = 'scratch operand']
  #allocation5 [shape = 'f32[3,384]{1,0:T(4,128)}', space=vmem, size = 0x1800, scoped, tag = 'scratch operand']
  %s0 = inlined_call_operand.vmem [shape: f32[384,8], index: 0, kind: input, shape index: {}]
  %s1 = inlined_call_operand.vmem [shape: f32[384,8], index: 1, kind: input, shape index: {}]
  %s2 = inlined_call_operand.vmem [shape: f32[8,384], index: 2, kind: input, shape index: {}]
  %s3 = inlined_call_operand.vmem [shape: f32[8,384], index: 3, kind: input, shape index: {}]
  %s4 = inlined_call_operand.vmem [shape: f32[3,1,8], index: 4, kind: input, shape index: {}]
  %s5 = inlined_call_operand.vmem [shape: f32[3,8,1], index: 5, kind: input, shape index: {}]
  %s6 = inlined_call_operand.vmem [shape: f32[1,384], index: 6, kind: input, shape index: {}]
  %s7 = inlined_call_operand.vmem [shape: s8[384,384], index: 7, kind: input, shape index: {}]
  %s8 = inlined_call_operand.vmem [shape: f32[3,384], index: 8, kind: input, shape index: {}]
  %s9 = inlined_call_operand.vmem [shape: f32[384,4], index: 9, kind: input, shape index: {}]
  %s10 = inlined_call_operand.vmem [shape: f32[1,4], index: 10, kind: input, shape index: {}]
  %s11 = inlined_call_operand.hbm [shape: f32[3,4], index: 11, kind: output, shape index: {}]
  %s12 = sld [smem:[#allocation0]]
  $region131: #{tpu_custom_call.1} parent=0
    _
  %s14 = ssub.s32 1, %s12
  %s15 = scalar_select 0, %s14, %s12
  $region1: #{tpu_custom_call.1} parent=0
    #allocation6 [shape = 'u8[32768]{0}', space=vmem, size = 0x8000, scoped, tag = 'input window, operand 7']
    #allocation7 [shape = 'u8[2048]{0}', space=vmem, size = 0x800, scoped, tag = 'output window, operand 0, single buffered']
    #allocation8 [shape = 's32[2]{0}', space=sflag, size = 0x8, scoped, tag = 'scoped memory for tpu_custom_call.1']
    %16 = vsyncpa [#allocation8], 0
    loop: start=0, step=1, limit=11
    $region2: #{tpu_custom_call.1} parent=1 // loop_pre_header
      _
    $region3: #{tpu_custom_call.1} parent=1 // loop_header
      %s18 = sphi 0, %s22
      %p19 = scmp.ge.s32.totalorder %s18, 11
      %s25 = sphi 0, %s37
      %s26 = sphi 0, %s33
      %s27 = sphi 0, %s25
      %s28 = sphi 0, %s26
      %s29 = sphi 0, %s27
      %s30 = sphi 0, %s28
      %s40 = sphi 0, %s42
      %s43 = sphi 0, %s40
      %s44 = sphi 0, %s43
      %s60 = sphi 0, %s44
      %s66 = sphi 0, %s68
      %s69 = sphi 0, %s66
      %s70 = sphi 0, %s69
      %s86 = sphi 0, %s70
      %s92 = sphi 0, %s94
      %s95 = sphi 0, %s92
      %s96 = sphi 0, %s95
      %s112 = sphi 0, %s96
      %s116 = sphi 0, %s116
      %s118 = sphi 0, %s116
      %s119 = sphi 0, %s118
      %s133 = sphi 0, %s119
      %s137 = sphi 0, %s137
      %s139 = sphi 0, %s137
      %s140 = sphi 0, %s139
      %s154 = sphi 0, %s140
      %s158 = sphi 0, %s158
      %s160 = sphi 0, %s158
      %s161 = sphi 0, %s160
      %s175 = sphi 0, %s161
      %s179 = sphi 0, %s179
      %s181 = sphi 0, %s179
      %s182 = sphi 0, %s181
      %s196 = sphi 0, %s182
      %s204 = sphi 0, %s206
      %s207 = sphi 0, %s204
      %s208 = sphi 0, %s207
      %s224 = sphi 0, %s208
      %s230 = sphi 0, %s232
      %s233 = sphi 0, %s230
      %s234 = sphi 0, %s233
      %s250 = sphi 0, %s234
      %s254 = sphi 0, %s254
      %s256 = sphi 0, %s254
      %s257 = sphi 0, %s256
      %s271 = sphi 0, %s257
      %s275 = sphi 0, %s275
      %s277 = sphi 0, %s275
      %s278 = sphi 0, %s277
      %s292 = sphi 0, %s278
      %s296 = sphi 0, %s296
      %s298 = sphi 0, %s296
      %s299 = sphi 0, %s298
      %s313 = sphi 0, %s299
    $region4: #{tpu_custom_call.1} parent=1 // loop_header_branch
      %21 = sbr.rel (%p19) target = $region8
    $region5: #{tpu_custom_call.1} parent=1 // loop_body
      %s23 = ssub.s32 %s18, 1
      %s24 = ssub.s32 %s18, 2
      %s31 = sadd.s32 1, %s26
      %p32 = scmp.ge.s32.totalorder %s31, 3
      %s33 = scalar_select %p32, 0, %s31
      %s34 = sadd.s32 1, %s25
      %s35 = scalar_select %p32, %s34, %s25
      %p36 = scmp.ge.s32.totalorder %s35, 3
      %s37 = scalar_select %p36, 0, %s35
      %s38 = ssub.s32 %s25, %s37
      %p39 = scmp.eq.s32.totalorder %s38, 0
      %s41 = sadd.s32 %s40, 1
      %s42 = scalar_select %p39, %s40, %s41
      %p45 = pneg %p39
      %p46 = scmp.eq.s32.totalorder %s18, 8
      %p47 = por %p45, %p46
      %p48 = scmp.ne.s32.totalorder %s40, %s43
      %p49 = scmp.eq.s32.totalorder %s18, 0
      %p50 = por %p48, %p49
      %p51 = scmp.ne.s32.totalorder %s40, %s43
      %p52 = scmp.eq.s32.totalorder %s23, 8
      %p53 = por %p51, %p52
      %p54 = scmp.ne.s32.totalorder %s43, %s44
      %p55 = scmp.eq.s32.totalorder %s23, 0
      %p56 = por %p54, %p55
      %p57 = scmp.ne.s32.totalorder %s43, %s44
      %p58 = scmp.eq.s32.totalorder %s24, 8
      %p59 = por %p57, %p58
      %p61 = scmp.ne.s32.totalorder %s44, %s60
      %p62 = scmp.eq.s32.totalorder %s24, 0
      %p63 = por %p61, %p62
      %s64 = ssub.s32 %s26, %s33
      %p65 = scmp.eq.s32.totalorder %s64, 0
      %s67 = sadd.s32 %s66, 1
      %s68 = scalar_select %p65, %s66, %s67
      %p71 = pneg %p65
      %p72 = scmp.eq.s32.totalorder %s18, 8
      %p73 = por %p71, %p72
      %p74 = scmp.ne.s32.totalorder %s66, %s69
      %p75 = scmp.eq.s32.totalorder %s18, 0
      %p76 = por %p74, %p75
      %p77 = scmp.ne.s32.totalorder %s66, %s69
      %p78 = scmp.eq.s32.totalorder %s23, 8
      %p79 = por %p77, %p78
      %p80 = scmp.ne.s32.totalorder %s69, %s70
      %p81 = scmp.eq.s32.totalorder %s23, 0
      %p82 = por %p80, %p81
      %p83 = scmp.ne.s32.totalorder %s69, %s70
      %p84 = scmp.eq.s32.totalorder %s24, 8
      %p85 = por %p83, %p84
      %p87 = scmp.ne.s32.totalorder %s70, %s86
      %p88 = scmp.eq.s32.totalorder %s24, 0
      %p89 = por %p87, %p88
      %s90 = ssub.s32 %s26, %s33
      %p91 = scmp.eq.s32.totalorder %s90, 0
      %s93 = sadd.s32 %s92, 1
      %s94 = scalar_select %p91, %s92, %s93
      %p97 = pneg %p91
      %p98 = scmp.eq.s32.totalorder %s18, 8
      %p99 = por %p97, %p98
      %p100 = scmp.ne.s32.totalorder %s92, %s95
      %p101 = scmp.eq.s32.totalorder %s18, 0
      %p102 = por %p100, %p101
      %p103 = scmp.ne.s32.totalorder %s92, %s95
      %p104 = scmp.eq.s32.totalorder %s23, 8
      %p105 = por %p103, %p104
      %p106 = scmp.ne.s32.totalorder %s95, %s96
      %p107 = scmp.eq.s32.totalorder %s23, 0
      %p108 = por %p106, %p107
      %p109 = scmp.ne.s32.totalorder %s95, %s96
      %p110 = scmp.eq.s32.totalorder %s24, 8
      %p111 = por %p109, %p110
      %p113 = scmp.ne.s32.totalorder %s96, %s112
      %p114 = scmp.eq.s32.totalorder %s24, 0
      %p115 = por %p113, %p114
      %s117 = sadd.s32 %s116, 1
      %p120 = scmp.eq.s32.totalorder %s18, 8
      %p121 = scmp.ne.s32.totalorder %s116, %s118
      %p122 = scmp.eq.s32.totalorder %s18, 0
      %p123 = por %p121, %p122
      %p124 = scmp.ne.s32.totalorder %s116, %s118
      %p125 = scmp.eq.s32.totalorder %s23, 8
      %p126 = por %p124, %p125
      %p127 = scmp.ne.s32.totalorder %s118, %s119
      %p128 = scmp.eq.s32.totalorder %s23, 0
      %p129 = por %p127, %p128
      %p130 = scmp.ne.s32.totalorder %s118, %s119
      %p131 = scmp.eq.s32.totalorder %s24, 8
      %p132 = por %p130, %p131
      %p134 = scmp.ne.s32.totalorder %s119, %s133
      %p135 = scmp.eq.s32.totalorder %s24, 0
      %p136 = por %p134, %p135
      %s138 = sadd.s32 %s137, 1
      %p141 = scmp.eq.s32.totalorder %s18, 8
      %p142 = scmp.ne.s32.totalorder %s137, %s139
      %p143 = scmp.eq.s32.totalorder %s18, 0
      %p144 = por %p142, %p143
      %p145 = scmp.ne.s32.totalorder %s137, %s139
      %p146 = scmp.eq.s32.totalorder %s23, 8
      %p147 = por %p145, %p146
      %p148 = scmp.ne.s32.totalorder %s139, %s140
      %p149 = scmp.eq.s32.totalorder %s23, 0
      %p150 = por %p148, %p149
      %p151 = scmp.ne.s32.totalorder %s139, %s140
      %p152 = scmp.eq.s32.totalorder %s24, 8
      %p153 = por %p151, %p152
      %p155 = scmp.ne.s32.totalorder %s140, %s154
      %p156 = scmp.eq.s32.totalorder %s24, 0
      %p157 = por %p155, %p156
      %s159 = sadd.s32 %s158, 1
      %p162 = scmp.eq.s32.totalorder %s18, 8
      %p163 = scmp.ne.s32.totalorder %s158, %s160
      %p164 = scmp.eq.s32.totalorder %s18, 0
      %p165 = por %p163, %p164
      %p166 = scmp.ne.s32.totalorder %s158, %s160
      %p167 = scmp.eq.s32.totalorder %s23, 8
      %p168 = por %p166, %p167
      %p169 = scmp.ne.s32.totalorder %s160, %s161
      %p170 = scmp.eq.s32.totalorder %s23, 0
      %p171 = por %p169, %p170
      %p172 = scmp.ne.s32.totalorder %s160, %s161
      %p173 = scmp.eq.s32.totalorder %s24, 8
      %p174 = por %p172, %p173
      %p176 = scmp.ne.s32.totalorder %s161, %s175
      %p177 = scmp.eq.s32.totalorder %s24, 0
      %p178 = por %p176, %p177
      %s180 = sadd.s32 %s179, 1
      %p183 = scmp.eq.s32.totalorder %s18, 8
      %p184 = scmp.ne.s32.totalorder %s179, %s181
      %p185 = scmp.eq.s32.totalorder %s18, 0
      %p186 = por %p184, %p185
      %p187 = scmp.ne.s32.totalorder %s179, %s181
      %p188 = scmp.eq.s32.totalorder %s23, 8
      %p189 = por %p187, %p188
      %p190 = scmp.ne.s32.totalorder %s181, %s182
      %p191 = scmp.eq.s32.totalorder %s23, 0
      %p192 = por %p190, %p191
      %p193 = scmp.ne.s32.totalorder %s181, %s182
      %p194 = scmp.eq.s32.totalorder %s24, 8
      %p195 = por %p193, %p194
      %p197 = scmp.ne.s32.totalorder %s182, %s196
      %p198 = scmp.eq.s32.totalorder %s24, 0
      %p199 = por %p197, %p198
      %s200 = ssub.s32 %s25, %s37
      %s201 = ssub.s32 %s26, %s33
      %s202 = sor.u32 %s200, %s201
      %p203 = scmp.eq.s32.totalorder %s202, 0
      %s205 = sadd.s32 %s204, 1
      %s206 = scalar_select %p203, %s204, %s205
      %p209 = pneg %p203
      %p210 = scmp.eq.s32.totalorder %s18, 8
      %p211 = por %p209, %p210
      %p212 = scmp.ne.s32.totalorder %s204, %s207
      %p213 = scmp.eq.s32.totalorder %s18, 0
      %p214 = por %p212, %p213
      %p215 = scmp.ne.s32.totalorder %s204, %s207
      %p216 = scmp.eq.s32.totalorder %s23, 8
      %p217 = por %p215, %p216
      %p218 = scmp.ne.s32.totalorder %s207, %s208
      %p219 = scmp.eq.s32.totalorder %s23, 0
      %p220 = por %p218, %p219
      %p221 = scmp.ne.s32.totalorder %s207, %s208
      %p222 = scmp.eq.s32.totalorder %s24, 8
      %p223 = por %p221, %p222
      %p225 = scmp.ne.s32.totalorder %s208, %s224
      %p226 = scmp.eq.s32.totalorder %s24, 0
      %p227 = por %p225, %p226
      %s228 = ssub.s32 %s25, %s37
      %p229 = scmp.eq.s32.totalorder %s228, 0
      %s231 = sadd.s32 %s230, 1
      %s232 = scalar_select %p229, %s230, %s231
      %p235 = pneg %p229
      %p236 = scmp.eq.s32.totalorder %s18, 8
      %p237 = por %p235, %p236
      %p238 = scmp.ne.s32.totalorder %s230, %s233
      %p239 = scmp.eq.s32.totalorder %s18, 0
      %p240 = por %p238, %p239
      %p241 = scmp.ne.s32.totalorder %s230, %s233
      %p242 = scmp.eq.s32.totalorder %s23, 8
      %p243 = por %p241, %p242
      %p244 = scmp.ne.s32.totalorder %s233, %s234
      %p245 = scmp.eq.s32.totalorder %s23, 0
      %p246 = por %p244, %p245
      %p247 = scmp.ne.s32.totalorder %s233, %s234
      %p248 = scmp.eq.s32.totalorder %s24, 8
      %p249 = por %p247, %p248
      %p251 = scmp.ne.s32.totalorder %s234, %s250
      %p252 = scmp.eq.s32.totalorder %s24, 0
      %p253 = por %p251, %p252
      %s255 = sadd.s32 %s254, 1
      %p258 = scmp.eq.s32.totalorder %s18, 8
      %p259 = scmp.ne.s32.totalorder %s254, %s256
      %p260 = scmp.eq.s32.totalorder %s18, 0
      %p261 = por %p259, %p260
      %p262 = scmp.ne.s32.totalorder %s254, %s256
      %p263 = scmp.eq.s32.totalorder %s23, 8
      %p264 = por %p262, %p263
      %p265 = scmp.ne.s32.totalorder %s256, %s257
      %p266 = scmp.eq.s32.totalorder %s23, 0
      %p267 = por %p265, %p266
      %p268 = scmp.ne.s32.totalorder %s256, %s257
      %p269 = scmp.eq.s32.totalorder %s24, 8
      %p270 = por %p268, %p269
      %p272 = scmp.ne.s32.totalorder %s257, %s271
      %p273 = scmp.eq.s32.totalorder %s24, 0
      %p274 = por %p272, %p273
      %s276 = sadd.s32 %s275, 1
      %p279 = scmp.eq.s32.totalorder %s18, 8
      %p280 = scmp.ne.s32.totalorder %s275, %s277
      %p281 = scmp.eq.s32.totalorder %s18, 0
      %p282 = por %p280, %p281
      %p283 = scmp.ne.s32.totalorder %s275, %s277
      %p284 = scmp.eq.s32.totalorder %s23, 8
      %p285 = por %p283, %p284
      %p286 = scmp.ne.s32.totalorder %s277, %s278
      %p287 = scmp.eq.s32.totalorder %s23, 0
      %p288 = por %p286, %p287
      %p289 = scmp.ne.s32.totalorder %s277, %s278
      %p290 = scmp.eq.s32.totalorder %s24, 8
      %p291 = por %p289, %p290
      %p293 = scmp.ne.s32.totalorder %s278, %s292
      %p294 = scmp.eq.s32.totalorder %s24, 0
      %p295 = por %p293, %p294
      %s297 = sadd.s32 %s296, 1
      %p300 = scmp.eq.s32.totalorder %s18, 8
      %p301 = scmp.ne.s32.totalorder %s296, %s298
      %p302 = scmp.eq.s32.totalorder %s18, 0
      %p303 = por %p301, %p302
      %p304 = scmp.ne.s32.totalorder %s296, %s298
      %p305 = scmp.eq.s32.totalorder %s23, 8
      %p306 = por %p304, %p305
      %p307 = scmp.ne.s32.totalorder %s298, %s299
      %p308 = scmp.eq.s32.totalorder %s23, 0
      %p309 = por %p307, %p308
      %p310 = scmp.ne.s32.totalorder %s298, %s299
      %p311 = scmp.eq.s32.totalorder %s24, 8
      %p312 = por %p310, %p311
      %p314 = scmp.ne.s32.totalorder %s299, %s313
      %p315 = scmp.eq.s32.totalorder %s24, 0
      %p316 = por %p314, %p315
      %p317 = scmp.le.s32.totalorder 1, %s18
      %p318 = scmp.lt.s32.totalorder %s18, 10
      %p319 = pnand %p317, %p318
      %p320 = pneg %p319
      // Predicated region
      $region9: #{tpu_custom_call.1} parent=5 // pred_check
        _
      $region10: #{tpu_custom_call.1} parent=5 // pred_check_branch
        %322 = sbr.rel (%p319) target = $region12
      $region11: #{tpu_custom_call.1} parent=5 // pred_region
        %s323 = ssub.s32 %s18, 1
        // Predicated region
        $region13: #{tpu_custom_call.1} parent=11 // pred_check
          %p324 = pneg %p129
        $region14: #{tpu_custom_call.1} parent=11 // pred_check_branch
          %326 = sbr.rel (%p324) target = $region16
        $region15: #{tpu_custom_call.1} parent=11 // pred_region
          _
        $region16: #{tpu_custom_call.1} parent=11 // pred_fallthru
          _
        // Predicated region
        $region17: #{tpu_custom_call.1} parent=11 // pred_check
          %p327 = pneg %p150
        $region18: #{tpu_custom_call.1} parent=11 // pred_check_branch
          %329 = sbr.rel (%p327) target = $region20
        $region19: #{tpu_custom_call.1} parent=11 // pred_region
          _
        $region20: #{tpu_custom_call.1} parent=11 // pred_fallthru
          _
        // Predicated region
        $region21: #{tpu_custom_call.1} parent=11 // pred_check
          %p330 = pneg %p171
        $region22: #{tpu_custom_call.1} parent=11 // pred_check_branch
          %332 = sbr.rel (%p330) target = $region24
        $region23: #{tpu_custom_call.1} parent=11 // pred_region
          _
        $region24: #{tpu_custom_call.1} parent=11 // pred_fallthru
          _
        // Predicated region
        $region25: #{tpu_custom_call.1} parent=11 // pred_check
          %p333 = pneg %p192
        $region26: #{tpu_custom_call.1} parent=11 // pred_check_branch
          %335 = sbr.rel (%p333) target = $region28
        $region27: #{tpu_custom_call.1} parent=11 // pred_region
          _
        $region28: #{tpu_custom_call.1} parent=11 // pred_fallthru
          _
        // Predicated region
        $region29: #{tpu_custom_call.1} parent=11 // pred_check
          %p336 = pneg %p267
        $region30: #{tpu_custom_call.1} parent=11 // pred_check_branch
          %338 = sbr.rel (%p336) target = $region32
        $region31: #{tpu_custom_call.1} parent=11 // pred_region
          _
        $region32: #{tpu_custom_call.1} parent=11 // pred_fallthru
          _
        // Predicated region
        $region33: #{tpu_custom_call.1} parent=11 // pred_check
          %p339 = pneg %p288
        $region34: #{tpu_custom_call.1} parent=11 // pred_check_branch
          %341 = sbr.rel (%p339) target = $region36
        $region35: #{tpu_custom_call.1} parent=11 // pred_region
          _
        $region36: #{tpu_custom_call.1} parent=11 // pred_fallthru
          _
      $region12: #{tpu_custom_call.1} parent=5 // pred_fallthru
        _
      %p342 = scmp.lt.s32.totalorder %s18, 9
      // Predicated region
      $region37: #{tpu_custom_call.1} parent=5 // pred_check
        %p343 = pneg %p342
      $region38: #{tpu_custom_call.1} parent=5 // pred_check_branch
        %345 = sbr.rel (%p343) target = $region40
      $region39: #{tpu_custom_call.1} parent=5 // pred_region
        // Predicated region
        $region41: #{tpu_custom_call.1} parent=39 // pred_check
          %p346 = pneg %p50
        $region42: #{tpu_custom_call.1} parent=39 // pred_check_branch
          %348 = sbr.rel (%p346) target = $region44
        $region43: #{tpu_custom_call.1} parent=39 // pred_region
          %s349 = smul.u32 16, %s25
          %p350 = scmp.lt.s32.totalorder %s349, 47
          %s351 = scalar_select %p350, %s349, 47
          %s352 = smul.addr %s351, 8
          %s353 = scalar_lea.vmem %s0, %s352
          %s354 = smul.u32 16, %s25
        $region44: #{tpu_custom_call.1} parent=39 // pred_fallthru
          _
        // Predicated region
        $region45: #{tpu_custom_call.1} parent=39 // pred_check
          %p355 = pneg %p76
        $region46: #{tpu_custom_call.1} parent=39 // pred_check_branch
          %357 = sbr.rel (%p355) target = $region48
        $region47: #{tpu_custom_call.1} parent=39 // pred_region
          %s358 = smul.u32 16, %s26
          %p359 = scmp.lt.s32.totalorder %s358, 47
          %s360 = scalar_select %p359, %s358, 47
          %s361 = smul.addr %s360, 8
          %s362 = scalar_lea.vmem %s1, %s361
          %s363 = smul.u32 16, %s26
        $region48: #{tpu_custom_call.1} parent=39 // pred_fallthru
          _
        // Predicated region
        $region49: #{tpu_custom_call.1} parent=39 // pred_check
          %p364 = pneg %p102
        $region50: #{tpu_custom_call.1} parent=39 // pred_check_branch
          %366 = sbr.rel (%p364) target = $region52
        $region51: #{tpu_custom_call.1} parent=39 // pred_region
          %p367 = scmp.lt.s32.totalorder %s26, 2
          %s368 = scalar_select %p367, %s26, 2
          %s369 = smul.addr %s368, 8
          %s370 = scalar_lea.vmem %s2, %s369
        $region52: #{tpu_custom_call.1} parent=39 // pred_fallthru
          _
        // Predicated region
        $region53: #{tpu_custom_call.1} parent=39 // pred_check
          %p371 = pneg %p214
        $region54: #{tpu_custom_call.1} parent=39 // pred_check_branch
          %373 = sbr.rel (%p371) target = $region56
        $region55: #{tpu_custom_call.1} parent=39 // pred_region
          %s374 = sand.u32 %s204, 1
          %s375 = sand.u32 %s204, 1
          %s376 = smul.addr %s375, 32
          %s377 = scalar_lea.vmem [#allocation6], %s376
          %s378 = smul.u32 4, %s25
          %s379 = smul.addr %s378, 3
          %s380 = sadd.s32 %s26, %s379
          %s381 = smul.addr %s380, 8
          %s382 = scalar_lea.vmem %s7, %s381
          // Predicated region
          $region57: #{tpu_custom_call.1} parent=55 // pred_check
            _
          $region58: #{tpu_custom_call.1} parent=55 // pred_check_branch
            %384 = sbr.rel (0) target = $region60
          $region59: #{tpu_custom_call.1} parent=55 // pred_region
            // Predicated region
            $region61: #{tpu_custom_call.1} parent=59 // pred_check
              _
            $region62: #{tpu_custom_call.1} parent=59 // pred_check_branch
              %386 = sbr.rel (0) target = $region64
            $region63: #{tpu_custom_call.1} parent=59 // pred_region
              // Predicated region
              $region76: #{tpu_custom_call.1} parent=63 // pred_check
                _
              $region77: #{tpu_custom_call.1} parent=63 // pred_check_branch
                %408 = sbr.rel (0) target = $region79
              $region78: #{tpu_custom_call.1} parent=63 // pred_region
                loop: start=0, step=1, limit=1
                $region80: #{tpu_custom_call.1} parent=78 // loop_pre_header
                  _
                $region81: #{tpu_custom_call.1} parent=78 // loop_header
                  %s410 = sphi 0, %s414
                  %p411 = scmp.ge.s32.totalorder %s410, 1
                  %s415 = sphi %s382, %s382
                  %s416 = sphi %s377, %s377
                $region82: #{tpu_custom_call.1} parent=78 // loop_header_branch
                  %413 = sbr.rel (%p411) target = $region86
                $region83: #{tpu_custom_call.1} parent=78 // loop_body
                  %v417 = vld [vmem:[%s415] sm:$0xff]
                  %418 = vst [vmem:[%s416] sm:$0xff] %v417
                  %v419 = vld [vmem:[%s415 + $0x18] sm:$0xff]
                  %420 = vst [vmem:[%s416 + $0x8] sm:$0xff] %v419
                  %v421 = vld [vmem:[%s415 + $0x30] sm:$0xff]
                  %422 = vst [vmem:[%s416 + $0x10] sm:$0xff] %v421
                  %v423 = vld [vmem:[%s415 + $0x48] sm:$0xff]
                  %424 = vst [vmem:[%s416 + $0x18] sm:$0xff] %v423
                $region84: #{tpu_custom_call.1} parent=78 // loop_footer
                  %s414 = sadd.s32 1, %s410
                $region85: #{tpu_custom_call.1} parent=78 // loop_footer_branch
                  %409 = sbr.rel target = $region81
                $region86: #{tpu_custom_call.1} parent=78 // loop_exit
                  _
              $region79: #{tpu_custom_call.1} parent=63 // pred_fallthru
                _
              // Predicated region
              $region87: #{tpu_custom_call.1} parent=63 // pred_check
                _
              $region88: #{tpu_custom_call.1} parent=63 // pred_check_branch
                %426 = sbr.rel target = $region90
              $region89: #{tpu_custom_call.1} parent=63 // pred_region
                _
              $region90: #{tpu_custom_call.1} parent=63 // pred_fallthru
                _
            $region64: #{tpu_custom_call.1} parent=59 // pred_fallthru
              _
            // Predicated region
            $region65: #{tpu_custom_call.1} parent=59 // pred_check
              _
            $region66: #{tpu_custom_call.1} parent=59 // pred_check_branch
              %388 = sbr.rel target = $region68
            $region67: #{tpu_custom_call.1} parent=59 // pred_region
              %s390 = ssub.s32 256, 1
              loop: start=0, step=1, limit=1
              $region69: #{tpu_custom_call.1} parent=67 // loop_pre_header
                _
              $region70: #{tpu_custom_call.1} parent=67 // loop_header
                %s392 = sphi 0, %s396
                %p393 = scmp.ge.s32.totalorder %s392, 1
                %s397 = sphi %s382, %s382
                %s398 = sphi %s377, %s377
              $region71: #{tpu_custom_call.1} parent=67 // loop_header_branch
                %395 = sbr.rel (%p393) target = $region75
              $region72: #{tpu_custom_call.1} parent=67 // loop_body
                %v399 = vld [vmem:[%s397] sm:%s390]
                %400 = vst [vmem:[%s398] sm:%s390] %v399
                %v401 = vld [vmem:[%s397 + $0x18] sm:%s390]
                %402 = vst [vmem:[%s398 + $0x8] sm:%s390] %v401
                %v403 = vld [vmem:[%s397 + $0x30] sm:%s390]
                %404 = vst [vmem:[%s398 + $0x10] sm:%s390] %v403
                %v405 = vld [vmem:[%s397 + $0x48] sm:%s390]
                %406 = vst [vmem:[%s398 + $0x18] sm:%s390] %v405
              $region73: #{tpu_custom_call.1} parent=67 // loop_footer
                %s396 = sadd.s32 1, %s392
              $region74: #{tpu_custom_call.1} parent=67 // loop_footer_branch
                %391 = sbr.rel target = $region70
              $region75: #{tpu_custom_call.1} parent=67 // loop_exit
                _
            $region68: #{tpu_custom_call.1} parent=59 // pred_fallthru
              _
          $region60: #{tpu_custom_call.1} parent=55 // pred_fallthru
            _
          %427 = vnop
        $region56: #{tpu_custom_call.1} parent=39 // pred_fallthru
          _
        // Predicated region
        $region91: #{tpu_custom_call.1} parent=39 // pred_check
          %p428 = pneg %p240
        $region92: #{tpu_custom_call.1} parent=39 // pred_check_branch
          %430 = sbr.rel (%p428) target = $region94
        $region93: #{tpu_custom_call.1} parent=39 // pred_region
          %p431 = scmp.lt.s32.totalorder %s25, 2
          %s432 = scalar_select %p431, %s25, 2
          %s433 = smul.addr %s432, 4
          %s434 = scalar_lea.vmem %s8, %s433
        $region94: #{tpu_custom_call.1} parent=39 // pred_fallthru
          _
      $region40: #{tpu_custom_call.1} parent=5 // pred_fallthru
        _
      %p435 = scmp.le.s32.totalorder 1, %s18
      %p436 = scmp.lt.s32.totalorder %s18, 10
      %p437 = pnand %p435, %p436
      %p438 = pneg %p437
      // Predicated region
      $region95: #{tpu_custom_call.1} parent=5 // pred_check
        _
      $region96: #{tpu_custom_call.1} parent=5 // pred_check_branch
        %440 = sbr.rel (%p437) target = $region98
      $region97: #{tpu_custom_call.1} parent=5 // pred_region
        %s441 = ssub.s32 %s18, 1
        %s442 = sand.u32 %s207, 1
        %s443 = sand.u32 %s207, 1
        %s444 = smul.addr %s443, 32
        %s445 = scalar_lea.vmem [#allocation6], %s444
        // Predicated region
        $region99: #{tpu_custom_call.1} parent=97 // pred_check
          %p446 = pneg %p220
        $region100: #{tpu_custom_call.1} parent=97 // pred_check_branch
          %448 = sbr.rel (%p446) target = $region102
        $region101: #{tpu_custom_call.1} parent=97 // pred_region
          _
        $region102: #{tpu_custom_call.1} parent=97 // pred_fallthru
          _
        %s449 = smul.u32 16, %s27
        %p450 = scmp.lt.s32.totalorder %s449, 47
        %s451 = scalar_select %p450, %s449, 47
        %s452 = smul.addr %s451, 8
        %s453 = scalar_lea.vmem %s0, %s452
        %p454 = pneg %p56
        %p455 = pneg %p53
        %s456 = smul.u32 16, %s28
        %p457 = scmp.lt.s32.totalorder %s456, 47
        %s458 = scalar_select %p457, %s456, 47
        %s459 = smul.addr %s458, 8
        %s460 = scalar_lea.vmem %s1, %s459
        %p461 = pneg %p82
        %p462 = pneg %p79
        %p463 = scmp.lt.s32.totalorder %s28, 2
        %s464 = scalar_select %p463, %s28, 2
        %s465 = smul.addr %s464, 8
        %s466 = scalar_lea.vmem %s2, %s465
        %p467 = pneg %p108
        %p468 = pneg %p105
        %p469 = pneg %p129
        %p470 = pneg %p126
        %p471 = pneg %p150
        %p472 = pneg %p147
        %p473 = pneg %p171
        %p474 = pneg %p168
        %p475 = pneg %p192
        %p476 = pneg %p189
        %s477 = sand.u32 %s207, 1
        %s478 = sand.u32 %s207, 1
        %s479 = smul.addr %s478, 32
        %s480 = scalar_lea.vmem [#allocation6], %s479
        %p481 = pneg %p220
        %p482 = pneg %p217
        %p483 = scmp.lt.s32.totalorder %s27, 2
        %s484 = scalar_select %p483, %s27, 2
        %s485 = smul.addr %s484, 4
        %s486 = scalar_lea.vmem %s8, %s485
        %p487 = pneg %p246
        %p488 = pneg %p243
        %p489 = pneg %p267
        %p490 = pneg %p264
        %p491 = pneg %p288
        %p492 = pneg %p285
        %p493 = pneg %p309
        %p494 = pneg %p306
        %s495 = smul.u32 16, %s27
        %p496 = scmp.lt.s32.totalorder %s495, 47
        %s497 = scalar_select %p496, %s495, 47
        %s498 = smul.addr %s497, 8
        %s499 = scalar_lea.vmem %s0, %s498
        %s500 = smul.u32 16, %s27
        %s501 = smul.u32 16, %s28
        %p502 = scmp.lt.s32.totalorder %s501, 47
        %s503 = scalar_select %p502, %s501, 47
        %s504 = smul.addr %s503, 8
        %s505 = scalar_lea.vmem %s1, %s504
        %s506 = smul.u32 16, %s28
        %p507 = scmp.lt.s32.totalorder %s28, 2
        %s508 = scalar_select %p507, %s28, 2
        %s509 = smul.addr %s508, 8
        %s510 = scalar_lea.vmem %s2, %s509
        %s511 = smul.u32 4, %s27
        %p512 = scmp.lt.s32.totalorder %s27, 2
        %s513 = scalar_select %p512, %s27, 2
        %s514 = smul.addr %s513, 4
        %s515 = scalar_lea.vmem %s8, %s514
        %p516 = scmp.eq.s32.totalorder %s28, 0
        // Predicated region
        $region103: #{tpu_custom_call.1} parent=97 // pred_check
          %p517 = pneg %p516
        $region104: #{tpu_custom_call.1} parent=97 // pred_check_branch
          %519 = sbr.rel (%p517) target = $region106
        $region105: #{tpu_custom_call.1} parent=97 // pred_region
          %vm520 = vcmask 7168
          %521 = vst.msk [vmem:[#allocation2] sm:$0xff] %vm520, -1e+30
          %522 = vst.msk [vmem:[#allocation2 + $0x8] sm:$0xff] %vm520, -1e+30
          %523 = vst.msk [vmem:[#allocation2 + $0x10] sm:$0xff] %vm520, -1e+30
          %524 = vst.msk [vmem:[#allocation2 + $0x18] sm:$0xff] %vm520, -1e+30
          %525 = vst.msk [vmem:[#allocation2 + $0x20] sm:$0xff] %vm520, -1e+30
          %526 = vst.msk [vmem:[#allocation2 + $0x28] sm:$0xff] %vm520, -1e+30
          %527 = vst.msk [vmem:[#allocation2 + $0x30] sm:$0xff] %vm520, -1e+30
          %528 = vst.msk [vmem:[#allocation2 + $0x38] sm:$0xff] %vm520, -1e+30
          %529 = vst.msk [vmem:[#allocation2 + $0x40] sm:$0xff] %vm520, -1e+30
          %530 = vst.msk [vmem:[#allocation2 + $0x48] sm:$0xff] %vm520, -1e+30
          %531 = vst.msk [vmem:[#allocation2 + $0x50] sm:$0xff] %vm520, -1e+30
          %532 = vst.msk [vmem:[#allocation2 + $0x58] sm:$0xff] %vm520, -1e+30
          %533 = vst.msk [vmem:[#allocation2 + $0x60] sm:$0xff] %vm520, -1e+30
          %534 = vst.msk [vmem:[#allocation2 + $0x68] sm:$0xff] %vm520, -1e+30
          %535 = vst.msk [vmem:[#allocation2 + $0x70] sm:$0xff] %vm520, -1e+30
          %536 = vst.msk [vmem:[#allocation2 + $0x78] sm:$0xff] %vm520, -1e+30
          %537 = vst.msk [vmem:[#allocation2 + $0x80] sm:$0xff] %vm520, -1e+30
          %538 = vst.msk [vmem:[#allocation2 + $0x88] sm:$0xff] %vm520, -1e+30
          %539 = vst.msk [vmem:[#allocation2 + $0x90] sm:$0xff] %vm520, -1e+30
          %540 = vst.msk [vmem:[#allocation2 + $0x98] sm:$0xff] %vm520, -1e+30
          %541 = vst.msk [vmem:[#allocation2 + $0xa0] sm:$0xff] %vm520, -1e+30
          %542 = vst.msk [vmem:[#allocation2 + $0xa8] sm:$0xff] %vm520, -1e+30
          %543 = vst.msk [vmem:[#allocation2 + $0xb0] sm:$0xff] %vm520, -1e+30
          %544 = vst.msk [vmem:[#allocation2 + $0xb8] sm:$0xff] %vm520, -1e+30
          %545 = vst.msk [vmem:[#allocation2 + $0xc0] sm:$0xff] %vm520, -1e+30
          %546 = vst.msk [vmem:[#allocation2 + $0xc8] sm:$0xff] %vm520, -1e+30
          %547 = vst.msk [vmem:[#allocation2 + $0xd0] sm:$0xff] %vm520, -1e+30
          %548 = vst.msk [vmem:[#allocation2 + $0xd8] sm:$0xff] %vm520, -1e+30
          %549 = vst.msk [vmem:[#allocation2 + $0xe0] sm:$0xff] %vm520, -1e+30
          %550 = vst.msk [vmem:[#allocation2 + $0xe8] sm:$0xff] %vm520, -1e+30
          %551 = vst.msk [vmem:[#allocation2 + $0xf0] sm:$0xff] %vm520, -1e+30
          %552 = vst.msk [vmem:[#allocation2 + $0xf8] sm:$0xff] %vm520, -1e+30
          %553 = vst.msk [vmem:[#allocation2 + $0x100] sm:$0xff] %vm520, -1e+30
          %554 = vst.msk [vmem:[#allocation2 + $0x108] sm:$0xff] %vm520, -1e+30
          %555 = vst.msk [vmem:[#allocation2 + $0x110] sm:$0xff] %vm520, -1e+30
          %556 = vst.msk [vmem:[#allocation2 + $0x118] sm:$0xff] %vm520, -1e+30
          %557 = vst.msk [vmem:[#allocation2 + $0x120] sm:$0xff] %vm520, -1e+30
          %558 = vst.msk [vmem:[#allocation2 + $0x128] sm:$0xff] %vm520, -1e+30
          %559 = vst.msk [vmem:[#allocation2 + $0x130] sm:$0xff] %vm520, -1e+30
          %560 = vst.msk [vmem:[#allocation2 + $0x138] sm:$0xff] %vm520, -1e+30
          %561 = vst.msk [vmem:[#allocation2 + $0x140] sm:$0xff] %vm520, -1e+30
          %562 = vst.msk [vmem:[#allocation2 + $0x148] sm:$0xff] %vm520, -1e+30
          %563 = vst.msk [vmem:[#allocation2 + $0x150] sm:$0xff] %vm520, -1e+30
          %564 = vst.msk [vmem:[#allocation2 + $0x158] sm:$0xff] %vm520, -1e+30
          %565 = vst.msk [vmem:[#allocation2 + $0x160] sm:$0xff] %vm520, -1e+30
          %566 = vst.msk [vmem:[#allocation2 + $0x168] sm:$0xff] %vm520, -1e+30
          %567 = vst.msk [vmem:[#allocation2 + $0x170] sm:$0xff] %vm520, -1e+30
          %568 = vst.msk [vmem:[#allocation2 + $0x178] sm:$0xff] %vm520, -1e+30
          %569 = vst.msk [vmem:[#allocation3] sm:$0xff] %vm520, 0.0
          %570 = vst.msk [vmem:[#allocation3 + $0x8] sm:$0xff] %vm520, 0.0
          %571 = vst.msk [vmem:[#allocation3 + $0x10] sm:$0xff] %vm520, 0.0
          %572 = vst.msk [vmem:[#allocation3 + $0x18] sm:$0xff] %vm520, 0.0
          %573 = vst.msk [vmem:[#allocation3 + $0x20] sm:$0xff] %vm520, 0.0
          %574 = vst.msk [vmem:[#allocation3 + $0x28] sm:$0xff] %vm520, 0.0
          %575 = vst.msk [vmem:[#allocation3 + $0x30] sm:$0xff] %vm520, 0.0
          %576 = vst.msk [vmem:[#allocation3 + $0x38] sm:$0xff] %vm520, 0.0
          %577 = vst.msk [vmem:[#allocation3 + $0x40] sm:$0xff] %vm520, 0.0
          %578 = vst.msk [vmem:[#allocation3 + $0x48] sm:$0xff] %vm520, 0.0
          %579 = vst.msk [vmem:[#allocation3 + $0x50] sm:$0xff] %vm520, 0.0
          %580 = vst.msk [vmem:[#allocation3 + $0x58] sm:$0xff] %vm520, 0.0
          %581 = vst.msk [vmem:[#allocation3 + $0x60] sm:$0xff] %vm520, 0.0
          %582 = vst.msk [vmem:[#allocation3 + $0x68] sm:$0xff] %vm520, 0.0
          %583 = vst.msk [vmem:[#allocation3 + $0x70] sm:$0xff] %vm520, 0.0
          %584 = vst.msk [vmem:[#allocation3 + $0x78] sm:$0xff] %vm520, 0.0
          %585 = vst.msk [vmem:[#allocation3 + $0x80] sm:$0xff] %vm520, 0.0
          %586 = vst.msk [vmem:[#allocation3 + $0x88] sm:$0xff] %vm520, 0.0
          %587 = vst.msk [vmem:[#allocation3 + $0x90] sm:$0xff] %vm520, 0.0
          %588 = vst.msk [vmem:[#allocation3 + $0x98] sm:$0xff] %vm520, 0.0
          %589 = vst.msk [vmem:[#allocation3 + $0xa0] sm:$0xff] %vm520, 0.0
          %590 = vst.msk [vmem:[#allocation3 + $0xa8] sm:$0xff] %vm520, 0.0
          %591 = vst.msk [vmem:[#allocation3 + $0xb0] sm:$0xff] %vm520, 0.0
          %592 = vst.msk [vmem:[#allocation3 + $0xb8] sm:$0xff] %vm520, 0.0
          %593 = vst.msk [vmem:[#allocation3 + $0xc0] sm:$0xff] %vm520, 0.0
          %594 = vst.msk [vmem:[#allocation3 + $0xc8] sm:$0xff] %vm520, 0.0
          %595 = vst.msk [vmem:[#allocation3 + $0xd0] sm:$0xff] %vm520, 0.0
          %596 = vst.msk [vmem:[#allocation3 + $0xd8] sm:$0xff] %vm520, 0.0
          %597 = vst.msk [vmem:[#allocation3 + $0xe0] sm:$0xff] %vm520, 0.0
          %598 = vst.msk [vmem:[#allocation3 + $0xe8] sm:$0xff] %vm520, 0.0
          %599 = vst.msk [vmem:[#allocation3 + $0xf0] sm:$0xff] %vm520, 0.0
          %600 = vst.msk [vmem:[#allocation3 + $0xf8] sm:$0xff] %vm520, 0.0
          %601 = vst.msk [vmem:[#allocation3 + $0x100] sm:$0xff] %vm520, 0.0
          %602 = vst.msk [vmem:[#allocation3 + $0x108] sm:$0xff] %vm520, 0.0
          %603 = vst.msk [vmem:[#allocation3 + $0x110] sm:$0xff] %vm520, 0.0
          %604 = vst.msk [vmem:[#allocation3 + $0x118] sm:$0xff] %vm520, 0.0
          %605 = vst.msk [vmem:[#allocation3 + $0x120] sm:$0xff] %vm520, 0.0
          %606 = vst.msk [vmem:[#allocation3 + $0x128] sm:$0xff] %vm520, 0.0
          %607 = vst.msk [vmem:[#allocation3 + $0x130] sm:$0xff] %vm520, 0.0
          %608 = vst.msk [vmem:[#allocation3 + $0x138] sm:$0xff] %vm520, 0.0
          %609 = vst.msk [vmem:[#allocation3 + $0x140] sm:$0xff] %vm520, 0.0
          %610 = vst.msk [vmem:[#allocation3 + $0x148] sm:$0xff] %vm520, 0.0
          %611 = vst.msk [vmem:[#allocation3 + $0x150] sm:$0xff] %vm520, 0.0
          %612 = vst.msk [vmem:[#allocation3 + $0x158] sm:$0xff] %vm520, 0.0
          %613 = vst.msk [vmem:[#allocation3 + $0x160] sm:$0xff] %vm520, 0.0
          %614 = vst.msk [vmem:[#allocation3 + $0x168] sm:$0xff] %vm520, 0.0
          %615 = vst.msk [vmem:[#allocation3 + $0x170] sm:$0xff] %vm520, 0.0
          %616 = vst.msk [vmem:[#allocation3 + $0x178] sm:$0xff] %vm520, 0.0
          %617 = vst [vmem:[#allocation4] sm:$0xff] 0.0
          %618 = vst [vmem:[#allocation4 + $0x8] sm:$0xff] 0.0
          %619 = vst [vmem:[#allocation4 + $0x10] sm:$0xff] 0.0
          %620 = vst [vmem:[#allocation4 + $0x18] sm:$0xff] 0.0
          %621 = vst [vmem:[#allocation4 + $0x20] sm:$0xff] 0.0
          %622 = vst [vmem:[#allocation4 + $0x28] sm:$0xff] 0.0
          %623 = vst [vmem:[#allocation4 + $0x30] sm:$0xff] 0.0
          %624 = vst [vmem:[#allocation4 + $0x38] sm:$0xff] 0.0
          %625 = vst [vmem:[#allocation4 + $0x40] sm:$0xff] 0.0
          %626 = vst [vmem:[#allocation4 + $0x48] sm:$0xff] 0.0
          %627 = vst [vmem:[#allocation4 + $0x50] sm:$0xff] 0.0
          %628 = vst [vmem:[#allocation4 + $0x58] sm:$0xff] 0.0
          %629 = vst [vmem:[#allocation4 + $0x60] sm:$0xff] 0.0
          %630 = vst [vmem:[#allocation4 + $0x68] sm:$0xff] 0.0
          %631 = vst [vmem:[#allocation4 + $0x70] sm:$0xff] 0.0
          %632 = vst [vmem:[#allocation4 + $0x78] sm:$0xff] 0.0
          %633 = vst [vmem:[#allocation4 + $0x80] sm:$0xff] 0.0
          %634 = vst [vmem:[#allocation4 + $0x88] sm:$0xff] 0.0
          %635 = vst [vmem:[#allocation4 + $0x90] sm:$0xff] 0.0
          %636 = vst [vmem:[#allocation4 + $0x98] sm:$0xff] 0.0
          %637 = vst [vmem:[#allocation4 + $0xa0] sm:$0xff] 0.0
          %638 = vst [vmem:[#allocation4 + $0xa8] sm:$0xff] 0.0
          %639 = vst [vmem:[#allocation4 + $0xb0] sm:$0xff] 0.0
          %640 = vst [vmem:[#allocation4 + $0xb8] sm:$0xff] 0.0
          %641 = vst [vmem:[#allocation4 + $0xc0] sm:$0xff] 0.0
          %642 = vst [vmem:[#allocation4 + $0xc8] sm:$0xff] 0.0
          %643 = vst [vmem:[#allocation4 + $0xd0] sm:$0xff] 0.0
          %644 = vst [vmem:[#allocation4 + $0xd8] sm:$0xff] 0.0
          %645 = vst [vmem:[#allocation4 + $0xe0] sm:$0xff] 0.0
          %646 = vst [vmem:[#allocation4 + $0xe8] sm:$0xff] 0.0
          %647 = vst [vmem:[#allocation4 + $0xf0] sm:$0xff] 0.0
          %648 = vst [vmem:[#allocation4 + $0xf8] sm:$0xff] 0.0
          %649 = vst [vmem:[#allocation4 + $0x100] sm:$0xff] 0.0
          %650 = vst [vmem:[#allocation4 + $0x108] sm:$0xff] 0.0
          %651 = vst [vmem:[#allocation4 + $0x110] sm:$0xff] 0.0
          %652 = vst [vmem:[#allocation4 + $0x118] sm:$0xff] 0.0
          %653 = vst [vmem:[#allocation4 + $0x120] sm:$0xff] 0.0
          %654 = vst [vmem:[#allocation4 + $0x128] sm:$0xff] 0.0
          %655 = vst [vmem:[#allocation4 + $0x130] sm:$0xff] 0.0
          %656 = vst [vmem:[#allocation4 + $0x138] sm:$0xff] 0.0
          %657 = vst [vmem:[#allocation4 + $0x140] sm:$0xff] 0.0
          %658 = vst [vmem:[#allocation4 + $0x148] sm:$0xff] 0.0
          %659 = vst [vmem:[#allocation4 + $0x150] sm:$0xff] 0.0
          %660 = vst [vmem:[#allocation4 + $0x158] sm:$0xff] 0.0
          %661 = vst [vmem:[#allocation4 + $0x160] sm:$0xff] 0.0
          %662 = vst [vmem:[#allocation4 + $0x168] sm:$0xff] 0.0
          %663 = vst [vmem:[#allocation4 + $0x170] sm:$0xff] 0.0
          %664 = vst [vmem:[#allocation4 + $0x178] sm:$0xff] 0.0
        $region106: #{tpu_custom_call.1} parent=97 // pred_fallthru
          _
        %p665 = scmp.eq.s32.totalorder %s27, 0
        %p666 = pnand %p665, %p516
        %p667 = pneg %p666
        // Predicated region
        $region107: #{tpu_custom_call.1} parent=97 // pred_check
          _
        $region108: #{tpu_custom_call.1} parent=97 // pred_check_branch
          %669 = sbr.rel (%p666) target = $region110
        $region109: #{tpu_custom_call.1} parent=97 // pred_region
          %670 = vst [vmem:[#allocation5] sm:$0x77] 0.0
          %671 = vst [vmem:[#allocation5 + $0x8] sm:$0x7] 0.0
        $region110: #{tpu_custom_call.1} parent=97 // pred_fallthru
          _
        %v672 = vld [vmem:[%s445] sm:$0xff]
        %v673 = vld [vmem:[%s445 + $0x8] sm:$0xff]
        %v674 = vld [vmem:[%s445 + $0x10] sm:$0xff]
        %v675 = vld [vmem:[%s445 + $0x18] sm:$0xff]
        %v676 = vunpack.c.0.s8 %v672
        %v677 = vunpack.c.1.s8 %v672
        %v678 = vunpack.c.2.s8 %v672
        %v679 = vunpack.c.3.s8 %v672
        %v680 = vunpack.c.0.s8 %v673
        %v681 = vunpack.c.1.s8 %v673
        %v682 = vunpack.c.2.s8 %v673
        %v683 = vunpack.c.3.s8 %v673
        %v684 = vunpack.c.0.s8 %v674
        %v685 = vunpack.c.1.s8 %v674
        %v686 = vunpack.c.2.s8 %v674
        %v687 = vunpack.c.3.s8 %v674
        %v688 = vunpack.c.0.s8 %v675
        %v689 = vunpack.c.1.s8 %v675
        %v690 = vunpack.c.2.s8 %v675
        %v691 = vunpack.c.3.s8 %v675
        %v692 = vcvt.s32.f32 %v676
        %v693 = vcvt.s32.f32 %v677
        %v694 = vcvt.s32.f32 %v678
        %v695 = vcvt.s32.f32 %v679
        %v696 = vcvt.s32.f32 %v680
        %v697 = vcvt.s32.f32 %v681
        %v698 = vcvt.s32.f32 %v682
        %v699 = vcvt.s32.f32 %v683
        %v700 = vcvt.s32.f32 %v684
        %v701 = vcvt.s32.f32 %v685
        %v702 = vcvt.s32.f32 %v686
        %v703 = vcvt.s32.f32 %v687
        %v704 = vcvt.s32.f32 %v688
        %v705 = vcvt.s32.f32 %v689
        %v706 = vcvt.s32.f32 %v690
        %v707 = vcvt.s32.f32 %v691
        %v708 = vsub.f32 %v692, 1.0
        %v709 = vsub.f32 %v693, 1.0
        %v710 = vsub.f32 %v694, 1.0
        %v711 = vsub.f32 %v695, 1.0
        %v712 = vsub.f32 %v696, 1.0
        %v713 = vsub.f32 %v697, 1.0
        %v714 = vsub.f32 %v698, 1.0
        %v715 = vsub.f32 %v699, 1.0
        %v716 = vsub.f32 %v700, 1.0
        %v717 = vsub.f32 %v701, 1.0
        %v718 = vsub.f32 %v702, 1.0
        %v719 = vsub.f32 %v703, 1.0
        %v720 = vsub.f32 %v704, 1.0
        %v721 = vsub.f32 %v705, 1.0
        %v722 = vsub.f32 %v706, 1.0
        %v723 = vsub.f32 %v707, 1.0
        %v724 = vmul.f32 %v708, 1e+30
        %v725 = vmul.f32 %v709, 1e+30
        %v726 = vmul.f32 %v710, 1e+30
        %v727 = vmul.f32 %v711, 1e+30
        %v728 = vmul.f32 %v712, 1e+30
        %v729 = vmul.f32 %v713, 1e+30
        %v730 = vmul.f32 %v714, 1e+30
        %v731 = vmul.f32 %v715, 1e+30
        %v732 = vmul.f32 %v716, 1e+30
        %v733 = vmul.f32 %v717, 1e+30
        %v734 = vmul.f32 %v718, 1e+30
        %v735 = vmul.f32 %v719, 1e+30
        %v736 = vmul.f32 %v720, 1e+30
        %v737 = vmul.f32 %v721, 1e+30
        %v738 = vmul.f32 %v722, 1e+30
        %v739 = vmul.f32 %v723, 1e+30
        %v740 = vld [vmem:[%s505] sm:$0xff]
        %v741 = vld [vmem:[%s505 + $0x8] sm:$0xff]
        %v742 = vld [vmem:[%s505 + $0x10] sm:$0xff]
        %v743 = vld [vmem:[%s505 + $0x18] sm:$0xff]
        %v744 = vld [vmem:[%s505 + $0x20] sm:$0xff]
        %v745 = vld [vmem:[%s505 + $0x28] sm:$0xff]
        %v746 = vld [vmem:[%s505 + $0x30] sm:$0xff]
        %v747 = vld [vmem:[%s505 + $0x38] sm:$0xff]
        %v748 = vld [vmem:[%s505 + $0x40] sm:$0xff]
        %v749 = vld [vmem:[%s505 + $0x48] sm:$0xff]
        %v750 = vld [vmem:[%s505 + $0x50] sm:$0xff]
        %v751 = vld [vmem:[%s505 + $0x58] sm:$0xff]
        %v752 = vld [vmem:[%s505 + $0x60] sm:$0xff]
        %v753 = vld [vmem:[%s505 + $0x68] sm:$0xff]
        %v754 = vld [vmem:[%s505 + $0x70] sm:$0xff]
        %v755 = vld [vmem:[%s505 + $0x78] sm:$0xff]
        %v756 = vld [vmem:[%s3] sm:$0xff]
        %v757 = vld [vmem:[%s3 + $0x8] sm:$0xff]
        %v758 = vld [vmem:[%s3 + $0x10] sm:$0xff]
        %vm759 = vcmask 64512
        %v761 = vsel %vm759, %v740, 0
        %v764 = vsel %vm759, %v741, 0
        %v767 = vsel %vm759, %v742, 0
        %v770 = vsel %vm759, %v743, 0
        %v773 = vsel %vm759, %v744, 0
        %v776 = vsel %vm759, %v745, 0
        %v779 = vsel %vm759, %v746, 0
        %v782 = vsel %vm759, %v747, 0
        %v785 = vsel %vm759, %v748, 0
        %v788 = vsel %vm759, %v749, 0
        %v791 = vsel %vm759, %v750, 0
        %v794 = vsel %vm759, %v751, 0
        %v797 = vsel %vm759, %v752, 0
        %v800 = vsel %vm759, %v753, 0
        %v803 = vsel %vm759, %v754, 0
        %v806 = vsel %vm759, %v755, 0
        %808 = vmatprep.subr.mxu0 0.0
        %809 = vmatpush1.msra.mxu0 0.0
        %810 = vmatprep.subr.mxu0 0.0
        %811 = vmatpush1.msra.mxu0 0.0
        %812 = vmatprep.subr.mxu0 0.0
        %813 = vmatpush1.msra.mxu0 0.0
        %814 = vmatprep.subr.mxu0 0.0
        %815 = vmatpush1.msra.mxu0 0.0
        %816 = vmatprep.subr.mxu0 0.0
        %817 = vmatpush1.msra.mxu0 0.0
        %818 = vmatprep.subr.mxu0 0.0
        %819 = vmatpush1.msra.mxu0 0.0
        %820 = vmatprep.subr.mxu0 0.0
        %821 = vmatpush1.msra.mxu0 0.0
        %822 = vmatprep.subr.mxu0 0.0
        %823 = vmatpush1.msra.mxu0 0.0
        %824 = vmatprep.subr.mxu0 0.0
        %825 = vmatpush1.msra.mxu0 0.0
        %826 = vmatprep.subr.mxu0 0.0
        %827 = vmatpush1.msra.mxu0 0.0
        %828 = vmatprep.subr.mxu0 0.0
        %829 = vmatpush1.msra.mxu0 0.0
        %830 = vmatprep.subr.mxu0 0.0
        %831 = vmatpush1.msra.mxu0 0.0
        %832 = vmatprep.subr.mxu0 0.0
        %833 = vmatpush1.msra.mxu0 0.0
        %834 = vmatprep.subr.mxu0 0.0
        %835 = vmatpush1.msra.mxu0 0.0
        %836 = vmatprep.subr.mxu0 0.0
        %837 = vmatpush1.msra.mxu0 0.0
        %838 = vmatprep.subr.mxu0 %v757
        %839 = vmatpush1.msra.mxu0 %v756
        %840 = vmatprep.subr.mxu0 0.0
        %841 = vmatpush2.msra.mxu0 0.0
        %842 = vmatprep.subr.mxu0 0.0
        %843 = vmatpush2.msra.mxu0 0.0
        %844 = vmatprep.subr.mxu0 0.0
        %845 = vmatpush2.msra.mxu0 0.0
        %846 = vmatprep.subr.mxu0 0.0
        %847 = vmatpush2.msra.mxu0 0.0
        %848 = vmatprep.subr.mxu0 0.0
        %849 = vmatpush2.msra.mxu0 0.0
        %850 = vmatprep.subr.mxu0 0.0
        %851 = vmatpush2.msra.mxu0 0.0
        %852 = vmatprep.subr.mxu0 0.0
        %853 = vmatpush2.msra.mxu0 0.0
        %854 = vmatprep.subr.mxu0 0.0
        %855 = vmatpush2.msra.mxu0 0.0
        %856 = vmatprep.subr.mxu0 0.0
        %857 = vmatpush2.msra.mxu0 0.0
        %858 = vmatprep.subr.mxu0 0.0
        %859 = vmatpush2.msra.mxu0 0.0
        %860 = vmatprep.subr.mxu0 0.0
        %861 = vmatpush2.msra.mxu0 0.0
        %862 = vmatprep.subr.mxu0 0.0
        %863 = vmatpush2.msra.mxu0 0.0
        %864 = vmatprep.subr.mxu0 0.0
        %865 = vmatpush2.msra.mxu0 0.0
        %866 = vmatprep.subr.mxu0 0.0
        %867 = vmatpush2.msra.mxu0 0.0
        %868 = vmatprep.subr.mxu0 0.0
        %869 = vmatpush2.msra.mxu0 0.0
        %870 = vmatprep.subr.mxu0 0.0
        %871 = vmatpush2.msra.mxu0 0.0
        %872 = vmatprep.mubr.f32.mxu0 0.0
        %873 = vmatmul.mubr.f32.gmra.mxu0 %v761
        %v874 = vpop.f32.mrf.mxu0
        %v875 = vadd.f32 0.0, %v874
        %v876 = vpop.f32.mrf.mxu0
        %v877 = vadd.f32 0.0, %v876
        %878 = vmatprep.mubr.f32.mxu0 0.0
        %879 = vmatmul.mubr.f32.gmra.mxu0 %v764
        %v880 = vpop.f32.mrf.mxu0
        %v881 = vadd.f32 0.0, %v880
        %v882 = vpop.f32.mrf.mxu0
        %v883 = vadd.f32 0.0, %v882
        %884 = vmatprep.mubr.f32.mxu0 0.0
        %885 = vmatmul.mubr.f32.gmra.mxu0 %v767
        %v886 = vpop.f32.mrf.mxu0
        %v887 = vadd.f32 0.0, %v886
        %v888 = vpop.f32.mrf.mxu0
        %v889 = vadd.f32 0.0, %v888
        %890 = vmatprep.mubr.f32.mxu0 0.0
        %891 = vmatmul.mubr.f32.gmra.mxu0 %v770
        %v892 = vpop.f32.mrf.mxu0
        %v893 = vadd.f32 0.0, %v892
        %v894 = vpop.f32.mrf.mxu0
        %v895 = vadd.f32 0.0, %v894
        %896 = vmatprep.mubr.f32.mxu0 0.0
        %897 = vmatmul.mubr.f32.gmra.mxu0 %v773
        %v898 = vpop.f32.mrf.mxu0
        %v899 = vadd.f32 0.0, %v898
        %v900 = vpop.f32.mrf.mxu0
        %v901 = vadd.f32 0.0, %v900
        %902 = vmatprep.mubr.f32.mxu0 0.0
        %903 = vmatmul.mubr.f32.gmra.mxu0 %v776
        %v904 = vpop.f32.mrf.mxu0
        %v905 = vadd.f32 0.0, %v904
        %v906 = vpop.f32.mrf.mxu0
        %v907 = vadd.f32 0.0, %v906
        %908 = vmatprep.mubr.f32.mxu0 0.0
        %909 = vmatmul.mubr.f32.gmra.mxu0 %v779
        %v910 = vpop.f32.mrf.mxu0
        %v911 = vadd.f32 0.0, %v910
        %v912 = vpop.f32.mrf.mxu0
        %v913 = vadd.f32 0.0, %v912
        %914 = vmatprep.mubr.f32.mxu0 0.0
        %915 = vmatmul.mubr.f32.gmra.mxu0 %v782
        %v916 = vpop.f32.mrf.mxu0
        %v917 = vadd.f32 0.0, %v916
        %v918 = vpop.f32.mrf.mxu0
        %v919 = vadd.f32 0.0, %v918
        %920 = vmatprep.mubr.f32.mxu0 0.0
        %921 = vmatmul.mubr.f32.gmra.mxu0 %v785
        %v922 = vpop.f32.mrf.mxu0
        %v923 = vadd.f32 0.0, %v922
        %v924 = vpop.f32.mrf.mxu0
        %v925 = vadd.f32 0.0, %v924
        %926 = vmatprep.mubr.f32.mxu0 0.0
        %927 = vmatmul.mubr.f32.gmra.mxu0 %v788
        %v928 = vpop.f32.mrf.mxu0
        %v929 = vadd.f32 0.0, %v928
        %v930 = vpop.f32.mrf.mxu0
        %v931 = vadd.f32 0.0, %v930
        %932 = vmatprep.mubr.f32.mxu0 0.0
        %933 = vmatmul.mubr.f32.gmra.mxu0 %v791
        %v934 = vpop.f32.mrf.mxu0
        %v935 = vadd.f32 0.0, %v934
        %v936 = vpop.f32.mrf.mxu0
        %v937 = vadd.f32 0.0, %v936
        %938 = vmatprep.mubr.f32.mxu0 0.0
        %939 = vmatmul.mubr.f32.gmra.mxu0 %v794
        %v940 = vpop.f32.mrf.mxu0
        %v941 = vadd.f32 0.0, %v940
        %v942 = vpop.f32.mrf.mxu0
        %v943 = vadd.f32 0.0, %v942
        %944 = vmatprep.mubr.f32.mxu0 0.0
        %945 = vmatmul.mubr.f32.gmra.mxu0 %v797
        %v946 = vpop.f32.mrf.mxu0
        %v947 = vadd.f32 0.0, %v946
        %v948 = vpop.f32.mrf.mxu0
        %v949 = vadd.f32 0.0, %v948
        %950 = vmatprep.mubr.f32.mxu0 0.0
        %951 = vmatmul.mubr.f32.gmra.mxu0 %v800
        %v952 = vpop.f32.mrf.mxu0
        %v953 = vadd.f32 0.0, %v952
        %v954 = vpop.f32.mrf.mxu0
        %v955 = vadd.f32 0.0, %v954
        %956 = vmatprep.mubr.f32.mxu0 0.0
        %957 = vmatmul.mubr.f32.gmra.mxu0 %v803
        %v958 = vpop.f32.mrf.mxu0
        %v959 = vadd.f32 0.0, %v958
        %v960 = vpop.f32.mrf.mxu0
        %v961 = vadd.f32 0.0, %v960
        %962 = vmatprep.mubr.f32.mxu0 0.0
        %963 = vmatmul.mubr.f32.gmra.mxu0 %v806
        %v964 = vpop.f32.mrf.mxu0
        %v965 = vadd.f32 0.0, %v964
        %v966 = vpop.f32.mrf.mxu0
        %v967 = vadd.f32 0.0, %v966
        %968 = vdwg.mxu0
        %969 = vmatprep.subr.mxu0 0.0
        %970 = vmatpush1.msra.mxu0 0.0
        %971 = vmatprep.subr.mxu0 0.0
        %972 = vmatpush1.msra.mxu0 0.0
        %973 = vmatprep.subr.mxu0 0.0
        %974 = vmatpush1.msra.mxu0 0.0
        %975 = vmatprep.subr.mxu0 0.0
        %976 = vmatpush1.msra.mxu0 0.0
        %977 = vmatprep.subr.mxu0 0.0
        %978 = vmatpush1.msra.mxu0 0.0
        %979 = vmatprep.subr.mxu0 0.0
        %980 = vmatpush1.msra.mxu0 0.0
        %981 = vmatprep.subr.mxu0 0.0
        %982 = vmatpush1.msra.mxu0 0.0
        %983 = vmatprep.subr.mxu0 0.0
        %984 = vmatpush1.msra.mxu0 0.0
        %985 = vmatprep.subr.mxu0 0.0
        %986 = vmatpush1.msra.mxu0 0.0
        %987 = vmatprep.subr.mxu0 0.0
        %988 = vmatpush1.msra.mxu0 0.0
        %989 = vmatprep.subr.mxu0 0.0
        %990 = vmatpush1.msra.mxu0 0.0
        %991 = vmatprep.subr.mxu0 0.0
        %992 = vmatpush1.msra.mxu0 0.0
        %993 = vmatprep.subr.mxu0 0.0
        %994 = vmatpush1.msra.mxu0 0.0
        %995 = vmatprep.subr.mxu0 0.0
        %996 = vmatpush1.msra.mxu0 0.0
        %997 = vmatprep.subr.mxu0 0.0
        %998 = vmatpush1.msra.mxu0 0.0
        %999 = vmatprep.subr.mxu0 0.0
        %1000 = vmatpush1.msra.mxu0 %v758
        %1001 = vmatprep.subr.mxu0 0.0
        %1002 = vmatpush2.msra.mxu0 0.0
        %1003 = vmatprep.subr.mxu0 0.0
        %1004 = vmatpush2.msra.mxu0 0.0
        %1005 = vmatprep.subr.mxu0 0.0
        %1006 = vmatpush2.msra.mxu0 0.0
        %1007 = vmatprep.subr.mxu0 0.0
        %1008 = vmatpush2.msra.mxu0 0.0
        %1009 = vmatprep.subr.mxu0 0.0
        %1010 = vmatpush2.msra.mxu0 0.0
        %1011 = vmatprep.subr.mxu0 0.0
        %1012 = vmatpush2.msra.mxu0 0.0
        %1013 = vmatprep.subr.mxu0 0.0
        %1014 = vmatpush2.msra.mxu0 0.0
        %1015 = vmatprep.subr.mxu0 0.0
        %1016 = vmatpush2.msra.mxu0 0.0
        %1017 = vmatprep.subr.mxu0 0.0
        %1018 = vmatpush2.msra.mxu0 0.0
        %1019 = vmatprep.subr.mxu0 0.0
        %1020 = vmatpush2.msra.mxu0 0.0
        %1021 = vmatprep.subr.mxu0 0.0
        %1022 = vmatpush2.msra.mxu0 0.0
        %1023 = vmatprep.subr.mxu0 0.0
        %1024 = vmatpush2.msra.mxu0 0.0
        %1025 = vmatprep.subr.mxu0 0.0
        %1026 = vmatpush2.msra.mxu0 0.0
        %1027 = vmatprep.subr.mxu0 0.0
        %1028 = vmatpush2.msra.mxu0 0.0
        %1029 = vmatprep.subr.mxu0 0.0
        %1030 = vmatpush2.msra.mxu0 0.0
        %1031 = vmatprep.subr.mxu0 0.0
        %1032 = vmatpush2.msra.mxu0 0.0
        %1033 = vmatprep.mubr.f32.mxu0 0.0
        %1034 = vmatmul.mubr.f32.gmra.mxu0 %v761
        %v1035 = vpop.f32.mrf.mxu0
        %v1036 = vadd.f32 0.0, %v1035
        %v1037 = vpop.f32.mrf.mxu0
        %1038 = vmatprep.mubr.f32.mxu0 0.0
        %1039 = vmatmul.mubr.f32.gmra.mxu0 %v764
        %v1040 = vpop.f32.mrf.mxu0
        %v1041 = vadd.f32 0.0, %v1040
        %v1042 = vpop.f32.mrf.mxu0
        %1043 = vmatprep.mubr.f32.mxu0 0.0
        %1044 = vmatmul.mubr.f32.gmra.mxu0 %v767
        %v1045 = vpop.f32.mrf.mxu0
        %v1046 = vadd.f32 0.0, %v1045
        %v1047 = vpop.f32.mrf.mxu0
        %1048 = vmatprep.mubr.f32.mxu0 0.0
        %1049 = vmatmul.mubr.f32.gmra.mxu0 %v770
        %v1050 = vpop.f32.mrf.mxu0
        %v1051 = vadd.f32 0.0, %v1050
        %v1052 = vpop.f32.mrf.mxu0
        %1053 = vmatprep.mubr.f32.mxu0 0.0
        %1054 = vmatmul.mubr.f32.gmra.mxu0 %v773
        %v1055 = vpop.f32.mrf.mxu0
        %v1056 = vadd.f32 0.0, %v1055
        %v1057 = vpop.f32.mrf.mxu0
        %1058 = vmatprep.mubr.f32.mxu0 0.0
        %1059 = vmatmul.mubr.f32.gmra.mxu0 %v776
        %v1060 = vpop.f32.mrf.mxu0
        %v1061 = vadd.f32 0.0, %v1060
        %v1062 = vpop.f32.mrf.mxu0
        %1063 = vmatprep.mubr.f32.mxu0 0.0
        %1064 = vmatmul.mubr.f32.gmra.mxu0 %v779
        %v1065 = vpop.f32.mrf.mxu0
        %v1066 = vadd.f32 0.0, %v1065
        %v1067 = vpop.f32.mrf.mxu0
        %1068 = vmatprep.mubr.f32.mxu0 0.0
        %1069 = vmatmul.mubr.f32.gmra.mxu0 %v782
        %v1070 = vpop.f32.mrf.mxu0
        %v1071 = vadd.f32 0.0, %v1070
        %v1072 = vpop.f32.mrf.mxu0
        %1073 = vmatprep.mubr.f32.mxu0 0.0
        %1074 = vmatmul.mubr.f32.gmra.mxu0 %v785
        %v1075 = vpop.f32.mrf.mxu0
        %v1076 = vadd.f32 0.0, %v1075
        %v1077 = vpop.f32.mrf.mxu0
        %1078 = vmatprep.mubr.f32.mxu0 0.0
        %1079 = vmatmul.mubr.f32.gmra.mxu0 %v788
        %v1080 = vpop.f32.mrf.mxu0
        %v1081 = vadd.f32 0.0, %v1080
        %v1082 = vpop.f32.mrf.mxu0
        %1083 = vmatprep.mubr.f32.mxu0 0.0
        %1084 = vmatmul.mubr.f32.gmra.mxu0 %v791
        %v1085 = vpop.f32.mrf.mxu0
        %v1086 = vadd.f32 0.0, %v1085
        %v1087 = vpop.f32.mrf.mxu0
        %1088 = vmatprep.mubr.f32.mxu0 0.0
        %1089 = vmatmul.mubr.f32.gmra.mxu0 %v794
        %v1090 = vpop.f32.mrf.mxu0
        %v1091 = vadd.f32 0.0, %v1090
        %v1092 = vpop.f32.mrf.mxu0
        %1093 = vmatprep.mubr.f32.mxu0 0.0
        %1094 = vmatmul.mubr.f32.gmra.mxu0 %v797
        %v1095 = vpop.f32.mrf.mxu0
        %v1096 = vadd.f32 0.0, %v1095
        %v1097 = vpop.f32.mrf.mxu0
        %1098 = vmatprep.mubr.f32.mxu0 0.0
        %1099 = vmatmul.mubr.f32.gmra.mxu0 %v800
        %v1100 = vpop.f32.mrf.mxu0
        %v1101 = vadd.f32 0.0, %v1100
        %v1102 = vpop.f32.mrf.mxu0
        %1103 = vmatprep.mubr.f32.mxu0 0.0
        %1104 = vmatmul.mubr.f32.gmra.mxu0 %v803
        %v1105 = vpop.f32.mrf.mxu0
        %v1106 = vadd.f32 0.0, %v1105
        %v1107 = vpop.f32.mrf.mxu0
        %1108 = vmatprep.mubr.f32.mxu0 0.0
        %1109 = vmatmul.mubr.f32.gmra.mxu0 %v806
        %v1110 = vpop.f32.mrf.mxu0
        %v1111 = vadd.f32 0.0, %v1110
        %v1112 = vpop.f32.mrf.mxu0
        %1113 = vdwg.mxu0
        %v1114 = vld [vmem:[%s499] sm:$0xff]
        %v1115 = vld [vmem:[%s499 + $0x8] sm:$0xff]
        %v1116 = vld [vmem:[%s499 + $0x10] sm:$0xff]
        %v1117 = vld [vmem:[%s499 + $0x18] sm:$0xff]
        %v1118 = vld [vmem:[%s499 + $0x20] sm:$0xff]
        %v1119 = vld [vmem:[%s499 + $0x28] sm:$0xff]
        %v1120 = vld [vmem:[%s499 + $0x30] sm:$0xff]
        %v1121 = vld [vmem:[%s499 + $0x38] sm:$0xff]
        %v1122 = vld [vmem:[%s499 + $0x40] sm:$0xff]
        %v1123 = vld [vmem:[%s499 + $0x48] sm:$0xff]
        %v1124 = vld [vmem:[%s499 + $0x50] sm:$0xff]
        %v1125 = vld [vmem:[%s499 + $0x58] sm:$0xff]
        %v1126 = vld [vmem:[%s499 + $0x60] sm:$0xff]
        %v1127 = vld [vmem:[%s499 + $0x68] sm:$0xff]
        %v1128 = vld [vmem:[%s499 + $0x70] sm:$0xff]
        %v1129 = vld [vmem:[%s499 + $0x78] sm:$0xff]
        %v1130 = vld [vmem:[%s5] sm:$0xff]
        %v1132 = vsel %vm759, %v1114, 0
        %v1135 = vsel %vm759, %v1115, 0
        %v1138 = vsel %vm759, %v1116, 0
        %v1141 = vsel %vm759, %v1117, 0
        %v1144 = vsel %vm759, %v1118, 0
        %v1147 = vsel %vm759, %v1119, 0
        %v1150 = vsel %vm759, %v1120, 0
        %v1153 = vsel %vm759, %v1121, 0
        %v1156 = vsel %vm759, %v1122, 0
        %v1159 = vsel %vm759, %v1123, 0
        %v1162 = vsel %vm759, %v1124, 0
        %v1165 = vsel %vm759, %v1125, 0
        %v1168 = vsel %vm759, %v1126, 0
        %v1171 = vsel %vm759, %v1127, 0
        %v1174 = vsel %vm759, %v1128, 0
        %v1177 = vsel %vm759, %v1129, 0
        %1179 = vmatprep.subr.mxu0 0.0
        %1180 = vmatpush1.msra.mxu0 0.0
        %1181 = vmatprep.subr.mxu0 0.0
        %1182 = vmatpush1.msra.mxu0 0.0
        %1183 = vmatprep.subr.mxu0 0.0
        %1184 = vmatpush1.msra.mxu0 0.0
        %1185 = vmatprep.subr.mxu0 0.0
        %1186 = vmatpush1.msra.mxu0 0.0
        %1187 = vmatprep.subr.mxu0 0.0
        %1188 = vmatpush1.msra.mxu0 0.0
        %1189 = vmatprep.subr.mxu0 0.0
        %1190 = vmatpush1.msra.mxu0 0.0
        %1191 = vmatprep.subr.mxu0 0.0
        %1192 = vmatpush1.msra.mxu0 0.0
        %1193 = vmatprep.subr.mxu0 0.0
        %1194 = vmatpush1.msra.mxu0 0.0
        %1195 = vmatprep.subr.mxu0 0.0
        %1196 = vmatpush1.msra.mxu0 0.0
        %1197 = vmatprep.subr.mxu0 0.0
        %1198 = vmatpush1.msra.mxu0 0.0
        %1199 = vmatprep.subr.mxu0 0.0
        %1200 = vmatpush1.msra.mxu0 0.0
        %1201 = vmatprep.subr.mxu0 0.0
        %1202 = vmatpush1.msra.mxu0 0.0
        %1203 = vmatprep.subr.mxu0 0.0
        %1204 = vmatpush1.msra.mxu0 0.0
        %1205 = vmatprep.subr.mxu0 0.0
        %1206 = vmatpush1.msra.mxu0 0.0
        %1207 = vmatprep.subr.mxu0 0.0
        %1208 = vmatpush1.msra.mxu0 0.0
        %1209 = vmatprep.subr.mxu0 0.0
        %1210 = vmatpush1.msra.mxu0 %v1130
        %1211 = vmatprep.subr.mxu0 0.0
        %1212 = vmatpush2.msra.mxu0 0.0
        %1213 = vmatprep.subr.mxu0 0.0
        %1214 = vmatpush2.msra.mxu0 0.0
        %1215 = vmatprep.subr.mxu0 0.0
        %1216 = vmatpush2.msra.mxu0 0.0
        %1217 = vmatprep.subr.mxu0 0.0
        %1218 = vmatpush2.msra.mxu0 0.0
        %1219 = vmatprep.subr.mxu0 0.0
        %1220 = vmatpush2.msra.mxu0 0.0
        %1221 = vmatprep.subr.mxu0 0.0
        %1222 = vmatpush2.msra.mxu0 0.0
        %1223 = vmatprep.subr.mxu0 0.0
        %1224 = vmatpush2.msra.mxu0 0.0
        %1225 = vmatprep.subr.mxu0 0.0
        %1226 = vmatpush2.msra.mxu0 0.0
        %1227 = vmatprep.subr.mxu0 0.0
        %1228 = vmatpush2.msra.mxu0 0.0
        %1229 = vmatprep.subr.mxu0 0.0
        %1230 = vmatpush2.msra.mxu0 0.0
        %1231 = vmatprep.subr.mxu0 0.0
        %1232 = vmatpush2.msra.mxu0 0.0
        %1233 = vmatprep.subr.mxu0 0.0
        %1234 = vmatpush2.msra.mxu0 0.0
        %1235 = vmatprep.subr.mxu0 0.0
        %1236 = vmatpush2.msra.mxu0 0.0
        %1237 = vmatprep.subr.mxu0 0.0
        %1238 = vmatpush2.msra.mxu0 0.0
        %1239 = vmatprep.subr.mxu0 0.0
        %1240 = vmatpush2.msra.mxu0 0.0
        %1241 = vmatprep.subr.mxu0 0.0
        %1242 = vmatpush2.msra.mxu0 0.0
        %1243 = vmatprep.mubr.f32.mxu0 0.0
        %1244 = vmatmul.mubr.f32.gmra.mxu0 %v1132
        %v1245 = vpop.f32.mrf.mxu0
        %v1246 = vadd.f32 0.0, %v1245
        %v1247 = vpop.f32.mrf.mxu0
        %1248 = vmatprep.mubr.f32.mxu0 0.0
        %1249 = vmatmul.mubr.f32.gmra.mxu0 %v1135
        %v1250 = vpop.f32.mrf.mxu0
        %v1251 = vadd.f32 0.0, %v1250
        %v1252 = vpop.f32.mrf.mxu0
        %1253 = vmatprep.mubr.f32.mxu0 0.0
        %1254 = vmatmul.mubr.f32.gmra.mxu0 %v1138
        %v1255 = vpop.f32.mrf.mxu0
        %v1256 = vadd.f32 0.0, %v1255
        %v1257 = vpop.f32.mrf.mxu0
        %1258 = vmatprep.mubr.f32.mxu0 0.0
        %1259 = vmatmul.mubr.f32.gmra.mxu0 %v1141
        %v1260 = vpop.f32.mrf.mxu0
        %v1261 = vadd.f32 0.0, %v1260
        %v1262 = vpop.f32.mrf.mxu0
        %1263 = vmatprep.mubr.f32.mxu0 0.0
        %1264 = vmatmul.mubr.f32.gmra.mxu0 %v1144
        %v1265 = vpop.f32.mrf.mxu0
        %v1266 = vadd.f32 0.0, %v1265
        %v1267 = vpop.f32.mrf.mxu0
        %1268 = vmatprep.mubr.f32.mxu0 0.0
        %1269 = vmatmul.mubr.f32.gmra.mxu0 %v1147
        %v1270 = vpop.f32.mrf.mxu0
        %v1271 = vadd.f32 0.0, %v1270
        %v1272 = vpop.f32.mrf.mxu0
        %1273 = vmatprep.mubr.f32.mxu0 0.0
        %1274 = vmatmul.mubr.f32.gmra.mxu0 %v1150
        %v1275 = vpop.f32.mrf.mxu0
        %v1276 = vadd.f32 0.0, %v1275
        %v1277 = vpop.f32.mrf.mxu0
        %1278 = vmatprep.mubr.f32.mxu0 0.0
        %1279 = vmatmul.mubr.f32.gmra.mxu0 %v1153
        %v1280 = vpop.f32.mrf.mxu0
        %v1281 = vadd.f32 0.0, %v1280
        %v1282 = vpop.f32.mrf.mxu0
        %1283 = vmatprep.mubr.f32.mxu0 0.0
        %1284 = vmatmul.mubr.f32.gmra.mxu0 %v1156
        %v1285 = vpop.f32.mrf.mxu0
        %v1286 = vadd.f32 0.0, %v1285
        %v1287 = vpop.f32.mrf.mxu0
        %1288 = vmatprep.mubr.f32.mxu0 0.0
        %1289 = vmatmul.mubr.f32.gmra.mxu0 %v1159
        %v1290 = vpop.f32.mrf.mxu0
        %v1291 = vadd.f32 0.0, %v1290
        %v1292 = vpop.f32.mrf.mxu0
        %1293 = vmatprep.mubr.f32.mxu0 0.0
        %1294 = vmatmul.mubr.f32.gmra.mxu0 %v1162
        %v1295 = vpop.f32.mrf.mxu0
        %v1296 = vadd.f32 0.0, %v1295
        %v1297 = vpop.f32.mrf.mxu0
        %1298 = vmatprep.mubr.f32.mxu0 0.0
        %1299 = vmatmul.mubr.f32.gmra.mxu0 %v1165
        %v1300 = vpop.f32.mrf.mxu0
        %v1301 = vadd.f32 0.0, %v1300
        %v1302 = vpop.f32.mrf.mxu0
        %1303 = vmatprep.mubr.f32.mxu0 0.0
        %1304 = vmatmul.mubr.f32.gmra.mxu0 %v1168
        %v1305 = vpop.f32.mrf.mxu0
        %v1306 = vadd.f32 0.0, %v1305
        %v1307 = vpop.f32.mrf.mxu0
        %1308 = vmatprep.mubr.f32.mxu0 0.0
        %1309 = vmatmul.mubr.f32.gmra.mxu0 %v1171
        %v1310 = vpop.f32.mrf.mxu0
        %v1311 = vadd.f32 0.0, %v1310
        %v1312 = vpop.f32.mrf.mxu0
        %1313 = vmatprep.mubr.f32.mxu0 0.0
        %1314 = vmatmul.mubr.f32.gmra.mxu0 %v1174
        %v1315 = vpop.f32.mrf.mxu0
        %v1316 = vadd.f32 0.0, %v1315
        %v1317 = vpop.f32.mrf.mxu0
        %1318 = vmatprep.mubr.f32.mxu0 0.0
        %1319 = vmatmul.mubr.f32.gmra.mxu0 %v1177
        %v1320 = vpop.f32.mrf.mxu0
        %v1321 = vadd.f32 0.0, %v1320
        %v1322 = vpop.f32.mrf.mxu0
        %1323 = vdwg.mxu0
        %v1324 = vld [vmem:[%s4] sm:$0x1]
        %v1325 = vld [vmem:[%s510] sm:$0xff]
        %v1327 = vsel %vm759, %v1324, 0
        %1329 = vmatprep.subr.mxu0 0.0
        %1330 = vmatpush1.msra.mxu0 0.0
        %1331 = vmatprep.subr.mxu0 0.0
        %1332 = vmatpush1.msra.mxu0 0.0
        %1333 = vmatprep.subr.mxu0 0.0
        %1334 = vmatpush1.msra.mxu0 0.0
        %1335 = vmatprep.subr.mxu0 0.0
        %1336 = vmatpush1.msra.mxu0 0.0
        %1337 = vmatprep.subr.mxu0 0.0
        %1338 = vmatpush1.msra.mxu0 0.0
        %1339 = vmatprep.subr.mxu0 0.0
        %1340 = vmatpush1.msra.mxu0 0.0
        %1341 = vmatprep.subr.mxu0 0.0
        %1342 = vmatpush1.msra.mxu0 0.0
        %1343 = vmatprep.subr.mxu0 0.0
        %1344 = vmatpush1.msra.mxu0 0.0
        %1345 = vmatprep.subr.mxu0 0.0
        %1346 = vmatpush1.msra.mxu0 0.0
        %1347 = vmatprep.subr.mxu0 0.0
        %1348 = vmatpush1.msra.mxu0 0.0
        %1349 = vmatprep.subr.mxu0 0.0
        %1350 = vmatpush1.msra.mxu0 0.0
        %1351 = vmatprep.subr.mxu0 0.0
        %1352 = vmatpush1.msra.mxu0 0.0
        %1353 = vmatprep.subr.mxu0 0.0
        %1354 = vmatpush1.msra.mxu0 0.0
        %1355 = vmatprep.subr.mxu0 0.0
        %1356 = vmatpush1.msra.mxu0 0.0
        %1357 = vmatprep.subr.mxu0 0.0
        %1358 = vmatpush1.msra.mxu0 0.0
        %1359 = vmatprep.subr.mxu0 0.0
        %1360 = vmatpush1.msra.mxu0 %v1325
        %1361 = vmatprep.subr.mxu0 0.0
        %1362 = vmatpush2.msra.mxu0 0.0
        %1363 = vmatprep.subr.mxu0 0.0
        %1364 = vmatpush2.msra.mxu0 0.0
        %1365 = vmatprep.subr.mxu0 0.0
        %1366 = vmatpush2.msra.mxu0 0.0
        %1367 = vmatprep.subr.mxu0 0.0
        %1368 = vmatpush2.msra.mxu0 0.0
        %1369 = vmatprep.subr.mxu0 0.0
        %1370 = vmatpush2.msra.mxu0 0.0
        %1371 = vmatprep.subr.mxu0 0.0
        %1372 = vmatpush2.msra.mxu0 0.0
        %1373 = vmatprep.subr.mxu0 0.0
        %1374 = vmatpush2.msra.mxu0 0.0
        %1375 = vmatprep.subr.mxu0 0.0
        %1376 = vmatpush2.msra.mxu0 0.0
        %1377 = vmatprep.subr.mxu0 0.0
        %1378 = vmatpush2.msra.mxu0 0.0
        %1379 = vmatprep.subr.mxu0 0.0
        %1380 = vmatpush2.msra.mxu0 0.0
        %1381 = vmatprep.subr.mxu0 0.0
        %1382 = vmatpush2.msra.mxu0 0.0
        %1383 = vmatprep.subr.mxu0 0.0
        %1384 = vmatpush2.msra.mxu0 0.0
        %1385 = vmatprep.subr.mxu0 0.0
        %1386 = vmatpush2.msra.mxu0 0.0
        %1387 = vmatprep.subr.mxu0 0.0
        %1388 = vmatpush2.msra.mxu0 0.0
        %1389 = vmatprep.subr.mxu0 0.0
        %1390 = vmatpush2.msra.mxu0 0.0
        %1391 = vmatprep.subr.mxu0 0.0
        %1392 = vmatpush2.msra.mxu0 0.0
        %1393 = vmatprep.mubr.f32.mxu0 0.0
        %1394 = vmatmul.mubr.f32.gmra.mxu0 %v1327
        %v1395 = vpop.f32.mrf.mxu0
        %v1396 = vadd.f32 0.0, %v1395
        %v1397 = vpop.f32.mrf.mxu0
        %1398 = vdwg.mxu0
        %1400 = vset.pattern.permute.xlu0 0
        %1401 = vperm.xlu0 %1400, %v1246
        %v1402 = vpop.permute.xlu0 %1401
        %1405 = vset.pattern.permute.xlu0 0
        %1406 = vperm.xlu0 %1405, %v1251
        %v1407 = vpop.permute.xlu0 %1406
        %1410 = vset.pattern.permute.xlu0 0
        %1411 = vperm.xlu0 %1410, %v1256
        %v1412 = vpop.permute.xlu0 %1411
        %1415 = vset.pattern.permute.xlu0 0
        %1416 = vperm.xlu0 %1415, %v1261
        %v1417 = vpop.permute.xlu0 %1416
        %1420 = vset.pattern.permute.xlu0 0
        %1421 = vperm.xlu0 %1420, %v1266
        %v1422 = vpop.permute.xlu0 %1421
        %1425 = vset.pattern.permute.xlu0 0
        %1426 = vperm.xlu0 %1425, %v1271
        %v1427 = vpop.permute.xlu0 %1426
        %1430 = vset.pattern.permute.xlu0 0
        %1431 = vperm.xlu0 %1430, %v1276
        %v1432 = vpop.permute.xlu0 %1431
        %1435 = vset.pattern.permute.xlu0 0
        %1436 = vperm.xlu0 %1435, %v1281
        %v1437 = vpop.permute.xlu0 %1436
        %1440 = vset.pattern.permute.xlu0 0
        %1441 = vperm.xlu0 %1440, %v1286
        %v1442 = vpop.permute.xlu0 %1441
        %1445 = vset.pattern.permute.xlu0 0
        %1446 = vperm.xlu0 %1445, %v1291
        %v1447 = vpop.permute.xlu0 %1446
        %1450 = vset.pattern.permute.xlu0 0
        %1451 = vperm.xlu0 %1450, %v1296
        %v1452 = vpop.permute.xlu0 %1451
        %1455 = vset.pattern.permute.xlu0 0
        %1456 = vperm.xlu0 %1455, %v1301
        %v1457 = vpop.permute.xlu0 %1456
        %1460 = vset.pattern.permute.xlu0 0
        %1461 = vperm.xlu0 %1460, %v1306
        %v1462 = vpop.permute.xlu0 %1461
        %1465 = vset.pattern.permute.xlu0 0
        %1466 = vperm.xlu0 %1465, %v1311
        %v1467 = vpop.permute.xlu0 %1466
        %1470 = vset.pattern.permute.xlu0 0
        %1471 = vperm.xlu0 %1470, %v1316
        %v1472 = vpop.permute.xlu0 %1471
        %1475 = vset.pattern.permute.xlu0 0
        %1476 = vperm.xlu0 %1475, %v1321
        %v1477 = vpop.permute.xlu0 %1476
        %v1479 = vlaneseq
        %v1480 = vshrl.u32 %v1479, 7
        %v1481 = vsub.s32 0, %v1480
        %v1482 = vrot.slane %v1396, %v1481
        %v1483 = vadd.f32 %v1402, %v1482
        %v1484 = vadd.f32 %v1407, %v1482
        %v1485 = vadd.f32 %v1412, %v1482
        %v1486 = vadd.f32 %v1417, %v1482
        %v1487 = vadd.f32 %v1422, %v1482
        %v1488 = vadd.f32 %v1427, %v1482
        %v1489 = vadd.f32 %v1432, %v1482
        %v1490 = vadd.f32 %v1437, %v1482
        %v1491 = vadd.f32 %v1442, %v1482
        %v1492 = vadd.f32 %v1447, %v1482
        %v1493 = vadd.f32 %v1452, %v1482
        %v1494 = vadd.f32 %v1457, %v1482
        %v1495 = vadd.f32 %v1462, %v1482
        %v1496 = vadd.f32 %v1467, %v1482
        %v1497 = vadd.f32 %v1472, %v1482
        %v1498 = vadd.f32 %v1477, %v1482
        %v1499 = vmul.f32 %v1483, 0.2
        %v1500 = vmul.f32 %v1484, 0.2
        %v1501 = vmul.f32 %v1485, 0.2
        %v1502 = vmul.f32 %v1486, 0.2
        %v1503 = vmul.f32 %v1487, 0.2
        %v1504 = vmul.f32 %v1488, 0.2
        %v1505 = vmul.f32 %v1489, 0.2
        %v1506 = vmul.f32 %v1490, 0.2
        %v1507 = vmul.f32 %v1491, 0.2
        %v1508 = vmul.f32 %v1492, 0.2
        %v1509 = vmul.f32 %v1493, 0.2
        %v1510 = vmul.f32 %v1494, 0.2
        %v1511 = vmul.f32 %v1495, 0.2
        %v1512 = vmul.f32 %v1496, 0.2
        %v1513 = vmul.f32 %v1497, 0.2
        %v1514 = vmul.f32 %v1498, 0.2
        %v1515 = vmax.f32 %v1483, %v1499
        %v1516 = vmax.f32 %v1484, %v1500
        %v1517 = vmax.f32 %v1485, %v1501
        %v1518 = vmax.f32 %v1486, %v1502
        %v1519 = vmax.f32 %v1487, %v1503
        %v1520 = vmax.f32 %v1488, %v1504
        %v1521 = vmax.f32 %v1489, %v1505
        %v1522 = vmax.f32 %v1490, %v1506
        %v1523 = vmax.f32 %v1491, %v1507
        %v1524 = vmax.f32 %v1492, %v1508
        %v1525 = vmax.f32 %v1493, %v1509
        %v1526 = vmax.f32 %v1494, %v1510
        %v1527 = vmax.f32 %v1495, %v1511
        %v1528 = vmax.f32 %v1496, %v1512
        %v1529 = vmax.f32 %v1497, %v1513
        %v1530 = vmax.f32 %v1498, %v1514
        %v1531 = vadd.f32 %v1515, %v724
        %v1532 = vadd.f32 %v1516, %v725
        %v1533 = vadd.f32 %v1517, %v726
        %v1534 = vadd.f32 %v1518, %v727
        %v1535 = vadd.f32 %v1519, %v728
        %v1536 = vadd.f32 %v1520, %v729
        %v1537 = vadd.f32 %v1521, %v730
        %v1538 = vadd.f32 %v1522, %v731
        %v1539 = vadd.f32 %v1523, %v732
        %v1540 = vadd.f32 %v1524, %v733
        %v1541 = vadd.f32 %v1525, %v734
        %v1542 = vadd.f32 %v1526, %v735
        %v1543 = vadd.f32 %v1527, %v736
        %v1544 = vadd.f32 %v1528, %v737
        %v1545 = vadd.f32 %v1529, %v738
        %v1546 = vadd.f32 %v1530, %v739
        %v1547 = vld [vmem:[#allocation2] sm:$0xff]
        %v1548 = vld [vmem:[#allocation2 + $0x8] sm:$0xff]
        %v1549 = vld [vmem:[#allocation2 + $0x10] sm:$0xff]
        %v1550 = vld [vmem:[#allocation2 + $0x18] sm:$0xff]
        %v1551 = vld [vmem:[#allocation2 + $0x20] sm:$0xff]
        %v1552 = vld [vmem:[#allocation2 + $0x28] sm:$0xff]
        %v1553 = vld [vmem:[#allocation2 + $0x30] sm:$0xff]
        %v1554 = vld [vmem:[#allocation2 + $0x38] sm:$0xff]
        %v1555 = vld [vmem:[#allocation2 + $0x40] sm:$0xff]
        %v1556 = vld [vmem:[#allocation2 + $0x48] sm:$0xff]
        %v1557 = vld [vmem:[#allocation2 + $0x50] sm:$0xff]
        %v1558 = vld [vmem:[#allocation2 + $0x58] sm:$0xff]
        %v1559 = vld [vmem:[#allocation2 + $0x60] sm:$0xff]
        %v1560 = vld [vmem:[#allocation2 + $0x68] sm:$0xff]
        %v1561 = vld [vmem:[#allocation2 + $0x70] sm:$0xff]
        %v1562 = vld [vmem:[#allocation2 + $0x78] sm:$0xff]
        %1563 = vmax.xlane.f32.xlu0 %v1531
        %v1564 = vpop.xlane.xlu0 %1563
        %1565 = vmax.xlane.f32.xlu0 %v1532
        %v1566 = vpop.xlane.xlu0 %1565
        %1567 = vmax.xlane.f32.xlu0 %v1533
        %v1568 = vpop.xlane.xlu0 %1567
        %1569 = vmax.xlane.f32.xlu0 %v1534
        %v1570 = vpop.xlane.xlu0 %1569
        %1571 = vmax.xlane.f32.xlu0 %v1535
        %v1572 = vpop.xlane.xlu0 %1571
        %1573 = vmax.xlane.f32.xlu0 %v1536
        %v1574 = vpop.xlane.xlu0 %1573
        %1575 = vmax.xlane.f32.xlu0 %v1537
        %v1576 = vpop.xlane.xlu0 %1575
        %1577 = vmax.xlane.f32.xlu0 %v1538
        %v1578 = vpop.xlane.xlu0 %1577
        %1579 = vmax.xlane.f32.xlu0 %v1539
        %v1580 = vpop.xlane.xlu0 %1579
        %1581 = vmax.xlane.f32.xlu0 %v1540
        %v1582 = vpop.xlane.xlu0 %1581
        %1583 = vmax.xlane.f32.xlu0 %v1541
        %v1584 = vpop.xlane.xlu0 %1583
        %1585 = vmax.xlane.f32.xlu0 %v1542
        %v1586 = vpop.xlane.xlu0 %1585
        %1587 = vmax.xlane.f32.xlu0 %v1543
        %v1588 = vpop.xlane.xlu0 %1587
        %1589 = vmax.xlane.f32.xlu0 %v1544
        %v1590 = vpop.xlane.xlu0 %1589
        %1591 = vmax.xlane.f32.xlu0 %v1545
        %v1592 = vpop.xlane.xlu0 %1591
        %1593 = vmax.xlane.f32.xlu0 %v1546
        %v1594 = vpop.xlane.xlu0 %1593
        %v1595 = vmax.f32 %v1547, %v1564
        %v1596 = vmax.f32 %v1548, %v1566
        %v1597 = vmax.f32 %v1549, %v1568
        %v1598 = vmax.f32 %v1550, %v1570
        %v1599 = vmax.f32 %v1551, %v1572
        %v1600 = vmax.f32 %v1552, %v1574
        %v1601 = vmax.f32 %v1553, %v1576
        %v1602 = vmax.f32 %v1554, %v1578
        %v1603 = vmax.f32 %v1555, %v1580
        %v1604 = vmax.f32 %v1556, %v1582
        %v1605 = vmax.f32 %v1557, %v1584
        %v1606 = vmax.f32 %v1558, %v1586
        %v1607 = vmax.f32 %v1559, %v1588
        %v1608 = vmax.f32 %v1560, %v1590
        %v1609 = vmax.f32 %v1561, %v1592
        %v1610 = vmax.f32 %v1562, %v1594
        %v1611 = vsub.f32 %v1547, %v1595
        %v1612 = vsub.f32 %v1548, %v1596
        %v1613 = vsub.f32 %v1549, %v1597
        %v1614 = vsub.f32 %v1550, %v1598
        %v1615 = vsub.f32 %v1551, %v1599
        %v1616 = vsub.f32 %v1552, %v1600
        %v1617 = vsub.f32 %v1553, %v1601
        %v1618 = vsub.f32 %v1554, %v1602
        %v1619 = vsub.f32 %v1555, %v1603
        %v1620 = vsub.f32 %v1556, %v1604
        %v1621 = vsub.f32 %v1557, %v1605
        %v1622 = vsub.f32 %v1558, %v1606
        %v1623 = vsub.f32 %v1559, %v1607
        %v1624 = vsub.f32 %v1560, %v1608
        %v1625 = vsub.f32 %v1561, %v1609
        %v1626 = vsub.f32 %v1562, %v1610
        %v1627 = vmul.f32 %v1611, 1.442695
        %v1628 = vpow.pop %v1627
        %v1629 = vmul.f32 %v1612, 1.442695
        %v1630 = vpow.pop %v1629
        %v1631 = vmul.f32 %v1613, 1.442695
        %v1632 = vpow.pop %v1631
        %v1633 = vmul.f32 %v1614, 1.442695
        %v1634 = vpow.pop %v1633
        %v1635 = vmul.f32 %v1615, 1.442695
        %v1636 = vpow.pop %v1635
        %v1637 = vmul.f32 %v1616, 1.442695
        %v1638 = vpow.pop %v1637
        %v1639 = vmul.f32 %v1617, 1.442695
        %v1640 = vpow.pop %v1639
        %v1641 = vmul.f32 %v1618, 1.442695
        %v1642 = vpow.pop %v1641
        %v1643 = vmul.f32 %v1619, 1.442695
        %v1644 = vpow.pop %v1643
        %v1645 = vmul.f32 %v1620, 1.442695
        %v1646 = vpow.pop %v1645
        %v1647 = vmul.f32 %v1621, 1.442695
        %v1648 = vpow.pop %v1647
        %v1649 = vmul.f32 %v1622, 1.442695
        %v1650 = vpow.pop %v1649
        %v1651 = vmul.f32 %v1623, 1.442695
        %v1652 = vpow.pop %v1651
        %v1653 = vmul.f32 %v1624, 1.442695
        %v1654 = vpow.pop %v1653
        %v1655 = vmul.f32 %v1625, 1.442695
        %v1656 = vpow.pop %v1655
        %v1657 = vmul.f32 %v1626, 1.442695
        %v1658 = vpow.pop %v1657
        %1660 = vset.pattern.permute.xlu0 0
        %1661 = vperm.xlu0 %1660, %v1595
        %v1662 = vpop.permute.xlu0 %1661
        %1665 = vset.pattern.permute.xlu0 0
        %1666 = vperm.xlu0 %1665, %v1596
        %v1667 = vpop.permute.xlu0 %1666
        %1670 = vset.pattern.permute.xlu0 0
        %1671 = vperm.xlu0 %1670, %v1597
        %v1672 = vpop.permute.xlu0 %1671
        %1675 = vset.pattern.permute.xlu0 0
        %1676 = vperm.xlu0 %1675, %v1598
        %v1677 = vpop.permute.xlu0 %1676
        %1680 = vset.pattern.permute.xlu0 0
        %1681 = vperm.xlu0 %1680, %v1599
        %v1682 = vpop.permute.xlu0 %1681
        %1685 = vset.pattern.permute.xlu0 0
        %1686 = vperm.xlu0 %1685, %v1600
        %v1687 = vpop.permute.xlu0 %1686
        %1690 = vset.pattern.permute.xlu0 0
        %1691 = vperm.xlu0 %1690, %v1601
        %v1692 = vpop.permute.xlu0 %1691
        %1695 = vset.pattern.permute.xlu0 0
        %1696 = vperm.xlu0 %1695, %v1602
        %v1697 = vpop.permute.xlu0 %1696
        %1700 = vset.pattern.permute.xlu0 0
        %1701 = vperm.xlu0 %1700, %v1603
        %v1702 = vpop.permute.xlu0 %1701
        %1705 = vset.pattern.permute.xlu0 0
        %1706 = vperm.xlu0 %1705, %v1604
        %v1707 = vpop.permute.xlu0 %1706
        %1710 = vset.pattern.permute.xlu0 0
        %1711 = vperm.xlu0 %1710, %v1605
        %v1712 = vpop.permute.xlu0 %1711
        %1715 = vset.pattern.permute.xlu0 0
        %1716 = vperm.xlu0 %1715, %v1606
        %v1717 = vpop.permute.xlu0 %1716
        %1720 = vset.pattern.permute.xlu0 0
        %1721 = vperm.xlu0 %1720, %v1607
        %v1722 = vpop.permute.xlu0 %1721
        %1725 = vset.pattern.permute.xlu0 0
        %1726 = vperm.xlu0 %1725, %v1608
        %v1727 = vpop.permute.xlu0 %1726
        %1730 = vset.pattern.permute.xlu0 0
        %1731 = vperm.xlu0 %1730, %v1609
        %v1732 = vpop.permute.xlu0 %1731
        %1735 = vset.pattern.permute.xlu0 0
        %1736 = vperm.xlu0 %1735, %v1610
        %v1737 = vpop.permute.xlu0 %1736
        %v1739 = vsub.f32 %v1531, %v1662
        %v1740 = vsub.f32 %v1532, %v1667
        %v1741 = vsub.f32 %v1533, %v1672
        %v1742 = vsub.f32 %v1534, %v1677
        %v1743 = vsub.f32 %v1535, %v1682
        %v1744 = vsub.f32 %v1536, %v1687
        %v1745 = vsub.f32 %v1537, %v1692
        %v1746 = vsub.f32 %v1538, %v1697
        %v1747 = vsub.f32 %v1539, %v1702
        %v1748 = vsub.f32 %v1540, %v1707
        %v1749 = vsub.f32 %v1541, %v1712
        %v1750 = vsub.f32 %v1542, %v1717
        %v1751 = vsub.f32 %v1543, %v1722
        %v1752 = vsub.f32 %v1544, %v1727
        %v1753 = vsub.f32 %v1545, %v1732
        %v1754 = vsub.f32 %v1546, %v1737
        %v1755 = vmul.f32 %v1739, 1.442695
        %v1756 = vpow.pop %v1755
        %v1757 = vmul.f32 %v1740, 1.442695
        %v1758 = vpow.pop %v1757
        %v1759 = vmul.f32 %v1741, 1.442695
        %v1760 = vpow.pop %v1759
        %v1761 = vmul.f32 %v1742, 1.442695
        %v1762 = vpow.pop %v1761
        %v1763 = vmul.f32 %v1743, 1.442695
        %v1764 = vpow.pop %v1763
        %v1765 = vmul.f32 %v1744, 1.442695
        %v1766 = vpow.pop %v1765
        %v1767 = vmul.f32 %v1745, 1.442695
        %v1768 = vpow.pop %v1767
        %v1769 = vmul.f32 %v1746, 1.442695
        %v1770 = vpow.pop %v1769
        %v1771 = vmul.f32 %v1747, 1.442695
        %v1772 = vpow.pop %v1771
        %v1773 = vmul.f32 %v1748, 1.442695
        %v1774 = vpow.pop %v1773
        %v1775 = vmul.f32 %v1749, 1.442695
        %v1776 = vpow.pop %v1775
        %v1777 = vmul.f32 %v1750, 1.442695
        %v1778 = vpow.pop %v1777
        %v1779 = vmul.f32 %v1751, 1.442695
        %v1780 = vpow.pop %v1779
        %v1781 = vmul.f32 %v1752, 1.442695
        %v1782 = vpow.pop %v1781
        %v1783 = vmul.f32 %v1753, 1.442695
        %v1784 = vpow.pop %v1783
        %v1785 = vmul.f32 %v1754, 1.442695
        %v1786 = vpow.pop %v1785
        %v1787 = vmul.f32 %v1756, %v692
        %v1788 = vmul.f32 %v1758, %v693
        %v1789 = vmul.f32 %v1760, %v694
        %v1790 = vmul.f32 %v1762, %v695
        %v1791 = vmul.f32 %v1764, %v696
        %v1792 = vmul.f32 %v1766, %v697
        %v1793 = vmul.f32 %v1768, %v698
        %v1794 = vmul.f32 %v1770, %v699
        %v1795 = vmul.f32 %v1772, %v700
        %v1796 = vmul.f32 %v1774, %v701
        %v1797 = vmul.f32 %v1776, %v702
        %v1798 = vmul.f32 %v1778, %v703
        %v1799 = vmul.f32 %v1780, %v704
        %v1800 = vmul.f32 %v1782, %v705
        %v1801 = vmul.f32 %v1784, %v706
        %v1802 = vmul.f32 %v1786, %v707
        %v1803 = vld [vmem:[#allocation3] sm:$0xff]
        %v1804 = vld [vmem:[#allocation3 + $0x8] sm:$0xff]
        %v1805 = vld [vmem:[#allocation3 + $0x10] sm:$0xff]
        %v1806 = vld [vmem:[#allocation3 + $0x18] sm:$0xff]
        %v1807 = vld [vmem:[#allocation3 + $0x20] sm:$0xff]
        %v1808 = vld [vmem:[#allocation3 + $0x28] sm:$0xff]
        %v1809 = vld [vmem:[#allocation3 + $0x30] sm:$0xff]
        %v1810 = vld [vmem:[#allocation3 + $0x38] sm:$0xff]
        %v1811 = vld [vmem:[#allocation3 + $0x40] sm:$0xff]
        %v1812 = vld [vmem:[#allocation3 + $0x48] sm:$0xff]
        %v1813 = vld [vmem:[#allocation3 + $0x50] sm:$0xff]
        %v1814 = vld [vmem:[#allocation3 + $0x58] sm:$0xff]
        %v1815 = vld [vmem:[#allocation3 + $0x60] sm:$0xff]
        %v1816 = vld [vmem:[#allocation3 + $0x68] sm:$0xff]
        %v1817 = vld [vmem:[#allocation3 + $0x70] sm:$0xff]
        %v1818 = vld [vmem:[#allocation3 + $0x78] sm:$0xff]
        %v1819 = vmul.f32 %v1628, %v1803
        %v1820 = vmul.f32 %v1630, %v1804
        %v1821 = vmul.f32 %v1632, %v1805
        %v1822 = vmul.f32 %v1634, %v1806
        %v1823 = vmul.f32 %v1636, %v1807
        %v1824 = vmul.f32 %v1638, %v1808
        %v1825 = vmul.f32 %v1640, %v1809
        %v1826 = vmul.f32 %v1642, %v1810
        %v1827 = vmul.f32 %v1644, %v1811
        %v1828 = vmul.f32 %v1646, %v1812
        %v1829 = vmul.f32 %v1648, %v1813
        %v1830 = vmul.f32 %v1650, %v1814
        %v1831 = vmul.f32 %v1652, %v1815
        %v1832 = vmul.f32 %v1654, %v1816
        %v1833 = vmul.f32 %v1656, %v1817
        %v1834 = vmul.f32 %v1658, %v1818
        %1835 = vadd.xlane.f32.xlu0 %v1787
        %v1836 = vpop.xlane.xlu0 %1835
        %1837 = vadd.xlane.f32.xlu0 %v1788
        %v1838 = vpop.xlane.xlu0 %1837
        %1839 = vadd.xlane.f32.xlu0 %v1789
        %v1840 = vpop.xlane.xlu0 %1839
        %1841 = vadd.xlane.f32.xlu0 %v1790
        %v1842 = vpop.xlane.xlu0 %1841
        %1843 = vadd.xlane.f32.xlu0 %v1791
        %v1844 = vpop.xlane.xlu0 %1843
        %1845 = vadd.xlane.f32.xlu0 %v1792
        %v1846 = vpop.xlane.xlu0 %1845
        %1847 = vadd.xlane.f32.xlu0 %v1793
        %v1848 = vpop.xlane.xlu0 %1847
        %1849 = vadd.xlane.f32.xlu0 %v1794
        %v1850 = vpop.xlane.xlu0 %1849
        %1851 = vadd.xlane.f32.xlu0 %v1795
        %v1852 = vpop.xlane.xlu0 %1851
        %1853 = vadd.xlane.f32.xlu0 %v1796
        %v1854 = vpop.xlane.xlu0 %1853
        %1855 = vadd.xlane.f32.xlu0 %v1797
        %v1856 = vpop.xlane.xlu0 %1855
        %1857 = vadd.xlane.f32.xlu0 %v1798
        %v1858 = vpop.xlane.xlu0 %1857
        %1859 = vadd.xlane.f32.xlu0 %v1799
        %v1860 = vpop.xlane.xlu0 %1859
        %1861 = vadd.xlane.f32.xlu0 %v1800
        %v1862 = vpop.xlane.xlu0 %1861
        %1863 = vadd.xlane.f32.xlu0 %v1801
        %v1864 = vpop.xlane.xlu0 %1863
        %1865 = vadd.xlane.f32.xlu0 %v1802
        %v1866 = vpop.xlane.xlu0 %1865
        %v1867 = vadd.f32 %v1819, %v1836
        %v1868 = vadd.f32 %v1820, %v1838
        %v1869 = vadd.f32 %v1821, %v1840
        %v1870 = vadd.f32 %v1822, %v1842
        %v1871 = vadd.f32 %v1823, %v1844
        %v1872 = vadd.f32 %v1824, %v1846
        %v1873 = vadd.f32 %v1825, %v1848
        %v1874 = vadd.f32 %v1826, %v1850
        %v1875 = vadd.f32 %v1827, %v1852
        %v1876 = vadd.f32 %v1828, %v1854
        %v1877 = vadd.f32 %v1829, %v1856
        %v1878 = vadd.f32 %v1830, %v1858
        %v1879 = vadd.f32 %v1831, %v1860
        %v1880 = vadd.f32 %v1832, %v1862
        %v1881 = vadd.f32 %v1833, %v1864
        %v1882 = vadd.f32 %v1834, %v1866
        %vm1883 = vcmask 7168
        %1884 = vst.msk [vmem:[#allocation3] sm:$0xff] %vm1883, %v1867
        %1885 = vst.msk [vmem:[#allocation3 + $0x8] sm:$0xff] %vm1883, %v1868
        %1886 = vst.msk [vmem:[#allocation3 + $0x10] sm:$0xff] %vm1883, %v1869
        %1887 = vst.msk [vmem:[#allocation3 + $0x18] sm:$0xff] %vm1883, %v1870
        %1888 = vst.msk [vmem:[#allocation3 + $0x20] sm:$0xff] %vm1883, %v1871
        %1889 = vst.msk [vmem:[#allocation3 + $0x28] sm:$0xff] %vm1883, %v1872
        %1890 = vst.msk [vmem:[#allocation3 + $0x30] sm:$0xff] %vm1883, %v1873
        %1891 = vst.msk [vmem:[#allocation3 + $0x38] sm:$0xff] %vm1883, %v1874
        %1892 = vst.msk [vmem:[#allocation3 + $0x40] sm:$0xff] %vm1883, %v1875
        %1893 = vst.msk [vmem:[#allocation3 + $0x48] sm:$0xff] %vm1883, %v1876
        %1894 = vst.msk [vmem:[#allocation3 + $0x50] sm:$0xff] %vm1883, %v1877
        %1895 = vst.msk [vmem:[#allocation3 + $0x58] sm:$0xff] %vm1883, %v1878
        %1896 = vst.msk [vmem:[#allocation3 + $0x60] sm:$0xff] %vm1883, %v1879
        %1897 = vst.msk [vmem:[#allocation3 + $0x68] sm:$0xff] %vm1883, %v1880
        %1898 = vst.msk [vmem:[#allocation3 + $0x70] sm:$0xff] %vm1883, %v1881
        %1899 = vst.msk [vmem:[#allocation3 + $0x78] sm:$0xff] %vm1883, %v1882
        %v1900 = vld [vmem:[#allocation4] sm:$0xff]
        %v1901 = vld [vmem:[#allocation4 + $0x18] sm:$0xff]
        %v1902 = vld [vmem:[#allocation4 + $0x30] sm:$0xff]
        %v1903 = vld [vmem:[#allocation4 + $0x48] sm:$0xff]
        %v1904 = vld [vmem:[#allocation4 + $0x60] sm:$0xff]
        %v1905 = vld [vmem:[#allocation4 + $0x78] sm:$0xff]
        %v1906 = vld [vmem:[#allocation4 + $0x90] sm:$0xff]
        %v1907 = vld [vmem:[#allocation4 + $0xa8] sm:$0xff]
        %v1908 = vld [vmem:[#allocation4 + $0xc0] sm:$0xff]
        %v1909 = vld [vmem:[#allocation4 + $0xd8] sm:$0xff]
        %v1910 = vld [vmem:[#allocation4 + $0xf0] sm:$0xff]
        %v1911 = vld [vmem:[#allocation4 + $0x108] sm:$0xff]
        %v1912 = vld [vmem:[#allocation4 + $0x120] sm:$0xff]
        %v1913 = vld [vmem:[#allocation4 + $0x138] sm:$0xff]
        %v1914 = vld [vmem:[#allocation4 + $0x150] sm:$0xff]
        %v1915 = vld [vmem:[#allocation4 + $0x168] sm:$0xff]
        %1917 = vset.pattern.permute.xlu0 0
        %1918 = vperm.xlu0 %1917, %v1628
        %v1919 = vpop.permute.xlu0 %1918
        %1922 = vset.pattern.permute.xlu0 0
        %1923 = vperm.xlu0 %1922, %v1630
        %v1924 = vpop.permute.xlu0 %1923
        %1927 = vset.pattern.permute.xlu0 0
        %1928 = vperm.xlu0 %1927, %v1632
        %v1929 = vpop.permute.xlu0 %1928
        %1932 = vset.pattern.permute.xlu0 0
        %1933 = vperm.xlu0 %1932, %v1634
        %v1934 = vpop.permute.xlu0 %1933
        %1937 = vset.pattern.permute.xlu0 0
        %1938 = vperm.xlu0 %1937, %v1636
        %v1939 = vpop.permute.xlu0 %1938
        %1942 = vset.pattern.permute.xlu0 0
        %1943 = vperm.xlu0 %1942, %v1638
        %v1944 = vpop.permute.xlu0 %1943
        %1947 = vset.pattern.permute.xlu0 0
        %1948 = vperm.xlu0 %1947, %v1640
        %v1949 = vpop.permute.xlu0 %1948
        %1952 = vset.pattern.permute.xlu0 0
        %1953 = vperm.xlu0 %1952, %v1642
        %v1954 = vpop.permute.xlu0 %1953
        %1957 = vset.pattern.permute.xlu0 0
        %1958 = vperm.xlu0 %1957, %v1644
        %v1959 = vpop.permute.xlu0 %1958
        %1962 = vset.pattern.permute.xlu0 0
        %1963 = vperm.xlu0 %1962, %v1646
        %v1964 = vpop.permute.xlu0 %1963
        %1967 = vset.pattern.permute.xlu0 0
        %1968 = vperm.xlu0 %1967, %v1648
        %v1969 = vpop.permute.xlu0 %1968
        %1972 = vset.pattern.permute.xlu0 0
        %1973 = vperm.xlu0 %1972, %v1650
        %v1974 = vpop.permute.xlu0 %1973
        %1977 = vset.pattern.permute.xlu0 0
        %1978 = vperm.xlu0 %1977, %v1652
        %v1979 = vpop.permute.xlu0 %1978
        %1982 = vset.pattern.permute.xlu0 0
        %1983 = vperm.xlu0 %1982, %v1654
        %v1984 = vpop.permute.xlu0 %1983
        %1987 = vset.pattern.permute.xlu0 0
        %1988 = vperm.xlu0 %1987, %v1656
        %v1989 = vpop.permute.xlu0 %1988
        %1992 = vset.pattern.permute.xlu0 0
        %1993 = vperm.xlu0 %1992, %v1658
        %v1994 = vpop.permute.xlu0 %1993
        %v1996 = vmul.f32 %v1919, %v1900
        %v1997 = vmul.f32 %v1924, %v1901
        %v1998 = vmul.f32 %v1929, %v1902
        %v1999 = vmul.f32 %v1934, %v1903
        %v2000 = vmul.f32 %v1939, %v1904
        %v2001 = vmul.f32 %v1944, %v1905
        %v2002 = vmul.f32 %v1949, %v1906
        %v2003 = vmul.f32 %v1954, %v1907
        %v2004 = vmul.f32 %v1959, %v1908
        %v2005 = vmul.f32 %v1964, %v1909
        %v2006 = vmul.f32 %v1969, %v1910
        %v2007 = vmul.f32 %v1974, %v1911
        %v2008 = vmul.f32 %v1979, %v1912
        %v2009 = vmul.f32 %v1984, %v1913
        %v2010 = vmul.f32 %v1989, %v1914
        %v2011 = vmul.f32 %v1994, %v1915
        %2012 = vmatprep.subr.mxu0 0.0
        %2013 = vmatpush1.msra.mxu0 %v965
        %2014 = vmatprep.subr.mxu0 0.0
        %2015 = vmatpush1.msra.mxu0 %v959
        %2016 = vmatprep.subr.mxu0 0.0
        %2017 = vmatpush1.msra.mxu0 %v953
        %2018 = vmatprep.subr.mxu0 0.0
        %2019 = vmatpush1.msra.mxu0 %v947
        %2020 = vmatprep.subr.mxu0 0.0
        %2021 = vmatpush1.msra.mxu0 %v941
        %2022 = vmatprep.subr.mxu0 0.0
        %2023 = vmatpush1.msra.mxu0 %v935
        %2024 = vmatprep.subr.mxu0 0.0
        %2025 = vmatpush1.msra.mxu0 %v929
        %2026 = vmatprep.subr.mxu0 0.0
        %2027 = vmatpush1.msra.mxu0 %v923
        %2028 = vmatprep.subr.mxu0 0.0
        %2029 = vmatpush1.msra.mxu0 %v917
        %2030 = vmatprep.subr.mxu0 0.0
        %2031 = vmatpush1.msra.mxu0 %v911
        %2032 = vmatprep.subr.mxu0 0.0
        %2033 = vmatpush1.msra.mxu0 %v905
        %2034 = vmatprep.subr.mxu0 0.0
        %2035 = vmatpush1.msra.mxu0 %v899
        %2036 = vmatprep.subr.mxu0 0.0
        %2037 = vmatpush1.msra.mxu0 %v893
        %2038 = vmatprep.subr.mxu0 0.0
        %2039 = vmatpush1.msra.mxu0 %v887
        %2040 = vmatprep.subr.mxu0 0.0
        %2041 = vmatpush1.msra.mxu0 %v881
        %2042 = vmatprep.subr.mxu0 0.0
        %2043 = vmatpush1.msra.mxu0 %v875
        %2044 = vmatprep.subr.mxu0 0.0
        %2045 = vmatpush2.msra.mxu0 0.0
        %2046 = vmatprep.subr.mxu0 0.0
        %2047 = vmatpush2.msra.mxu0 0.0
        %2048 = vmatprep.subr.mxu0 0.0
        %2049 = vmatpush2.msra.mxu0 0.0
        %2050 = vmatprep.subr.mxu0 0.0
        %2051 = vmatpush2.msra.mxu0 0.0
        %2052 = vmatprep.subr.mxu0 0.0
        %2053 = vmatpush2.msra.mxu0 0.0
        %2054 = vmatprep.subr.mxu0 0.0
        %2055 = vmatpush2.msra.mxu0 0.0
        %2056 = vmatprep.subr.mxu0 0.0
        %2057 = vmatpush2.msra.mxu0 0.0
        %2058 = vmatprep.subr.mxu0 0.0
        %2059 = vmatpush2.msra.mxu0 0.0
        %2060 = vmatprep.subr.mxu0 0.0
        %2061 = vmatpush2.msra.mxu0 0.0
        %2062 = vmatprep.subr.mxu0 0.0
        %2063 = vmatpush2.msra.mxu0 0.0
        %2064 = vmatprep.subr.mxu0 0.0
        %2065 = vmatpush2.msra.mxu0 0.0
        %2066 = vmatprep.subr.mxu0 0.0
        %2067 = vmatpush2.msra.mxu0 0.0
        %2068 = vmatprep.subr.mxu0 0.0
        %2069 = vmatpush2.msra.mxu0 0.0
        %2070 = vmatprep.subr.mxu0 0.0
        %2071 = vmatpush2.msra.mxu0 0.0
        %2072 = vmatprep.subr.mxu0 0.0
        %2073 = vmatpush2.msra.mxu0 0.0
        %2074 = vmatprep.subr.mxu0 0.0
        %2075 = vmatpush2.msra.mxu0 0.0
        %2076 = vmatprep.mubr.f32.mxu0 0.0
        %2077 = vmatmul.mubr.f32.gmra.mxu0 %v1787
        %v2078 = vpop.f32.mrf.mxu0
        %v2079 = vadd.f32 0.0, %v2078
        %v2080 = vpop.f32.mrf.mxu0
        %2081 = vmatprep.mubr.f32.mxu0 0.0
        %2082 = vmatmul.mubr.f32.gmra.mxu0 %v1788
        %v2083 = vpop.f32.mrf.mxu0
        %v2084 = vadd.f32 0.0, %v2083
        %v2085 = vpop.f32.mrf.mxu0
        %2086 = vmatprep.mubr.f32.mxu0 0.0
        %2087 = vmatmul.mubr.f32.gmra.mxu0 %v1789
        %v2088 = vpop.f32.mrf.mxu0
        %v2089 = vadd.f32 0.0, %v2088
        %v2090 = vpop.f32.mrf.mxu0
        %2091 = vmatprep.mubr.f32.mxu0 0.0
        %2092 = vmatmul.mubr.f32.gmra.mxu0 %v1790
        %v2093 = vpop.f32.mrf.mxu0
        %v2094 = vadd.f32 0.0, %v2093
        %v2095 = vpop.f32.mrf.mxu0
        %2096 = vmatprep.mubr.f32.mxu0 0.0
        %2097 = vmatmul.mubr.f32.gmra.mxu0 %v1791
        %v2098 = vpop.f32.mrf.mxu0
        %v2099 = vadd.f32 0.0, %v2098
        %v2100 = vpop.f32.mrf.mxu0
        %2101 = vmatprep.mubr.f32.mxu0 0.0
        %2102 = vmatmul.mubr.f32.gmra.mxu0 %v1792
        %v2103 = vpop.f32.mrf.mxu0
        %v2104 = vadd.f32 0.0, %v2103
        %v2105 = vpop.f32.mrf.mxu0
        %2106 = vmatprep.mubr.f32.mxu0 0.0
        %2107 = vmatmul.mubr.f32.gmra.mxu0 %v1793
        %v2108 = vpop.f32.mrf.mxu0
        %v2109 = vadd.f32 0.0, %v2108
        %v2110 = vpop.f32.mrf.mxu0
        %2111 = vmatprep.mubr.f32.mxu0 0.0
        %2112 = vmatmul.mubr.f32.gmra.mxu0 %v1794
        %v2113 = vpop.f32.mrf.mxu0
        %v2114 = vadd.f32 0.0, %v2113
        %v2115 = vpop.f32.mrf.mxu0
        %2116 = vmatprep.mubr.f32.mxu0 0.0
        %2117 = vmatmul.mubr.f32.gmra.mxu0 %v1795
        %v2118 = vpop.f32.mrf.mxu0
        %v2119 = vadd.f32 0.0, %v2118
        %v2120 = vpop.f32.mrf.mxu0
        %2121 = vmatprep.mubr.f32.mxu0 0.0
        %2122 = vmatmul.mubr.f32.gmra.mxu0 %v1796
        %v2123 = vpop.f32.mrf.mxu0
        %v2124 = vadd.f32 0.0, %v2123
        %v2125 = vpop.f32.mrf.mxu0
        %2126 = vmatprep.mubr.f32.mxu0 0.0
        %2127 = vmatmul.mubr.f32.gmra.mxu0 %v1797
        %v2128 = vpop.f32.mrf.mxu0
        %v2129 = vadd.f32 0.0, %v2128
        %v2130 = vpop.f32.mrf.mxu0
        %2131 = vmatprep.mubr.f32.mxu0 0.0
        %2132 = vmatmul.mubr.f32.gmra.mxu0 %v1798
        %v2133 = vpop.f32.mrf.mxu0
        %v2134 = vadd.f32 0.0, %v2133
        %v2135 = vpop.f32.mrf.mxu0
        %2136 = vmatprep.mubr.f32.mxu0 0.0
        %2137 = vmatmul.mubr.f32.gmra.mxu0 %v1799
        %v2138 = vpop.f32.mrf.mxu0
        %v2139 = vadd.f32 0.0, %v2138
        %v2140 = vpop.f32.mrf.mxu0
        %2141 = vmatprep.mubr.f32.mxu0 0.0
        %2142 = vmatmul.mubr.f32.gmra.mxu0 %v1800
        %v2143 = vpop.f32.mrf.mxu0
        %v2144 = vadd.f32 0.0, %v2143
        %v2145 = vpop.f32.mrf.mxu0
        %2146 = vmatprep.mubr.f32.mxu0 0.0
        %2147 = vmatmul.mubr.f32.gmra.mxu0 %v1801
        %v2148 = vpop.f32.mrf.mxu0
        %v2149 = vadd.f32 0.0, %v2148
        %v2150 = vpop.f32.mrf.mxu0
        %2151 = vmatprep.mubr.f32.mxu0 0.0
        %2152 = vmatmul.mubr.f32.gmra.mxu0 %v1802
        %v2153 = vpop.f32.mrf.mxu0
        %v2154 = vadd.f32 0.0, %v2153
        %v2155 = vpop.f32.mrf.mxu0
        %2156 = vdwg.mxu0
        %v2157 = vadd.f32 %v1996, %v2079
        %v2158 = vadd.f32 %v1997, %v2084
        %v2159 = vadd.f32 %v1998, %v2089
        %v2160 = vadd.f32 %v1999, %v2094
        %v2161 = vadd.f32 %v2000, %v2099
        %v2162 = vadd.f32 %v2001, %v2104
        %v2163 = vadd.f32 %v2002, %v2109
        %v2164 = vadd.f32 %v2003, %v2114
        %v2165 = vadd.f32 %v2004, %v2119
        %v2166 = vadd.f32 %v2005, %v2124
        %v2167 = vadd.f32 %v2006, %v2129
        %v2168 = vadd.f32 %v2007, %v2134
        %v2169 = vadd.f32 %v2008, %v2139
        %v2170 = vadd.f32 %v2009, %v2144
        %v2171 = vadd.f32 %v2010, %v2149
        %v2172 = vadd.f32 %v2011, %v2154
        %2173 = vst [vmem:[#allocation4] sm:$0xff] %v2157
        %2174 = vst [vmem:[#allocation4 + $0x18] sm:$0xff] %v2158
        %2175 = vst [vmem:[#allocation4 + $0x30] sm:$0xff] %v2159
        %2176 = vst [vmem:[#allocation4 + $0x48] sm:$0xff] %v2160
        %2177 = vst [vmem:[#allocation4 + $0x60] sm:$0xff] %v2161
        %2178 = vst [vmem:[#allocation4 + $0x78] sm:$0xff] %v2162
        %2179 = vst [vmem:[#allocation4 + $0x90] sm:$0xff] %v2163
        %2180 = vst [vmem:[#allocation4 + $0xa8] sm:$0xff] %v2164
        %2181 = vst [vmem:[#allocation4 + $0xc0] sm:$0xff] %v2165
        %2182 = vst [vmem:[#allocation4 + $0xd8] sm:$0xff] %v2166
        %2183 = vst [vmem:[#allocation4 + $0xf0] sm:$0xff] %v2167
        %2184 = vst [vmem:[#allocation4 + $0x108] sm:$0xff] %v2168
        %2185 = vst [vmem:[#allocation4 + $0x120] sm:$0xff] %v2169
        %2186 = vst [vmem:[#allocation4 + $0x138] sm:$0xff] %v2170
        %2187 = vst [vmem:[#allocation4 + $0x150] sm:$0xff] %v2171
        %2188 = vst [vmem:[#allocation4 + $0x168] sm:$0xff] %v2172
        %2189 = vst.msk [vmem:[#allocation2] sm:$0xff] %vm1883, %v1595
        %2190 = vst.msk [vmem:[#allocation2 + $0x8] sm:$0xff] %vm1883, %v1596
        %2191 = vst.msk [vmem:[#allocation2 + $0x10] sm:$0xff] %vm1883, %v1597
        %2192 = vst.msk [vmem:[#allocation2 + $0x18] sm:$0xff] %vm1883, %v1598
        %2193 = vst.msk [vmem:[#allocation2 + $0x20] sm:$0xff] %vm1883, %v1599
        %2194 = vst.msk [vmem:[#allocation2 + $0x28] sm:$0xff] %vm1883, %v1600
        %2195 = vst.msk [vmem:[#allocation2 + $0x30] sm:$0xff] %vm1883, %v1601
        %2196 = vst.msk [vmem:[#allocation2 + $0x38] sm:$0xff] %vm1883, %v1602
        %2197 = vst.msk [vmem:[#allocation2 + $0x40] sm:$0xff] %vm1883, %v1603
        %2198 = vst.msk [vmem:[#allocation2 + $0x48] sm:$0xff] %vm1883, %v1604
        %2199 = vst.msk [vmem:[#allocation2 + $0x50] sm:$0xff] %vm1883, %v1605
        %2200 = vst.msk [vmem:[#allocation2 + $0x58] sm:$0xff] %vm1883, %v1606
        %2201 = vst.msk [vmem:[#allocation2 + $0x60] sm:$0xff] %vm1883, %v1607
        %2202 = vst.msk [vmem:[#allocation2 + $0x68] sm:$0xff] %vm1883, %v1608
        %2203 = vst.msk [vmem:[#allocation2 + $0x70] sm:$0xff] %vm1883, %v1609
        %2204 = vst.msk [vmem:[#allocation2 + $0x78] sm:$0xff] %vm1883, %v1610
        %v2205 = vld [vmem:[%s499] sm:$0xff]
        %v2206 = vld [vmem:[%s499 + $0x8] sm:$0xff]
        %v2207 = vld [vmem:[%s499 + $0x10] sm:$0xff]
        %v2208 = vld [vmem:[%s499 + $0x18] sm:$0xff]
        %v2209 = vld [vmem:[%s499 + $0x20] sm:$0xff]
        %v2210 = vld [vmem:[%s499 + $0x28] sm:$0xff]
        %v2211 = vld [vmem:[%s499 + $0x30] sm:$0xff]
        %v2212 = vld [vmem:[%s499 + $0x38] sm:$0xff]
        %v2213 = vld [vmem:[%s499 + $0x40] sm:$0xff]
        %v2214 = vld [vmem:[%s499 + $0x48] sm:$0xff]
        %v2215 = vld [vmem:[%s499 + $0x50] sm:$0xff]
        %v2216 = vld [vmem:[%s499 + $0x58] sm:$0xff]
        %v2217 = vld [vmem:[%s499 + $0x60] sm:$0xff]
        %v2218 = vld [vmem:[%s499 + $0x68] sm:$0xff]
        %v2219 = vld [vmem:[%s499 + $0x70] sm:$0xff]
        %v2220 = vld [vmem:[%s499 + $0x78] sm:$0xff]
        %s2221 = scalar_lea.vmem %s5, 8
        %v2222 = vld [vmem:[%s2221] sm:$0xff]
        %v2224 = vsel %vm759, %v2205, 0
        %v2227 = vsel %vm759, %v2206, 0
        %v2230 = vsel %vm759, %v2207, 0
        %v2233 = vsel %vm759, %v2208, 0
        %v2236 = vsel %vm759, %v2209, 0
        %v2239 = vsel %vm759, %v2210, 0
        %v2242 = vsel %vm759, %v2211, 0
        %v2245 = vsel %vm759, %v2212, 0
        %v2248 = vsel %vm759, %v2213, 0
        %v2251 = vsel %vm759, %v2214, 0
        %v2254 = vsel %vm759, %v2215, 0
        %v2257 = vsel %vm759, %v2216, 0
        %v2260 = vsel %vm759, %v2217, 0
        %v2263 = vsel %vm759, %v2218, 0
        %v2266 = vsel %vm759, %v2219, 0
        %v2269 = vsel %vm759, %v2220, 0
        %2271 = vmatprep.subr.mxu0 0.0
        %2272 = vmatpush1.msra.mxu0 0.0
        %2273 = vmatprep.subr.mxu0 0.0
        %2274 = vmatpush1.msra.mxu0 0.0
        %2275 = vmatprep.subr.mxu0 0.0
        %2276 = vmatpush1.msra.mxu0 0.0
        %2277 = vmatprep.subr.mxu0 0.0
        %2278 = vmatpush1.msra.mxu0 0.0
        %2279 = vmatprep.subr.mxu0 0.0
        %2280 = vmatpush1.msra.mxu0 0.0
        %2281 = vmatprep.subr.mxu0 0.0
        %2282 = vmatpush1.msra.mxu0 0.0
        %2283 = vmatprep.subr.mxu0 0.0
        %2284 = vmatpush1.msra.mxu0 0.0
        %2285 = vmatprep.subr.mxu0 0.0
        %2286 = vmatpush1.msra.mxu0 0.0
        %2287 = vmatprep.subr.mxu0 0.0
        %2288 = vmatpush1.msra.mxu0 0.0
        %2289 = vmatprep.subr.mxu0 0.0
        %2290 = vmatpush1.msra.mxu0 0.0
        %2291 = vmatprep.subr.mxu0 0.0
        %2292 = vmatpush1.msra.mxu0 0.0
        %2293 = vmatprep.subr.mxu0 0.0
        %2294 = vmatpush1.msra.mxu0 0.0
        %2295 = vmatprep.subr.mxu0 0.0
        %2296 = vmatpush1.msra.mxu0 0.0
        %2297 = vmatprep.subr.mxu0 0.0
        %2298 = vmatpush1.msra.mxu0 0.0
        %2299 = vmatprep.subr.mxu0 0.0
        %2300 = vmatpush1.msra.mxu0 0.0
        %2301 = vmatprep.subr.mxu0 0.0
        %2302 = vmatpush1.msra.mxu0 %v2222
        %2303 = vmatprep.subr.mxu0 0.0
        %2304 = vmatpush2.msra.mxu0 0.0
        %2305 = vmatprep.subr.mxu0 0.0
        %2306 = vmatpush2.msra.mxu0 0.0
        %2307 = vmatprep.subr.mxu0 0.0
        %2308 = vmatpush2.msra.mxu0 0.0
        %2309 = vmatprep.subr.mxu0 0.0
        %2310 = vmatpush2.msra.mxu0 0.0
        %2311 = vmatprep.subr.mxu0 0.0
        %2312 = vmatpush2.msra.mxu0 0.0
        %2313 = vmatprep.subr.mxu0 0.0
        %2314 = vmatpush2.msra.mxu0 0.0
        %2315 = vmatprep.subr.mxu0 0.0
        %2316 = vmatpush2.msra.mxu0 0.0
        %2317 = vmatprep.subr.mxu0 0.0
        %2318 = vmatpush2.msra.mxu0 0.0
        %2319 = vmatprep.subr.mxu0 0.0
        %2320 = vmatpush2.msra.mxu0 0.0
        %2321 = vmatprep.subr.mxu0 0.0
        %2322 = vmatpush2.msra.mxu0 0.0
        %2323 = vmatprep.subr.mxu0 0.0
        %2324 = vmatpush2.msra.mxu0 0.0
        %2325 = vmatprep.subr.mxu0 0.0
        %2326 = vmatpush2.msra.mxu0 0.0
        %2327 = vmatprep.subr.mxu0 0.0
        %2328 = vmatpush2.msra.mxu0 0.0
        %2329 = vmatprep.subr.mxu0 0.0
        %2330 = vmatpush2.msra.mxu0 0.0
        %2331 = vmatprep.subr.mxu0 0.0
        %2332 = vmatpush2.msra.mxu0 0.0
        %2333 = vmatprep.subr.mxu0 0.0
        %2334 = vmatpush2.msra.mxu0 0.0
        %2335 = vmatprep.mubr.f32.mxu0 0.0
        %2336 = vmatmul.mubr.f32.gmra.mxu0 %v2224
        %v2337 = vpop.f32.mrf.mxu0
        %v2338 = vadd.f32 0.0, %v2337
        %v2339 = vpop.f32.mrf.mxu0
        %2340 = vmatprep.mubr.f32.mxu0 0.0
        %2341 = vmatmul.mubr.f32.gmra.mxu0 %v2227
        %v2342 = vpop.f32.mrf.mxu0
        %v2343 = vadd.f32 0.0, %v2342
        %v2344 = vpop.f32.mrf.mxu0
        %2345 = vmatprep.mubr.f32.mxu0 0.0
        %2346 = vmatmul.mubr.f32.gmra.mxu0 %v2230
        %v2347 = vpop.f32.mrf.mxu0
        %v2348 = vadd.f32 0.0, %v2347
        %v2349 = vpop.f32.mrf.mxu0
        %2350 = vmatprep.mubr.f32.mxu0 0.0
        %2351 = vmatmul.mubr.f32.gmra.mxu0 %v2233
        %v2352 = vpop.f32.mrf.mxu0
        %v2353 = vadd.f32 0.0, %v2352
        %v2354 = vpop.f32.mrf.mxu0
        %2355 = vmatprep.mubr.f32.mxu0 0.0
        %2356 = vmatmul.mubr.f32.gmra.mxu0 %v2236
        %v2357 = vpop.f32.mrf.mxu0
        %v2358 = vadd.f32 0.0, %v2357
        %v2359 = vpop.f32.mrf.mxu0
        %2360 = vmatprep.mubr.f32.mxu0 0.0
        %2361 = vmatmul.mubr.f32.gmra.mxu0 %v2239
        %v2362 = vpop.f32.mrf.mxu0
        %v2363 = vadd.f32 0.0, %v2362
        %v2364 = vpop.f32.mrf.mxu0
        %2365 = vmatprep.mubr.f32.mxu0 0.0
        %2366 = vmatmul.mubr.f32.gmra.mxu0 %v2242
        %v2367 = vpop.f32.mrf.mxu0
        %v2368 = vadd.f32 0.0, %v2367
        %v2369 = vpop.f32.mrf.mxu0
        %2370 = vmatprep.mubr.f32.mxu0 0.0
        %2371 = vmatmul.mubr.f32.gmra.mxu0 %v2245
        %v2372 = vpop.f32.mrf.mxu0
        %v2373 = vadd.f32 0.0, %v2372
        %v2374 = vpop.f32.mrf.mxu0
        %2375 = vmatprep.mubr.f32.mxu0 0.0
        %2376 = vmatmul.mubr.f32.gmra.mxu0 %v2248
        %v2377 = vpop.f32.mrf.mxu0
        %v2378 = vadd.f32 0.0, %v2377
        %v2379 = vpop.f32.mrf.mxu0
        %2380 = vmatprep.mubr.f32.mxu0 0.0
        %2381 = vmatmul.mubr.f32.gmra.mxu0 %v2251
        %v2382 = vpop.f32.mrf.mxu0
        %v2383 = vadd.f32 0.0, %v2382
        %v2384 = vpop.f32.mrf.mxu0
        %2385 = vmatprep.mubr.f32.mxu0 0.0
        %2386 = vmatmul.mubr.f32.gmra.mxu0 %v2254
        %v2387 = vpop.f32.mrf.mxu0
        %v2388 = vadd.f32 0.0, %v2387
        %v2389 = vpop.f32.mrf.mxu0
        %2390 = vmatprep.mubr.f32.mxu0 0.0
        %2391 = vmatmul.mubr.f32.gmra.mxu0 %v2257
        %v2392 = vpop.f32.mrf.mxu0
        %v2393 = vadd.f32 0.0, %v2392
        %v2394 = vpop.f32.mrf.mxu0
        %2395 = vmatprep.mubr.f32.mxu0 0.0
        %2396 = vmatmul.mubr.f32.gmra.mxu0 %v2260
        %v2397 = vpop.f32.mrf.mxu0
        %v2398 = vadd.f32 0.0, %v2397
        %v2399 = vpop.f32.mrf.mxu0
        %2400 = vmatprep.mubr.f32.mxu0 0.0
        %2401 = vmatmul.mubr.f32.gmra.mxu0 %v2263
        %v2402 = vpop.f32.mrf.mxu0
        %v2403 = vadd.f32 0.0, %v2402
        %v2404 = vpop.f32.mrf.mxu0
        %2405 = vmatprep.mubr.f32.mxu0 0.0
        %2406 = vmatmul.mubr.f32.gmra.mxu0 %v2266
        %v2407 = vpop.f32.mrf.mxu0
        %v2408 = vadd.f32 0.0, %v2407
        %v2409 = vpop.f32.mrf.mxu0
        %2410 = vmatprep.mubr.f32.mxu0 0.0
        %2411 = vmatmul.mubr.f32.gmra.mxu0 %v2269
        %v2412 = vpop.f32.mrf.mxu0
        %v2413 = vadd.f32 0.0, %v2412
        %v2414 = vpop.f32.mrf.mxu0
        %2415 = vdwg.mxu0
        %s2416 = scalar_lea.vmem %s4, 1
        %v2417 = vld [vmem:[%s2416] sm:$0x1]
        %v2418 = vld [vmem:[%s510] sm:$0xff]
        %v2420 = vsel %vm759, %v2417, 0
        %2422 = vmatprep.subr.mxu0 0.0
        %2423 = vmatpush1.msra.mxu0 0.0
        %2424 = vmatprep.subr.mxu0 0.0
        %2425 = vmatpush1.msra.mxu0 0.0
        %2426 = vmatprep.subr.mxu0 0.0
        %2427 = vmatpush1.msra.mxu0 0.0
        %2428 = vmatprep.subr.mxu0 0.0
        %2429 = vmatpush1.msra.mxu0 0.0
        %2430 = vmatprep.subr.mxu0 0.0
        %2431 = vmatpush1.msra.mxu0 0.0
        %2432 = vmatprep.subr.mxu0 0.0
        %2433 = vmatpush1.msra.mxu0 0.0
        %2434 = vmatprep.subr.mxu0 0.0
        %2435 = vmatpush1.msra.mxu0 0.0
        %2436 = vmatprep.subr.mxu0 0.0
        %2437 = vmatpush1.msra.mxu0 0.0
        %2438 = vmatprep.subr.mxu0 0.0
        %2439 = vmatpush1.msra.mxu0 0.0
        %2440 = vmatprep.subr.mxu0 0.0
        %2441 = vmatpush1.msra.mxu0 0.0
        %2442 = vmatprep.subr.mxu0 0.0
        %2443 = vmatpush1.msra.mxu0 0.0
        %2444 = vmatprep.subr.mxu0 0.0
        %2445 = vmatpush1.msra.mxu0 0.0
        %2446 = vmatprep.subr.mxu0 0.0
        %2447 = vmatpush1.msra.mxu0 0.0
        %2448 = vmatprep.subr.mxu0 0.0
        %2449 = vmatpush1.msra.mxu0 0.0
        %2450 = vmatprep.subr.mxu0 0.0
        %2451 = vmatpush1.msra.mxu0 0.0
        %2452 = vmatprep.subr.mxu0 0.0
        %2453 = vmatpush1.msra.mxu0 %v2418
        %2454 = vmatprep.subr.mxu0 0.0
        %2455 = vmatpush2.msra.mxu0 0.0
        %2456 = vmatprep.subr.mxu0 0.0
        %2457 = vmatpush2.msra.mxu0 0.0
        %2458 = vmatprep.subr.mxu0 0.0
        %2459 = vmatpush2.msra.mxu0 0.0
        %2460 = vmatprep.subr.mxu0 0.0
        %2461 = vmatpush2.msra.mxu0 0.0
        %2462 = vmatprep.subr.mxu0 0.0
        %2463 = vmatpush2.msra.mxu0 0.0
        %2464 = vmatprep.subr.mxu0 0.0
        %2465 = vmatpush2.msra.mxu0 0.0
        %2466 = vmatprep.subr.mxu0 0.0
        %2467 = vmatpush2.msra.mxu0 0.0
        %2468 = vmatprep.subr.mxu0 0.0
        %2469 = vmatpush2.msra.mxu0 0.0
        %2470 = vmatprep.subr.mxu0 0.0
        %2471 = vmatpush2.msra.mxu0 0.0
        %2472 = vmatprep.subr.mxu0 0.0
        %2473 = vmatpush2.msra.mxu0 0.0
        %2474 = vmatprep.subr.mxu0 0.0
        %2475 = vmatpush2.msra.mxu0 0.0
        %2476 = vmatprep.subr.mxu0 0.0
        %2477 = vmatpush2.msra.mxu0 0.0
        %2478 = vmatprep.subr.mxu0 0.0
        %2479 = vmatpush2.msra.mxu0 0.0
        %2480 = vmatprep.subr.mxu0 0.0
        %2481 = vmatpush2.msra.mxu0 0.0
        %2482 = vmatprep.subr.mxu0 0.0
        %2483 = vmatpush2.msra.mxu0 0.0
        %2484 = vmatprep.subr.mxu0 0.0
        %2485 = vmatpush2.msra.mxu0 0.0
        %2486 = vmatprep.mubr.f32.mxu0 0.0
        %2487 = vmatmul.mubr.f32.gmra.mxu0 %v2420
        %v2488 = vpop.f32.mrf.mxu0
        %v2489 = vadd.f32 0.0, %v2488
        %v2490 = vpop.f32.mrf.mxu0
        %2491 = vdwg.mxu0
        %2493 = vset.pattern.permute.xlu0 0
        %2494 = vperm.xlu0 %2493, %v2338
        %v2495 = vpop.permute.xlu0 %2494
        %2498 = vset.pattern.permute.xlu0 0
        %2499 = vperm.xlu0 %2498, %v2343
        %v2500 = vpop.permute.xlu0 %2499
        %2503 = vset.pattern.permute.xlu0 0
        %2504 = vperm.xlu0 %2503, %v2348
        %v2505 = vpop.permute.xlu0 %2504
        %2508 = vset.pattern.permute.xlu0 0
        %2509 = vperm.xlu0 %2508, %v2353
        %v2510 = vpop.permute.xlu0 %2509
        %2513 = vset.pattern.permute.xlu0 0
        %2514 = vperm.xlu0 %2513, %v2358
        %v2515 = vpop.permute.xlu0 %2514
        %2518 = vset.pattern.permute.xlu0 0
        %2519 = vperm.xlu0 %2518, %v2363
        %v2520 = vpop.permute.xlu0 %2519
        %2523 = vset.pattern.permute.xlu0 0
        %2524 = vperm.xlu0 %2523, %v2368
        %v2525 = vpop.permute.xlu0 %2524
        %2528 = vset.pattern.permute.xlu0 0
        %2529 = vperm.xlu0 %2528, %v2373
        %v2530 = vpop.permute.xlu0 %2529
        %2533 = vset.pattern.permute.xlu0 0
        %2534 = vperm.xlu0 %2533, %v2378
        %v2535 = vpop.permute.xlu0 %2534
        %2538 = vset.pattern.permute.xlu0 0
        %2539 = vperm.xlu0 %2538, %v2383
        %v2540 = vpop.permute.xlu0 %2539
        %2543 = vset.pattern.permute.xlu0 0
        %2544 = vperm.xlu0 %2543, %v2388
        %v2545 = vpop.permute.xlu0 %2544
        %2548 = vset.pattern.permute.xlu0 0
        %2549 = vperm.xlu0 %2548, %v2393
        %v2550 = vpop.permute.xlu0 %2549
        %2553 = vset.pattern.permute.xlu0 0
        %2554 = vperm.xlu0 %2553, %v2398
        %v2555 = vpop.permute.xlu0 %2554
        %2558 = vset.pattern.permute.xlu0 0
        %2559 = vperm.xlu0 %2558, %v2403
        %v2560 = vpop.permute.xlu0 %2559
        %2563 = vset.pattern.permute.xlu0 0
        %2564 = vperm.xlu0 %2563, %v2408
        %v2565 = vpop.permute.xlu0 %2564
        %2568 = vset.pattern.permute.xlu0 0
        %2569 = vperm.xlu0 %2568, %v2413
        %v2570 = vpop.permute.xlu0 %2569
        %v2572 = vlaneseq
        %v2573 = vshrl.u32 %v2572, 7
        %v2574 = vsub.s32 0, %v2573
        %v2575 = vrot.slane %v2489, %v2574
        %v2576 = vadd.f32 %v2495, %v2575
        %v2577 = vadd.f32 %v2500, %v2575
        %v2578 = vadd.f32 %v2505, %v2575
        %v2579 = vadd.f32 %v2510, %v2575
        %v2580 = vadd.f32 %v2515, %v2575
        %v2581 = vadd.f32 %v2520, %v2575
        %v2582 = vadd.f32 %v2525, %v2575
        %v2583 = vadd.f32 %v2530, %v2575
        %v2584 = vadd.f32 %v2535, %v2575
        %v2585 = vadd.f32 %v2540, %v2575
        %v2586 = vadd.f32 %v2545, %v2575
        %v2587 = vadd.f32 %v2550, %v2575
        %v2588 = vadd.f32 %v2555, %v2575
        %v2589 = vadd.f32 %v2560, %v2575
        %v2590 = vadd.f32 %v2565, %v2575
        %v2591 = vadd.f32 %v2570, %v2575
        %v2592 = vmul.f32 %v2576, 0.2
        %v2593 = vmul.f32 %v2577, 0.2
        %v2594 = vmul.f32 %v2578, 0.2
        %v2595 = vmul.f32 %v2579, 0.2
        %v2596 = vmul.f32 %v2580, 0.2
        %v2597 = vmul.f32 %v2581, 0.2
        %v2598 = vmul.f32 %v2582, 0.2
        %v2599 = vmul.f32 %v2583, 0.2
        %v2600 = vmul.f32 %v2584, 0.2
        %v2601 = vmul.f32 %v2585, 0.2
        %v2602 = vmul.f32 %v2586, 0.2
        %v2603 = vmul.f32 %v2587, 0.2
        %v2604 = vmul.f32 %v2588, 0.2
        %v2605 = vmul.f32 %v2589, 0.2
        %v2606 = vmul.f32 %v2590, 0.2
        %v2607 = vmul.f32 %v2591, 0.2
        %v2608 = vmax.f32 %v2576, %v2592
        %v2609 = vmax.f32 %v2577, %v2593
        %v2610 = vmax.f32 %v2578, %v2594
        %v2611 = vmax.f32 %v2579, %v2595
        %v2612 = vmax.f32 %v2580, %v2596
        %v2613 = vmax.f32 %v2581, %v2597
        %v2614 = vmax.f32 %v2582, %v2598
        %v2615 = vmax.f32 %v2583, %v2599
        %v2616 = vmax.f32 %v2584, %v2600
        %v2617 = vmax.f32 %v2585, %v2601
        %v2618 = vmax.f32 %v2586, %v2602
        %v2619 = vmax.f32 %v2587, %v2603
        %v2620 = vmax.f32 %v2588, %v2604
        %v2621 = vmax.f32 %v2589, %v2605
        %v2622 = vmax.f32 %v2590, %v2606
        %v2623 = vmax.f32 %v2591, %v2607
        %v2624 = vadd.f32 %v2608, %v724
        %v2625 = vadd.f32 %v2609, %v725
        %v2626 = vadd.f32 %v2610, %v726
        %v2627 = vadd.f32 %v2611, %v727
        %v2628 = vadd.f32 %v2612, %v728
        %v2629 = vadd.f32 %v2613, %v729
        %v2630 = vadd.f32 %v2614, %v730
        %v2631 = vadd.f32 %v2615, %v731
        %v2632 = vadd.f32 %v2616, %v732
        %v2633 = vadd.f32 %v2617, %v733
        %v2634 = vadd.f32 %v2618, %v734
        %v2635 = vadd.f32 %v2619, %v735
        %v2636 = vadd.f32 %v2620, %v736
        %v2637 = vadd.f32 %v2621, %v737
        %v2638 = vadd.f32 %v2622, %v738
        %v2639 = vadd.f32 %v2623, %v739
        %s2640 = scalar_lea.vmem [#allocation2], 128
        %v2641 = vld [vmem:[%s2640] sm:$0xff]
        %v2642 = vld [vmem:[%s2640 + $0x8] sm:$0xff]
        %v2643 = vld [vmem:[%s2640 + $0x10] sm:$0xff]
        %v2644 = vld [vmem:[%s2640 + $0x18] sm:$0xff]
        %v2645 = vld [vmem:[%s2640 + $0x20] sm:$0xff]
        %v2646 = vld [vmem:[%s2640 + $0x28] sm:$0xff]
        %v2647 = vld [vmem:[%s2640 + $0x30] sm:$0xff]
        %v2648 = vld [vmem:[%s2640 + $0x38] sm:$0xff]
        %v2649 = vld [vmem:[%s2640 + $0x40] sm:$0xff]
        %v2650 = vld [vmem:[%s2640 + $0x48] sm:$0xff]
        %v2651 = vld [vmem:[%s2640 + $0x50] sm:$0xff]
        %v2652 = vld [vmem:[%s2640 + $0x58] sm:$0xff]
        %v2653 = vld [vmem:[%s2640 + $0x60] sm:$0xff]
        %v2654 = vld [vmem:[%s2640 + $0x68] sm:$0xff]
        %v2655 = vld [vmem:[%s2640 + $0x70] sm:$0xff]
        %v2656 = vld [vmem:[%s2640 + $0x78] sm:$0xff]
        %2657 = vmax.xlane.f32.xlu0 %v2624
        %v2658 = vpop.xlane.xlu0 %2657
        %2659 = vmax.xlane.f32.xlu0 %v2625
        %v2660 = vpop.xlane.xlu0 %2659
        %2661 = vmax.xlane.f32.xlu0 %v2626
        %v2662 = vpop.xlane.xlu0 %2661
        %2663 = vmax.xlane.f32.xlu0 %v2627
        %v2664 = vpop.xlane.xlu0 %2663
        %2665 = vmax.xlane.f32.xlu0 %v2628
        %v2666 = vpop.xlane.xlu0 %2665
        %2667 = vmax.xlane.f32.xlu0 %v2629
        %v2668 = vpop.xlane.xlu0 %2667
        %2669 = vmax.xlane.f32.xlu0 %v2630
        %v2670 = vpop.xlane.xlu0 %2669
        %2671 = vmax.xlane.f32.xlu0 %v2631
        %v2672 = vpop.xlane.xlu0 %2671
        %2673 = vmax.xlane.f32.xlu0 %v2632
        %v2674 = vpop.xlane.xlu0 %2673
        %2675 = vmax.xlane.f32.xlu0 %v2633
        %v2676 = vpop.xlane.xlu0 %2675
        %2677 = vmax.xlane.f32.xlu0 %v2634
        %v2678 = vpop.xlane.xlu0 %2677
        %2679 = vmax.xlane.f32.xlu0 %v2635
        %v2680 = vpop.xlane.xlu0 %2679
        %2681 = vmax.xlane.f32.xlu0 %v2636
        %v2682 = vpop.xlane.xlu0 %2681
        %2683 = vmax.xlane.f32.xlu0 %v2637
        %v2684 = vpop.xlane.xlu0 %2683
        %2685 = vmax.xlane.f32.xlu0 %v2638
        %v2686 = vpop.xlane.xlu0 %2685
        %2687 = vmax.xlane.f32.xlu0 %v2639
        %v2688 = vpop.xlane.xlu0 %2687
        %v2689 = vmax.f32 %v2641, %v2658
        %v2690 = vmax.f32 %v2642, %v2660
        %v2691 = vmax.f32 %v2643, %v2662
        %v2692 = vmax.f32 %v2644, %v2664
        %v2693 = vmax.f32 %v2645, %v2666
        %v2694 = vmax.f32 %v2646, %v2668
        %v2695 = vmax.f32 %v2647, %v2670
        %v2696 = vmax.f32 %v2648, %v2672
        %v2697 = vmax.f32 %v2649, %v2674
        %v2698 = vmax.f32 %v2650, %v2676
        %v2699 = vmax.f32 %v2651, %v2678
        %v2700 = vmax.f32 %v2652, %v2680
        %v2701 = vmax.f32 %v2653, %v2682
        %v2702 = vmax.f32 %v2654, %v2684
        %v2703 = vmax.f32 %v2655, %v2686
        %v2704 = vmax.f32 %v2656, %v2688
        %v2705 = vsub.f32 %v2641, %v2689
        %v2706 = vsub.f32 %v2642, %v2690
        %v2707 = vsub.f32 %v2643, %v2691
        %v2708 = vsub.f32 %v2644, %v2692
        %v2709 = vsub.f32 %v2645, %v2693
        %v2710 = vsub.f32 %v2646, %v2694
        %v2711 = vsub.f32 %v2647, %v2695
        %v2712 = vsub.f32 %v2648, %v2696
        %v2713 = vsub.f32 %v2649, %v2697
        %v2714 = vsub.f32 %v2650, %v2698
        %v2715 = vsub.f32 %v2651, %v2699
        %v2716 = vsub.f32 %v2652, %v2700
        %v2717 = vsub.f32 %v2653, %v2701
        %v2718 = vsub.f32 %v2654, %v2702
        %v2719 = vsub.f32 %v2655, %v2703
        %v2720 = vsub.f32 %v2656, %v2704
        %v2721 = vmul.f32 %v2705, 1.442695
        %v2722 = vpow.pop %v2721
        %v2723 = vmul.f32 %v2706, 1.442695
        %v2724 = vpow.pop %v2723
        %v2725 = vmul.f32 %v2707, 1.442695
        %v2726 = vpow.pop %v2725
        %v2727 = vmul.f32 %v2708, 1.442695
        %v2728 = vpow.pop %v2727
        %v2729 = vmul.f32 %v2709, 1.442695
        %v2730 = vpow.pop %v2729
        %v2731 = vmul.f32 %v2710, 1.442695
        %v2732 = vpow.pop %v2731
        %v2733 = vmul.f32 %v2711, 1.442695
        %v2734 = vpow.pop %v2733
        %v2735 = vmul.f32 %v2712, 1.442695
        %v2736 = vpow.pop %v2735
        %v2737 = vmul.f32 %v2713, 1.442695
        %v2738 = vpow.pop %v2737
        %v2739 = vmul.f32 %v2714, 1.442695
        %v2740 = vpow.pop %v2739
        %v2741 = vmul.f32 %v2715, 1.442695
        %v2742 = vpow.pop %v2741
        %v2743 = vmul.f32 %v2716, 1.442695
        %v2744 = vpow.pop %v2743
        %v2745 = vmul.f32 %v2717, 1.442695
        %v2746 = vpow.pop %v2745
        %v2747 = vmul.f32 %v2718, 1.442695
        %v2748 = vpow.pop %v2747
        %v2749 = vmul.f32 %v2719, 1.442695
        %v2750 = vpow.pop %v2749
        %v2751 = vmul.f32 %v2720, 1.442695
        %v2752 = vpow.pop %v2751
        %2754 = vset.pattern.permute.xlu0 0
        %2755 = vperm.xlu0 %2754, %v2689
        %v2756 = vpop.permute.xlu0 %2755
        %2759 = vset.pattern.permute.xlu0 0
        %2760 = vperm.xlu0 %2759, %v2690
        %v2761 = vpop.permute.xlu0 %2760
        %2764 = vset.pattern.permute.xlu0 0
        %2765 = vperm.xlu0 %2764, %v2691
        %v2766 = vpop.permute.xlu0 %2765
        %2769 = vset.pattern.permute.xlu0 0
        %2770 = vperm.xlu0 %2769, %v2692
        %v2771 = vpop.permute.xlu0 %2770
        %2774 = vset.pattern.permute.xlu0 0
        %2775 = vperm.xlu0 %2774, %v2693
        %v2776 = vpop.permute.xlu0 %2775
        %2779 = vset.pattern.permute.xlu0 0
        %2780 = vperm.xlu0 %2779, %v2694
        %v2781 = vpop.permute.xlu0 %2780
        %2784 = vset.pattern.permute.xlu0 0
        %2785 = vperm.xlu0 %2784, %v2695
        %v2786 = vpop.permute.xlu0 %2785
        %2789 = vset.pattern.permute.xlu0 0
        %2790 = vperm.xlu0 %2789, %v2696
        %v2791 = vpop.permute.xlu0 %2790
        %2794 = vset.pattern.permute.xlu0 0
        %2795 = vperm.xlu0 %2794, %v2697
        %v2796 = vpop.permute.xlu0 %2795
        %2799 = vset.pattern.permute.xlu0 0
        %2800 = vperm.xlu0 %2799, %v2698
        %v2801 = vpop.permute.xlu0 %2800
        %2804 = vset.pattern.permute.xlu0 0
        %2805 = vperm.xlu0 %2804, %v2699
        %v2806 = vpop.permute.xlu0 %2805
        %2809 = vset.pattern.permute.xlu0 0
        %2810 = vperm.xlu0 %2809, %v2700
        %v2811 = vpop.permute.xlu0 %2810
        %2814 = vset.pattern.permute.xlu0 0
        %2815 = vperm.xlu0 %2814, %v2701
        %v2816 = vpop.permute.xlu0 %2815
        %2819 = vset.pattern.permute.xlu0 0
        %2820 = vperm.xlu0 %2819, %v2702
        %v2821 = vpop.permute.xlu0 %2820
        %2824 = vset.pattern.permute.xlu0 0
        %2825 = vperm.xlu0 %2824, %v2703
        %v2826 = vpop.permute.xlu0 %2825
        %2829 = vset.pattern.permute.xlu0 0
        %2830 = vperm.xlu0 %2829, %v2704
        %v2831 = vpop.permute.xlu0 %2830
        %v2833 = vsub.f32 %v2624, %v2756
        %v2834 = vsub.f32 %v2625, %v2761
        %v2835 = vsub.f32 %v2626, %v2766
        %v2836 = vsub.f32 %v2627, %v2771
        %v2837 = vsub.f32 %v2628, %v2776
        %v2838 = vsub.f32 %v2629, %v2781
        %v2839 = vsub.f32 %v2630, %v2786
        %v2840 = vsub.f32 %v2631, %v2791
        %v2841 = vsub.f32 %v2632, %v2796
        %v2842 = vsub.f32 %v2633, %v2801
        %v2843 = vsub.f32 %v2634, %v2806
        %v2844 = vsub.f32 %v2635, %v2811
        %v2845 = vsub.f32 %v2636, %v2816
        %v2846 = vsub.f32 %v2637, %v2821
        %v2847 = vsub.f32 %v2638, %v2826
        %v2848 = vsub.f32 %v2639, %v2831
        %v2849 = vmul.f32 %v2833, 1.442695
        %v2850 = vpow.pop %v2849
        %v2851 = vmul.f32 %v2834, 1.442695
        %v2852 = vpow.pop %v2851
        %v2853 = vmul.f32 %v2835, 1.442695
        %v2854 = vpow.pop %v2853
        %v2855 = vmul.f32 %v2836, 1.442695
        %v2856 = vpow.pop %v2855
        %v2857 = vmul.f32 %v2837, 1.442695
        %v2858 = vpow.pop %v2857
        %v2859 = vmul.f32 %v2838, 1.442695
        %v2860 = vpow.pop %v2859
        %v2861 = vmul.f32 %v2839, 1.442695
        %v2862 = vpow.pop %v2861
        %v2863 = vmul.f32 %v2840, 1.442695
        %v2864 = vpow.pop %v2863
        %v2865 = vmul.f32 %v2841, 1.442695
        %v2866 = vpow.pop %v2865
        %v2867 = vmul.f32 %v2842, 1.442695
        %v2868 = vpow.pop %v2867
        %v2869 = vmul.f32 %v2843, 1.442695
        %v2870 = vpow.pop %v2869
        %v2871 = vmul.f32 %v2844, 1.442695
        %v2872 = vpow.pop %v2871
        %v2873 = vmul.f32 %v2845, 1.442695
        %v2874 = vpow.pop %v2873
        %v2875 = vmul.f32 %v2846, 1.442695
        %v2876 = vpow.pop %v2875
        %v2877 = vmul.f32 %v2847, 1.442695
        %v2878 = vpow.pop %v2877
        %v2879 = vmul.f32 %v2848, 1.442695
        %v2880 = vpow.pop %v2879
        %v2881 = vmul.f32 %v2850, %v692
        %v2882 = vmul.f32 %v2852, %v693
        %v2883 = vmul.f32 %v2854, %v694
        %v2884 = vmul.f32 %v2856, %v695
        %v2885 = vmul.f32 %v2858, %v696
        %v2886 = vmul.f32 %v2860, %v697
        %v2887 = vmul.f32 %v2862, %v698
        %v2888 = vmul.f32 %v2864, %v699
        %v2889 = vmul.f32 %v2866, %v700
        %v2890 = vmul.f32 %v2868, %v701
        %v2891 = vmul.f32 %v2870, %v702
        %v2892 = vmul.f32 %v2872, %v703
        %v2893 = vmul.f32 %v2874, %v704
        %v2894 = vmul.f32 %v2876, %v705
        %v2895 = vmul.f32 %v2878, %v706
        %v2896 = vmul.f32 %v2880, %v707
        %s2897 = scalar_lea.vmem [#allocation3], 128
        %v2898 = vld [vmem:[%s2897] sm:$0xff]
        %v2899 = vld [vmem:[%s2897 + $0x8] sm:$0xff]
        %v2900 = vld [vmem:[%s2897 + $0x10] sm:$0xff]
        %v2901 = vld [vmem:[%s2897 + $0x18] sm:$0xff]
        %v2902 = vld [vmem:[%s2897 + $0x20] sm:$0xff]
        %v2903 = vld [vmem:[%s2897 + $0x28] sm:$0xff]
        %v2904 = vld [vmem:[%s2897 + $0x30] sm:$0xff]
        %v2905 = vld [vmem:[%s2897 + $0x38] sm:$0xff]
        %v2906 = vld [vmem:[%s2897 + $0x40] sm:$0xff]
        %v2907 = vld [vmem:[%s2897 + $0x48] sm:$0xff]
        %v2908 = vld [vmem:[%s2897 + $0x50] sm:$0xff]
        %v2909 = vld [vmem:[%s2897 + $0x58] sm:$0xff]
        %v2910 = vld [vmem:[%s2897 + $0x60] sm:$0xff]
        %v2911 = vld [vmem:[%s2897 + $0x68] sm:$0xff]
        %v2912 = vld [vmem:[%s2897 + $0x70] sm:$0xff]
        %v2913 = vld [vmem:[%s2897 + $0x78] sm:$0xff]
        %v2914 = vmul.f32 %v2722, %v2898
        %v2915 = vmul.f32 %v2724, %v2899
        %v2916 = vmul.f32 %v2726, %v2900
        %v2917 = vmul.f32 %v2728, %v2901
        %v2918 = vmul.f32 %v2730, %v2902
        %v2919 = vmul.f32 %v2732, %v2903
        %v2920 = vmul.f32 %v2734, %v2904
        %v2921 = vmul.f32 %v2736, %v2905
        %v2922 = vmul.f32 %v2738, %v2906
        %v2923 = vmul.f32 %v2740, %v2907
        %v2924 = vmul.f32 %v2742, %v2908
        %v2925 = vmul.f32 %v2744, %v2909
        %v2926 = vmul.f32 %v2746, %v2910
        %v2927 = vmul.f32 %v2748, %v2911
        %v2928 = vmul.f32 %v2750, %v2912
        %v2929 = vmul.f32 %v2752, %v2913
        %2930 = vadd.xlane.f32.xlu0 %v2881
        %v2931 = vpop.xlane.xlu0 %2930
        %2932 = vadd.xlane.f32.xlu0 %v2882
        %v2933 = vpop.xlane.xlu0 %2932
        %2934 = vadd.xlane.f32.xlu0 %v2883
        %v2935 = vpop.xlane.xlu0 %2934
        %2936 = vadd.xlane.f32.xlu0 %v2884
        %v2937 = vpop.xlane.xlu0 %2936
        %2938 = vadd.xlane.f32.xlu0 %v2885
        %v2939 = vpop.xlane.xlu0 %2938
        %2940 = vadd.xlane.f32.xlu0 %v2886
        %v2941 = vpop.xlane.xlu0 %2940
        %2942 = vadd.xlane.f32.xlu0 %v2887
        %v2943 = vpop.xlane.xlu0 %2942
        %2944 = vadd.xlane.f32.xlu0 %v2888
        %v2945 = vpop.xlane.xlu0 %2944
        %2946 = vadd.xlane.f32.xlu0 %v2889
        %v2947 = vpop.xlane.xlu0 %2946
        %2948 = vadd.xlane.f32.xlu0 %v2890
        %v2949 = vpop.xlane.xlu0 %2948
        %2950 = vadd.xlane.f32.xlu0 %v2891
        %v2951 = vpop.xlane.xlu0 %2950
        %2952 = vadd.xlane.f32.xlu0 %v2892
        %v2953 = vpop.xlane.xlu0 %2952
        %2954 = vadd.xlane.f32.xlu0 %v2893
        %v2955 = vpop.xlane.xlu0 %2954
        %2956 = vadd.xlane.f32.xlu0 %v2894
        %v2957 = vpop.xlane.xlu0 %2956
        %2958 = vadd.xlane.f32.xlu0 %v2895
        %v2959 = vpop.xlane.xlu0 %2958
        %2960 = vadd.xlane.f32.xlu0 %v2896
        %v2961 = vpop.xlane.xlu0 %2960
        %v2962 = vadd.f32 %v2914, %v2931
        %v2963 = vadd.f32 %v2915, %v2933
        %v2964 = vadd.f32 %v2916, %v2935
        %v2965 = vadd.f32 %v2917, %v2937
        %v2966 = vadd.f32 %v2918, %v2939
        %v2967 = vadd.f32 %v2919, %v2941
        %v2968 = vadd.f32 %v2920, %v2943
        %v2969 = vadd.f32 %v2921, %v2945
        %v2970 = vadd.f32 %v2922, %v2947
        %v2971 = vadd.f32 %v2923, %v2949
        %v2972 = vadd.f32 %v2924, %v2951
        %v2973 = vadd.f32 %v2925, %v2953
        %v2974 = vadd.f32 %v2926, %v2955
        %v2975 = vadd.f32 %v2927, %v2957
        %v2976 = vadd.f32 %v2928, %v2959
        %v2977 = vadd.f32 %v2929, %v2961
        %2978 = vst.msk [vmem:[%s2897] sm:$0xff] %vm1883, %v2962
        %2979 = vst.msk [vmem:[%s2897 + $0x8] sm:$0xff] %vm1883, %v2963
        %2980 = vst.msk [vmem:[%s2897 + $0x10] sm:$0xff] %vm1883, %v2964
        %2981 = vst.msk [vmem:[%s2897 + $0x18] sm:$0xff] %vm1883, %v2965
        %2982 = vst.msk [vmem:[%s2897 + $0x20] sm:$0xff] %vm1883, %v2966
        %2983 = vst.msk [vmem:[%s2897 + $0x28] sm:$0xff] %vm1883, %v2967
        %2984 = vst.msk [vmem:[%s2897 + $0x30] sm:$0xff] %vm1883, %v2968
        %2985 = vst.msk [vmem:[%s2897 + $0x38] sm:$0xff] %vm1883, %v2969
        %2986 = vst.msk [vmem:[%s2897 + $0x40] sm:$0xff] %vm1883, %v2970
        %2987 = vst.msk [vmem:[%s2897 + $0x48] sm:$0xff] %vm1883, %v2971
        %2988 = vst.msk [vmem:[%s2897 + $0x50] sm:$0xff] %vm1883, %v2972
        %2989 = vst.msk [vmem:[%s2897 + $0x58] sm:$0xff] %vm1883, %v2973
        %2990 = vst.msk [vmem:[%s2897 + $0x60] sm:$0xff] %vm1883, %v2974
        %2991 = vst.msk [vmem:[%s2897 + $0x68] sm:$0xff] %vm1883, %v2975
        %2992 = vst.msk [vmem:[%s2897 + $0x70] sm:$0xff] %vm1883, %v2976
        %2993 = vst.msk [vmem:[%s2897 + $0x78] sm:$0xff] %vm1883, %v2977
        %v2994 = vld [vmem:[#allocation4 + $0x8] sm:$0xff]
        %v2995 = vld [vmem:[#allocation4 + $0x20] sm:$0xff]
        %v2996 = vld [vmem:[#allocation4 + $0x38] sm:$0xff]
        %v2997 = vld [vmem:[#allocation4 + $0x50] sm:$0xff]
        %v2998 = vld [vmem:[#allocation4 + $0x68] sm:$0xff]
        %v2999 = vld [vmem:[#allocation4 + $0x80] sm:$0xff]
        %v3000 = vld [vmem:[#allocation4 + $0x98] sm:$0xff]
        %v3001 = vld [vmem:[#allocation4 + $0xb0] sm:$0xff]
        %v3002 = vld [vmem:[#allocation4 + $0xc8] sm:$0xff]
        %v3003 = vld [vmem:[#allocation4 + $0xe0] sm:$0xff]
        %v3004 = vld [vmem:[#allocation4 + $0xf8] sm:$0xff]
        %v3005 = vld [vmem:[#allocation4 + $0x110] sm:$0xff]
        %v3006 = vld [vmem:[#allocation4 + $0x128] sm:$0xff]
        %v3007 = vld [vmem:[#allocation4 + $0x140] sm:$0xff]
        %v3008 = vld [vmem:[#allocation4 + $0x158] sm:$0xff]
        %v3009 = vld [vmem:[#allocation4 + $0x170] sm:$0xff]
        %3011 = vset.pattern.permute.xlu0 0
        %3012 = vperm.xlu0 %3011, %v2722
        %v3013 = vpop.permute.xlu0 %3012
        %3016 = vset.pattern.permute.xlu0 0
        %3017 = vperm.xlu0 %3016, %v2724
        %v3018 = vpop.permute.xlu0 %3017
        %3021 = vset.pattern.permute.xlu0 0
        %3022 = vperm.xlu0 %3021, %v2726
        %v3023 = vpop.permute.xlu0 %3022
        %3026 = vset.pattern.permute.xlu0 0
        %3027 = vperm.xlu0 %3026, %v2728
        %v3028 = vpop.permute.xlu0 %3027
        %3031 = vset.pattern.permute.xlu0 0
        %3032 = vperm.xlu0 %3031, %v2730
        %v3033 = vpop.permute.xlu0 %3032
        %3036 = vset.pattern.permute.xlu0 0
        %3037 = vperm.xlu0 %3036, %v2732
        %v3038 = vpop.permute.xlu0 %3037
        %3041 = vset.pattern.permute.xlu0 0
        %3042 = vperm.xlu0 %3041, %v2734
        %v3043 = vpop.permute.xlu0 %3042
        %3046 = vset.pattern.permute.xlu0 0
        %3047 = vperm.xlu0 %3046, %v2736
        %v3048 = vpop.permute.xlu0 %3047
        %3051 = vset.pattern.permute.xlu0 0
        %3052 = vperm.xlu0 %3051, %v2738
        %v3053 = vpop.permute.xlu0 %3052
        %3056 = vset.pattern.permute.xlu0 0
        %3057 = vperm.xlu0 %3056, %v2740
        %v3058 = vpop.permute.xlu0 %3057
        %3061 = vset.pattern.permute.xlu0 0
        %3062 = vperm.xlu0 %3061, %v2742
        %v3063 = vpop.permute.xlu0 %3062
        %3066 = vset.pattern.permute.xlu0 0
        %3067 = vperm.xlu0 %3066, %v2744
        %v3068 = vpop.permute.xlu0 %3067
        %3071 = vset.pattern.permute.xlu0 0
        %3072 = vperm.xlu0 %3071, %v2746
        %v3073 = vpop.permute.xlu0 %3072
        %3076 = vset.pattern.permute.xlu0 0
        %3077 = vperm.xlu0 %3076, %v2748
        %v3078 = vpop.permute.xlu0 %3077
        %3081 = vset.pattern.permute.xlu0 0
        %3082 = vperm.xlu0 %3081, %v2750
        %v3083 = vpop.permute.xlu0 %3082
        %3086 = vset.pattern.permute.xlu0 0
        %3087 = vperm.xlu0 %3086, %v2752
        %v3088 = vpop.permute.xlu0 %3087
        %v3090 = vmul.f32 %v3013, %v2994
        %v3091 = vmul.f32 %v3018, %v2995
        %v3092 = vmul.f32 %v3023, %v2996
        %v3093 = vmul.f32 %v3028, %v2997
        %v3094 = vmul.f32 %v3033, %v2998
        %v3095 = vmul.f32 %v3038, %v2999
        %v3096 = vmul.f32 %v3043, %v3000
        %v3097 = vmul.f32 %v3048, %v3001
        %v3098 = vmul.f32 %v3053, %v3002
        %v3099 = vmul.f32 %v3058, %v3003
        %v3100 = vmul.f32 %v3063, %v3004
        %v3101 = vmul.f32 %v3068, %v3005
        %v3102 = vmul.f32 %v3073, %v3006
        %v3103 = vmul.f32 %v3078, %v3007
        %v3104 = vmul.f32 %v3083, %v3008
        %v3105 = vmul.f32 %v3088, %v3009
        %3106 = vmatprep.subr.mxu0 0.0
        %3107 = vmatpush1.msra.mxu0 %v967
        %3108 = vmatprep.subr.mxu0 0.0
        %3109 = vmatpush1.msra.mxu0 %v961
        %3110 = vmatprep.subr.mxu0 0.0
        %3111 = vmatpush1.msra.mxu0 %v955
        %3112 = vmatprep.subr.mxu0 0.0
        %3113 = vmatpush1.msra.mxu0 %v949
        %3114 = vmatprep.subr.mxu0 0.0
        %3115 = vmatpush1.msra.mxu0 %v943
        %3116 = vmatprep.subr.mxu0 0.0
        %3117 = vmatpush1.msra.mxu0 %v937
        %3118 = vmatprep.subr.mxu0 0.0
        %3119 = vmatpush1.msra.mxu0 %v931
        %3120 = vmatprep.subr.mxu0 0.0
        %3121 = vmatpush1.msra.mxu0 %v925
        %3122 = vmatprep.subr.mxu0 0.0
        %3123 = vmatpush1.msra.mxu0 %v919
        %3124 = vmatprep.subr.mxu0 0.0
        %3125 = vmatpush1.msra.mxu0 %v913
        %3126 = vmatprep.subr.mxu0 0.0
        %3127 = vmatpush1.msra.mxu0 %v907
        %3128 = vmatprep.subr.mxu0 0.0
        %3129 = vmatpush1.msra.mxu0 %v901
        %3130 = vmatprep.subr.mxu0 0.0
        %3131 = vmatpush1.msra.mxu0 %v895
        %3132 = vmatprep.subr.mxu0 0.0
        %3133 = vmatpush1.msra.mxu0 %v889
        %3134 = vmatprep.subr.mxu0 0.0
        %3135 = vmatpush1.msra.mxu0 %v883
        %3136 = vmatprep.subr.mxu0 0.0
        %3137 = vmatpush1.msra.mxu0 %v877
        %3138 = vmatprep.subr.mxu0 0.0
        %3139 = vmatpush2.msra.mxu0 0.0
        %3140 = vmatprep.subr.mxu0 0.0
        %3141 = vmatpush2.msra.mxu0 0.0
        %3142 = vmatprep.subr.mxu0 0.0
        %3143 = vmatpush2.msra.mxu0 0.0
        %3144 = vmatprep.subr.mxu0 0.0
        %3145 = vmatpush2.msra.mxu0 0.0
        %3146 = vmatprep.subr.mxu0 0.0
        %3147 = vmatpush2.msra.mxu0 0.0
        %3148 = vmatprep.subr.mxu0 0.0
        %3149 = vmatpush2.msra.mxu0 0.0
        %3150 = vmatprep.subr.mxu0 0.0
        %3151 = vmatpush2.msra.mxu0 0.0
        %3152 = vmatprep.subr.mxu0 0.0
        %3153 = vmatpush2.msra.mxu0 0.0
        %3154 = vmatprep.subr.mxu0 0.0
        %3155 = vmatpush2.msra.mxu0 0.0
        %3156 = vmatprep.subr.mxu0 0.0
        %3157 = vmatpush2.msra.mxu0 0.0
        %3158 = vmatprep.subr.mxu0 0.0
        %3159 = vmatpush2.msra.mxu0 0.0
        %3160 = vmatprep.subr.mxu0 0.0
        %3161 = vmatpush2.msra.mxu0 0.0
        %3162 = vmatprep.subr.mxu0 0.0
        %3163 = vmatpush2.msra.mxu0 0.0
        %3164 = vmatprep.subr.mxu0 0.0
        %3165 = vmatpush2.msra.mxu0 0.0
        %3166 = vmatprep.subr.mxu0 0.0
        %3167 = vmatpush2.msra.mxu0 0.0
        %3168 = vmatprep.subr.mxu0 0.0
        %3169 = vmatpush2.msra.mxu0 0.0
        %3170 = vmatprep.mubr.f32.mxu0 0.0
        %3171 = vmatmul.mubr.f32.gmra.mxu0 %v2881
        %v3172 = vpop.f32.mrf.mxu0
        %v3173 = vadd.f32 0.0, %v3172
        %v3174 = vpop.f32.mrf.mxu0
        %3175 = vmatprep.mubr.f32.mxu0 0.0
        %3176 = vmatmul.mubr.f32.gmra.mxu0 %v2882
        %v3177 = vpop.f32.mrf.mxu0
        %v3178 = vadd.f32 0.0, %v3177
        %v3179 = vpop.f32.mrf.mxu0
        %3180 = vmatprep.mubr.f32.mxu0 0.0
        %3181 = vmatmul.mubr.f32.gmra.mxu0 %v2883
        %v3182 = vpop.f32.mrf.mxu0
        %v3183 = vadd.f32 0.0, %v3182
        %v3184 = vpop.f32.mrf.mxu0
        %3185 = vmatprep.mubr.f32.mxu0 0.0
        %3186 = vmatmul.mubr.f32.gmra.mxu0 %v2884
        %v3187 = vpop.f32.mrf.mxu0
        %v3188 = vadd.f32 0.0, %v3187
        %v3189 = vpop.f32.mrf.mxu0
        %3190 = vmatprep.mubr.f32.mxu0 0.0
        %3191 = vmatmul.mubr.f32.gmra.mxu0 %v2885
        %v3192 = vpop.f32.mrf.mxu0
        %v3193 = vadd.f32 0.0, %v3192
        %v3194 = vpop.f32.mrf.mxu0
        %3195 = vmatprep.mubr.f32.mxu0 0.0
        %3196 = vmatmul.mubr.f32.gmra.mxu0 %v2886
        %v3197 = vpop.f32.mrf.mxu0
        %v3198 = vadd.f32 0.0, %v3197
        %v3199 = vpop.f32.mrf.mxu0
        %3200 = vmatprep.mubr.f32.mxu0 0.0
        %3201 = vmatmul.mubr.f32.gmra.mxu0 %v2887
        %v3202 = vpop.f32.mrf.mxu0
        %v3203 = vadd.f32 0.0, %v3202
        %v3204 = vpop.f32.mrf.mxu0
        %3205 = vmatprep.mubr.f32.mxu0 0.0
        %3206 = vmatmul.mubr.f32.gmra.mxu0 %v2888
        %v3207 = vpop.f32.mrf.mxu0
        %v3208 = vadd.f32 0.0, %v3207
        %v3209 = vpop.f32.mrf.mxu0
        %3210 = vmatprep.mubr.f32.mxu0 0.0
        %3211 = vmatmul.mubr.f32.gmra.mxu0 %v2889
        %v3212 = vpop.f32.mrf.mxu0
        %v3213 = vadd.f32 0.0, %v3212
        %v3214 = vpop.f32.mrf.mxu0
        %3215 = vmatprep.mubr.f32.mxu0 0.0
        %3216 = vmatmul.mubr.f32.gmra.mxu0 %v2890
        %v3217 = vpop.f32.mrf.mxu0
        %v3218 = vadd.f32 0.0, %v3217
        %v3219 = vpop.f32.mrf.mxu0
        %3220 = vmatprep.mubr.f32.mxu0 0.0
        %3221 = vmatmul.mubr.f32.gmra.mxu0 %v2891
        %v3222 = vpop.f32.mrf.mxu0
        %v3223 = vadd.f32 0.0, %v3222
        %v3224 = vpop.f32.mrf.mxu0
        %3225 = vmatprep.mubr.f32.mxu0 0.0
        %3226 = vmatmul.mubr.f32.gmra.mxu0 %v2892
        %v3227 = vpop.f32.mrf.mxu0
        %v3228 = vadd.f32 0.0, %v3227
        %v3229 = vpop.f32.mrf.mxu0
        %3230 = vmatprep.mubr.f32.mxu0 0.0
        %3231 = vmatmul.mubr.f32.gmra.mxu0 %v2893
        %v3232 = vpop.f32.mrf.mxu0
        %v3233 = vadd.f32 0.0, %v3232
        %v3234 = vpop.f32.mrf.mxu0
        %3235 = vmatprep.mubr.f32.mxu0 0.0
        %3236 = vmatmul.mubr.f32.gmra.mxu0 %v2894
        %v3237 = vpop.f32.mrf.mxu0
        %v3238 = vadd.f32 0.0, %v3237
        %v3239 = vpop.f32.mrf.mxu0
        %3240 = vmatprep.mubr.f32.mxu0 0.0
        %3241 = vmatmul.mubr.f32.gmra.mxu0 %v2895
        %v3242 = vpop.f32.mrf.mxu0
        %v3243 = vadd.f32 0.0, %v3242
        %v3244 = vpop.f32.mrf.mxu0
        %3245 = vmatprep.mubr.f32.mxu0 0.0
        %3246 = vmatmul.mubr.f32.gmra.mxu0 %v2896
        %v3247 = vpop.f32.mrf.mxu0
        %v3248 = vadd.f32 0.0, %v3247
        %v3249 = vpop.f32.mrf.mxu0
        %3250 = vdwg.mxu0
        %v3251 = vadd.f32 %v3090, %v3173
        %v3252 = vadd.f32 %v3091, %v3178
        %v3253 = vadd.f32 %v3092, %v3183
        %v3254 = vadd.f32 %v3093, %v3188
        %v3255 = vadd.f32 %v3094, %v3193
        %v3256 = vadd.f32 %v3095, %v3198
        %v3257 = vadd.f32 %v3096, %v3203
        %v3258 = vadd.f32 %v3097, %v3208
        %v3259 = vadd.f32 %v3098, %v3213
        %v3260 = vadd.f32 %v3099, %v3218
        %v3261 = vadd.f32 %v3100, %v3223
        %v3262 = vadd.f32 %v3101, %v3228
        %v3263 = vadd.f32 %v3102, %v3233
        %v3264 = vadd.f32 %v3103, %v3238
        %v3265 = vadd.f32 %v3104, %v3243
        %v3266 = vadd.f32 %v3105, %v3248
        %3267 = vst [vmem:[#allocation4 + $0x8] sm:$0xff] %v3251
        %3268 = vst [vmem:[#allocation4 + $0x20] sm:$0xff] %v3252
        %3269 = vst [vmem:[#allocation4 + $0x38] sm:$0xff] %v3253
        %3270 = vst [vmem:[#allocation4 + $0x50] sm:$0xff] %v3254
        %3271 = vst [vmem:[#allocation4 + $0x68] sm:$0xff] %v3255
        %3272 = vst [vmem:[#allocation4 + $0x80] sm:$0xff] %v3256
        %3273 = vst [vmem:[#allocation4 + $0x98] sm:$0xff] %v3257
        %3274 = vst [vmem:[#allocation4 + $0xb0] sm:$0xff] %v3258
        %3275 = vst [vmem:[#allocation4 + $0xc8] sm:$0xff] %v3259
        %3276 = vst [vmem:[#allocation4 + $0xe0] sm:$0xff] %v3260
        %3277 = vst [vmem:[#allocation4 + $0xf8] sm:$0xff] %v3261
        %3278 = vst [vmem:[#allocation4 + $0x110] sm:$0xff] %v3262
        %3279 = vst [vmem:[#allocation4 + $0x128] sm:$0xff] %v3263
        %3280 = vst [vmem:[#allocation4 + $0x140] sm:$0xff] %v3264
        %3281 = vst [vmem:[#allocation4 + $0x158] sm:$0xff] %v3265
        %3282 = vst [vmem:[#allocation4 + $0x170] sm:$0xff] %v3266
        %3283 = vst.msk [vmem:[%s2640] sm:$0xff] %vm1883, %v2689
        %3284 = vst.msk [vmem:[%s2640 + $0x8] sm:$0xff] %vm1883, %v2690
        %3285 = vst.msk [vmem:[%s2640 + $0x10] sm:$0xff] %vm1883, %v2691
        %3286 = vst.msk [vmem:[%s2640 + $0x18] sm:$0xff] %vm1883, %v2692
        %3287 = vst.msk [vmem:[%s2640 + $0x20] sm:$0xff] %vm1883, %v2693
        %3288 = vst.msk [vmem:[%s2640 + $0x28] sm:$0xff] %vm1883, %v2694
        %3289 = vst.msk [vmem:[%s2640 + $0x30] sm:$0xff] %vm1883, %v2695
        %3290 = vst.msk [vmem:[%s2640 + $0x38] sm:$0xff] %vm1883, %v2696
        %3291 = vst.msk [vmem:[%s2640 + $0x40] sm:$0xff] %vm1883, %v2697
        %3292 = vst.msk [vmem:[%s2640 + $0x48] sm:$0xff] %vm1883, %v2698
        %3293 = vst.msk [vmem:[%s2640 + $0x50] sm:$0xff] %vm1883, %v2699
        %3294 = vst.msk [vmem:[%s2640 + $0x58] sm:$0xff] %vm1883, %v2700
        %3295 = vst.msk [vmem:[%s2640 + $0x60] sm:$0xff] %vm1883, %v2701
        %3296 = vst.msk [vmem:[%s2640 + $0x68] sm:$0xff] %vm1883, %v2702
        %3297 = vst.msk [vmem:[%s2640 + $0x70] sm:$0xff] %vm1883, %v2703
        %3298 = vst.msk [vmem:[%s2640 + $0x78] sm:$0xff] %vm1883, %v2704
        %v3299 = vld [vmem:[%s499] sm:$0xff]
        %v3300 = vld [vmem:[%s499 + $0x8] sm:$0xff]
        %v3301 = vld [vmem:[%s499 + $0x10] sm:$0xff]
        %v3302 = vld [vmem:[%s499 + $0x18] sm:$0xff]
        %v3303 = vld [vmem:[%s499 + $0x20] sm:$0xff]
        %v3304 = vld [vmem:[%s499 + $0x28] sm:$0xff]
        %v3305 = vld [vmem:[%s499 + $0x30] sm:$0xff]
        %v3306 = vld [vmem:[%s499 + $0x38] sm:$0xff]
        %v3307 = vld [vmem:[%s499 + $0x40] sm:$0xff]
        %v3308 = vld [vmem:[%s499 + $0x48] sm:$0xff]
        %v3309 = vld [vmem:[%s499 + $0x50] sm:$0xff]
        %v3310 = vld [vmem:[%s499 + $0x58] sm:$0xff]
        %v3311 = vld [vmem:[%s499 + $0x60] sm:$0xff]
        %v3312 = vld [vmem:[%s499 + $0x68] sm:$0xff]
        %v3313 = vld [vmem:[%s499 + $0x70] sm:$0xff]
        %v3314 = vld [vmem:[%s499 + $0x78] sm:$0xff]
        %s3315 = scalar_lea.vmem %s5, 16
        %v3316 = vld [vmem:[%s3315] sm:$0xff]
        %v3318 = vsel %vm759, %v3299, 0
        %v3321 = vsel %vm759, %v3300, 0
        %v3324 = vsel %vm759, %v3301, 0
        %v3327 = vsel %vm759, %v3302, 0
        %v3330 = vsel %vm759, %v3303, 0
        %v3333 = vsel %vm759, %v3304, 0
        %v3336 = vsel %vm759, %v3305, 0
        %v3339 = vsel %vm759, %v3306, 0
        %v3342 = vsel %vm759, %v3307, 0
        %v3345 = vsel %vm759, %v3308, 0
        %v3348 = vsel %vm759, %v3309, 0
        %v3351 = vsel %vm759, %v3310, 0
        %v3354 = vsel %vm759, %v3311, 0
        %v3357 = vsel %vm759, %v3312, 0
        %v3360 = vsel %vm759, %v3313, 0
        %v3363 = vsel %vm759, %v3314, 0
        %3365 = vmatprep.subr.mxu0 0.0
        %3366 = vmatpush1.msra.mxu0 0.0
        %3367 = vmatprep.subr.mxu0 0.0
        %3368 = vmatpush1.msra.mxu0 0.0
        %3369 = vmatprep.subr.mxu0 0.0
        %3370 = vmatpush1.msra.mxu0 0.0
        %3371 = vmatprep.subr.mxu0 0.0
        %3372 = vmatpush1.msra.mxu0 0.0
        %3373 = vmatprep.subr.mxu0 0.0
        %3374 = vmatpush1.msra.mxu0 0.0
        %3375 = vmatprep.subr.mxu0 0.0
        %3376 = vmatpush1.msra.mxu0 0.0
        %3377 = vmatprep.subr.mxu0 0.0
        %3378 = vmatpush1.msra.mxu0 0.0
        %3379 = vmatprep.subr.mxu0 0.0
        %3380 = vmatpush1.msra.mxu0 0.0
        %3381 = vmatprep.subr.mxu0 0.0
        %3382 = vmatpush1.msra.mxu0 0.0
        %3383 = vmatprep.subr.mxu0 0.0
        %3384 = vmatpush1.msra.mxu0 0.0
        %3385 = vmatprep.subr.mxu0 0.0
        %3386 = vmatpush1.msra.mxu0 0.0
        %3387 = vmatprep.subr.mxu0 0.0
        %3388 = vmatpush1.msra.mxu0 0.0
        %3389 = vmatprep.subr.mxu0 0.0
        %3390 = vmatpush1.msra.mxu0 0.0
        %3391 = vmatprep.subr.mxu0 0.0
        %3392 = vmatpush1.msra.mxu0 0.0
        %3393 = vmatprep.subr.mxu0 0.0
        %3394 = vmatpush1.msra.mxu0 0.0
        %3395 = vmatprep.subr.mxu0 0.0
        %3396 = vmatpush1.msra.mxu0 %v3316
        %3397 = vmatprep.subr.mxu0 0.0
        %3398 = vmatpush2.msra.mxu0 0.0
        %3399 = vmatprep.subr.mxu0 0.0
        %3400 = vmatpush2.msra.mxu0 0.0
        %3401 = vmatprep.subr.mxu0 0.0
        %3402 = vmatpush2.msra.mxu0 0.0
        %3403 = vmatprep.subr.mxu0 0.0
        %3404 = vmatpush2.msra.mxu0 0.0
        %3405 = vmatprep.subr.mxu0 0.0
        %3406 = vmatpush2.msra.mxu0 0.0
        %3407 = vmatprep.subr.mxu0 0.0
        %3408 = vmatpush2.msra.mxu0 0.0
        %3409 = vmatprep.subr.mxu0 0.0
        %3410 = vmatpush2.msra.mxu0 0.0
        %3411 = vmatprep.subr.mxu0 0.0
        %3412 = vmatpush2.msra.mxu0 0.0
        %3413 = vmatprep.subr.mxu0 0.0
        %3414 = vmatpush2.msra.mxu0 0.0
        %3415 = vmatprep.subr.mxu0 0.0
        %3416 = vmatpush2.msra.mxu0 0.0
        %3417 = vmatprep.subr.mxu0 0.0
        %3418 = vmatpush2.msra.mxu0 0.0
        %3419 = vmatprep.subr.mxu0 0.0
        %3420 = vmatpush2.msra.mxu0 0.0
        %3421 = vmatprep.subr.mxu0 0.0
        %3422 = vmatpush2.msra.mxu0 0.0
        %3423 = vmatprep.subr.mxu0 0.0
        %3424 = vmatpush2.msra.mxu0 0.0
        %3425 = vmatprep.subr.mxu0 0.0
        %3426 = vmatpush2.msra.mxu0 0.0
        %3427 = vmatprep.subr.mxu0 0.0
        %3428 = vmatpush2.msra.mxu0 0.0
        %3429 = vmatprep.mubr.f32.mxu0 0.0
        %3430 = vmatmul.mubr.f32.gmra.mxu0 %v3318
        %v3431 = vpop.f32.mrf.mxu0
        %v3432 = vadd.f32 0.0, %v3431
        %v3433 = vpop.f32.mrf.mxu0
        %3434 = vmatprep.mubr.f32.mxu0 0.0
        %3435 = vmatmul.mubr.f32.gmra.mxu0 %v3321
        %v3436 = vpop.f32.mrf.mxu0
        %v3437 = vadd.f32 0.0, %v3436
        %v3438 = vpop.f32.mrf.mxu0
        %3439 = vmatprep.mubr.f32.mxu0 0.0
        %3440 = vmatmul.mubr.f32.gmra.mxu0 %v3324
        %v3441 = vpop.f32.mrf.mxu0
        %v3442 = vadd.f32 0.0, %v3441
        %v3443 = vpop.f32.mrf.mxu0
        %3444 = vmatprep.mubr.f32.mxu0 0.0
        %3445 = vmatmul.mubr.f32.gmra.mxu0 %v3327
        %v3446 = vpop.f32.mrf.mxu0
        %v3447 = vadd.f32 0.0, %v3446
        %v3448 = vpop.f32.mrf.mxu0
        %3449 = vmatprep.mubr.f32.mxu0 0.0
        %3450 = vmatmul.mubr.f32.gmra.mxu0 %v3330
        %v3451 = vpop.f32.mrf.mxu0
        %v3452 = vadd.f32 0.0, %v3451
        %v3453 = vpop.f32.mrf.mxu0
        %3454 = vmatprep.mubr.f32.mxu0 0.0
        %3455 = vmatmul.mubr.f32.gmra.mxu0 %v3333
        %v3456 = vpop.f32.mrf.mxu0
        %v3457 = vadd.f32 0.0, %v3456
        %v3458 = vpop.f32.mrf.mxu0
        %3459 = vmatprep.mubr.f32.mxu0 0.0
        %3460 = vmatmul.mubr.f32.gmra.mxu0 %v3336
        %v3461 = vpop.f32.mrf.mxu0
        %v3462 = vadd.f32 0.0, %v3461
        %v3463 = vpop.f32.mrf.mxu0
        %3464 = vmatprep.mubr.f32.mxu0 0.0
        %3465 = vmatmul.mubr.f32.gmra.mxu0 %v3339
        %v3466 = vpop.f32.mrf.mxu0
        %v3467 = vadd.f32 0.0, %v3466
        %v3468 = vpop.f32.mrf.mxu0
        %3469 = vmatprep.mubr.f32.mxu0 0.0
        %3470 = vmatmul.mubr.f32.gmra.mxu0 %v3342
        %v3471 = vpop.f32.mrf.mxu0
        %v3472 = vadd.f32 0.0, %v3471
        %v3473 = vpop.f32.mrf.mxu0
        %3474 = vmatprep.mubr.f32.mxu0 0.0
        %3475 = vmatmul.mubr.f32.gmra.mxu0 %v3345
        %v3476 = vpop.f32.mrf.mxu0
        %v3477 = vadd.f32 0.0, %v3476
        %v3478 = vpop.f32.mrf.mxu0
        %3479 = vmatprep.mubr.f32.mxu0 0.0
        %3480 = vmatmul.mubr.f32.gmra.mxu0 %v3348
        %v3481 = vpop.f32.mrf.mxu0
        %v3482 = vadd.f32 0.0, %v3481
        %v3483 = vpop.f32.mrf.mxu0
        %3484 = vmatprep.mubr.f32.mxu0 0.0
        %3485 = vmatmul.mubr.f32.gmra.mxu0 %v3351
        %v3486 = vpop.f32.mrf.mxu0
        %v3487 = vadd.f32 0.0, %v3486
        %v3488 = vpop.f32.mrf.mxu0
        %3489 = vmatprep.mubr.f32.mxu0 0.0
        %3490 = vmatmul.mubr.f32.gmra.mxu0 %v3354
        %v3491 = vpop.f32.mrf.mxu0
        %v3492 = vadd.f32 0.0, %v3491
        %v3493 = vpop.f32.mrf.mxu0
        %3494 = vmatprep.mubr.f32.mxu0 0.0
        %3495 = vmatmul.mubr.f32.gmra.mxu0 %v3357
        %v3496 = vpop.f32.mrf.mxu0
        %v3497 = vadd.f32 0.0, %v3496
        %v3498 = vpop.f32.mrf.mxu0
        %3499 = vmatprep.mubr.f32.mxu0 0.0
        %3500 = vmatmul.mubr.f32.gmra.mxu0 %v3360
        %v3501 = vpop.f32.mrf.mxu0
        %v3502 = vadd.f32 0.0, %v3501
        %v3503 = vpop.f32.mrf.mxu0
        %3504 = vmatprep.mubr.f32.mxu0 0.0
        %3505 = vmatmul.mubr.f32.gmra.mxu0 %v3363
        %v3506 = vpop.f32.mrf.mxu0
        %v3507 = vadd.f32 0.0, %v3506
        %v3508 = vpop.f32.mrf.mxu0
        %3509 = vdwg.mxu0
        %s3510 = scalar_lea.vmem %s4, 2
        %v3511 = vld [vmem:[%s3510] sm:$0x1]
        %v3512 = vld [vmem:[%s510] sm:$0xff]
        %v3514 = vsel %vm759, %v3511, 0
        %3516 = vmatprep.subr.mxu0 0.0
        %3517 = vmatpush1.msra.mxu0 0.0
        %3518 = vmatprep.subr.mxu0 0.0
        %3519 = vmatpush1.msra.mxu0 0.0
        %3520 = vmatprep.subr.mxu0 0.0
        %3521 = vmatpush1.msra.mxu0 0.0
        %3522 = vmatprep.subr.mxu0 0.0
        %3523 = vmatpush1.msra.mxu0 0.0
        %3524 = vmatprep.subr.mxu0 0.0
        %3525 = vmatpush1.msra.mxu0 0.0
        %3526 = vmatprep.subr.mxu0 0.0
        %3527 = vmatpush1.msra.mxu0 0.0
        %3528 = vmatprep.subr.mxu0 0.0
        %3529 = vmatpush1.msra.mxu0 0.0
        %3530 = vmatprep.subr.mxu0 0.0
        %3531 = vmatpush1.msra.mxu0 0.0
        %3532 = vmatprep.subr.mxu0 0.0
        %3533 = vmatpush1.msra.mxu0 0.0
        %3534 = vmatprep.subr.mxu0 0.0
        %3535 = vmatpush1.msra.mxu0 0.0
        %3536 = vmatprep.subr.mxu0 0.0
        %3537 = vmatpush1.msra.mxu0 0.0
        %3538 = vmatprep.subr.mxu0 0.0
        %3539 = vmatpush1.msra.mxu0 0.0
        %3540 = vmatprep.subr.mxu0 0.0
        %3541 = vmatpush1.msra.mxu0 0.0
        %3542 = vmatprep.subr.mxu0 0.0
        %3543 = vmatpush1.msra.mxu0 0.0
        %3544 = vmatprep.subr.mxu0 0.0
        %3545 = vmatpush1.msra.mxu0 0.0
        %3546 = vmatprep.subr.mxu0 0.0
        %3547 = vmatpush1.msra.mxu0 %v3512
        %3548 = vmatprep.subr.mxu0 0.0
        %3549 = vmatpush2.msra.mxu0 0.0
        %3550 = vmatprep.subr.mxu0 0.0
        %3551 = vmatpush2.msra.mxu0 0.0
        %3552 = vmatprep.subr.mxu0 0.0
        %3553 = vmatpush2.msra.mxu0 0.0
        %3554 = vmatprep.subr.mxu0 0.0
        %3555 = vmatpush2.msra.mxu0 0.0
        %3556 = vmatprep.subr.mxu0 0.0
        %3557 = vmatpush2.msra.mxu0 0.0
        %3558 = vmatprep.subr.mxu0 0.0
        %3559 = vmatpush2.msra.mxu0 0.0
        %3560 = vmatprep.subr.mxu0 0.0
        %3561 = vmatpush2.msra.mxu0 0.0
        %3562 = vmatprep.subr.mxu0 0.0
        %3563 = vmatpush2.msra.mxu0 0.0
        %3564 = vmatprep.subr.mxu0 0.0
        %3565 = vmatpush2.msra.mxu0 0.0
        %3566 = vmatprep.subr.mxu0 0.0
        %3567 = vmatpush2.msra.mxu0 0.0
        %3568 = vmatprep.subr.mxu0 0.0
        %3569 = vmatpush2.msra.mxu0 0.0
        %3570 = vmatprep.subr.mxu0 0.0
        %3571 = vmatpush2.msra.mxu0 0.0
        %3572 = vmatprep.subr.mxu0 0.0
        %3573 = vmatpush2.msra.mxu0 0.0
        %3574 = vmatprep.subr.mxu0 0.0
        %3575 = vmatpush2.msra.mxu0 0.0
        %3576 = vmatprep.subr.mxu0 0.0
        %3577 = vmatpush2.msra.mxu0 0.0
        %3578 = vmatprep.subr.mxu0 0.0
        %3579 = vmatpush2.msra.mxu0 0.0
        %3580 = vmatprep.mubr.f32.mxu0 0.0
        %3581 = vmatmul.mubr.f32.gmra.mxu0 %v3514
        %v3582 = vpop.f32.mrf.mxu0
        %v3583 = vadd.f32 0.0, %v3582
        %v3584 = vpop.f32.mrf.mxu0
        %3585 = vdwg.mxu0
        %3587 = vset.pattern.permute.xlu0 0
        %3588 = vperm.xlu0 %3587, %v3432
        %v3589 = vpop.permute.xlu0 %3588
        %3592 = vset.pattern.permute.xlu0 0
        %3593 = vperm.xlu0 %3592, %v3437
        %v3594 = vpop.permute.xlu0 %3593
        %3597 = vset.pattern.permute.xlu0 0
        %3598 = vperm.xlu0 %3597, %v3442
        %v3599 = vpop.permute.xlu0 %3598
        %3602 = vset.pattern.permute.xlu0 0
        %3603 = vperm.xlu0 %3602, %v3447
        %v3604 = vpop.permute.xlu0 %3603
        %3607 = vset.pattern.permute.xlu0 0
        %3608 = vperm.xlu0 %3607, %v3452
        %v3609 = vpop.permute.xlu0 %3608
        %3612 = vset.pattern.permute.xlu0 0
        %3613 = vperm.xlu0 %3612, %v3457
        %v3614 = vpop.permute.xlu0 %3613
        %3617 = vset.pattern.permute.xlu0 0
        %3618 = vperm.xlu0 %3617, %v3462
        %v3619 = vpop.permute.xlu0 %3618
        %3622 = vset.pattern.permute.xlu0 0
        %3623 = vperm.xlu0 %3622, %v3467
        %v3624 = vpop.permute.xlu0 %3623
        %3627 = vset.pattern.permute.xlu0 0
        %3628 = vperm.xlu0 %3627, %v3472
        %v3629 = vpop.permute.xlu0 %3628
        %3632 = vset.pattern.permute.xlu0 0
        %3633 = vperm.xlu0 %3632, %v3477
        %v3634 = vpop.permute.xlu0 %3633
        %3637 = vset.pattern.permute.xlu0 0
        %3638 = vperm.xlu0 %3637, %v3482
        %v3639 = vpop.permute.xlu0 %3638
        %3642 = vset.pattern.permute.xlu0 0
        %3643 = vperm.xlu0 %3642, %v3487
        %v3644 = vpop.permute.xlu0 %3643
        %3647 = vset.pattern.permute.xlu0 0
        %3648 = vperm.xlu0 %3647, %v3492
        %v3649 = vpop.permute.xlu0 %3648
        %3652 = vset.pattern.permute.xlu0 0
        %3653 = vperm.xlu0 %3652, %v3497
        %v3654 = vpop.permute.xlu0 %3653
        %3657 = vset.pattern.permute.xlu0 0
        %3658 = vperm.xlu0 %3657, %v3502
        %v3659 = vpop.permute.xlu0 %3658
        %3662 = vset.pattern.permute.xlu0 0
        %3663 = vperm.xlu0 %3662, %v3507
        %v3664 = vpop.permute.xlu0 %3663
        %v3666 = vlaneseq
        %v3667 = vshrl.u32 %v3666, 7
        %v3668 = vsub.s32 0, %v3667
        %v3669 = vrot.slane %v3583, %v3668
        %v3670 = vadd.f32 %v3589, %v3669
        %v3671 = vadd.f32 %v3594, %v3669
        %v3672 = vadd.f32 %v3599, %v3669
        %v3673 = vadd.f32 %v3604, %v3669
        %v3674 = vadd.f32 %v3609, %v3669
        %v3675 = vadd.f32 %v3614, %v3669
        %v3676 = vadd.f32 %v3619, %v3669
        %v3677 = vadd.f32 %v3624, %v3669
        %v3678 = vadd.f32 %v3629, %v3669
        %v3679 = vadd.f32 %v3634, %v3669
        %v3680 = vadd.f32 %v3639, %v3669
        %v3681 = vadd.f32 %v3644, %v3669
        %v3682 = vadd.f32 %v3649, %v3669
        %v3683 = vadd.f32 %v3654, %v3669
        %v3684 = vadd.f32 %v3659, %v3669
        %v3685 = vadd.f32 %v3664, %v3669
        %v3686 = vmul.f32 %v3670, 0.2
        %v3687 = vmul.f32 %v3671, 0.2
        %v3688 = vmul.f32 %v3672, 0.2
        %v3689 = vmul.f32 %v3673, 0.2
        %v3690 = vmul.f32 %v3674, 0.2
        %v3691 = vmul.f32 %v3675, 0.2
        %v3692 = vmul.f32 %v3676, 0.2
        %v3693 = vmul.f32 %v3677, 0.2
        %v3694 = vmul.f32 %v3678, 0.2
        %v3695 = vmul.f32 %v3679, 0.2
        %v3696 = vmul.f32 %v3680, 0.2
        %v3697 = vmul.f32 %v3681, 0.2
        %v3698 = vmul.f32 %v3682, 0.2
        %v3699 = vmul.f32 %v3683, 0.2
        %v3700 = vmul.f32 %v3684, 0.2
        %v3701 = vmul.f32 %v3685, 0.2
        %v3702 = vmax.f32 %v3670, %v3686
        %v3703 = vmax.f32 %v3671, %v3687
        %v3704 = vmax.f32 %v3672, %v3688
        %v3705 = vmax.f32 %v3673, %v3689
        %v3706 = vmax.f32 %v3674, %v3690
        %v3707 = vmax.f32 %v3675, %v3691
        %v3708 = vmax.f32 %v3676, %v3692
        %v3709 = vmax.f32 %v3677, %v3693
        %v3710 = vmax.f32 %v3678, %v3694
        %v3711 = vmax.f32 %v3679, %v3695
        %v3712 = vmax.f32 %v3680, %v3696
        %v3713 = vmax.f32 %v3681, %v3697
        %v3714 = vmax.f32 %v3682, %v3698
        %v3715 = vmax.f32 %v3683, %v3699
        %v3716 = vmax.f32 %v3684, %v3700
        %v3717 = vmax.f32 %v3685, %v3701
        %v3718 = vadd.f32 %v3702, %v724
        %v3719 = vadd.f32 %v3703, %v725
        %v3720 = vadd.f32 %v3704, %v726
        %v3721 = vadd.f32 %v3705, %v727
        %v3722 = vadd.f32 %v3706, %v728
        %v3723 = vadd.f32 %v3707, %v729
        %v3724 = vadd.f32 %v3708, %v730
        %v3725 = vadd.f32 %v3709, %v731
        %v3726 = vadd.f32 %v3710, %v732
        %v3727 = vadd.f32 %v3711, %v733
        %v3728 = vadd.f32 %v3712, %v734
        %v3729 = vadd.f32 %v3713, %v735
        %v3730 = vadd.f32 %v3714, %v736
        %v3731 = vadd.f32 %v3715, %v737
        %v3732 = vadd.f32 %v3716, %v738
        %v3733 = vadd.f32 %v3717, %v739
        %s3734 = scalar_lea.vmem [#allocation2], 256
        %v3735 = vld [vmem:[%s3734] sm:$0xff]
        %v3736 = vld [vmem:[%s3734 + $0x8] sm:$0xff]
        %v3737 = vld [vmem:[%s3734 + $0x10] sm:$0xff]
        %v3738 = vld [vmem:[%s3734 + $0x18] sm:$0xff]
        %v3739 = vld [vmem:[%s3734 + $0x20] sm:$0xff]
        %v3740 = vld [vmem:[%s3734 + $0x28] sm:$0xff]
        %v3741 = vld [vmem:[%s3734 + $0x30] sm:$0xff]
        %v3742 = vld [vmem:[%s3734 + $0x38] sm:$0xff]
        %v3743 = vld [vmem:[%s3734 + $0x40] sm:$0xff]
        %v3744 = vld [vmem:[%s3734 + $0x48] sm:$0xff]
        %v3745 = vld [vmem:[%s3734 + $0x50] sm:$0xff]
        %v3746 = vld [vmem:[%s3734 + $0x58] sm:$0xff]
        %v3747 = vld [vmem:[%s3734 + $0x60] sm:$0xff]
        %v3748 = vld [vmem:[%s3734 + $0x68] sm:$0xff]
        %v3749 = vld [vmem:[%s3734 + $0x70] sm:$0xff]
        %v3750 = vld [vmem:[%s3734 + $0x78] sm:$0xff]
        %3751 = vmax.xlane.f32.xlu0 %v3718
        %v3752 = vpop.xlane.xlu0 %3751
        %3753 = vmax.xlane.f32.xlu0 %v3719
        %v3754 = vpop.xlane.xlu0 %3753
        %3755 = vmax.xlane.f32.xlu0 %v3720
        %v3756 = vpop.xlane.xlu0 %3755
        %3757 = vmax.xlane.f32.xlu0 %v3721
        %v3758 = vpop.xlane.xlu0 %3757
        %3759 = vmax.xlane.f32.xlu0 %v3722
        %v3760 = vpop.xlane.xlu0 %3759
        %3761 = vmax.xlane.f32.xlu0 %v3723
        %v3762 = vpop.xlane.xlu0 %3761
        %3763 = vmax.xlane.f32.xlu0 %v3724
        %v3764 = vpop.xlane.xlu0 %3763
        %3765 = vmax.xlane.f32.xlu0 %v3725
        %v3766 = vpop.xlane.xlu0 %3765
        %3767 = vmax.xlane.f32.xlu0 %v3726
        %v3768 = vpop.xlane.xlu0 %3767
        %3769 = vmax.xlane.f32.xlu0 %v3727
        %v3770 = vpop.xlane.xlu0 %3769
        %3771 = vmax.xlane.f32.xlu0 %v3728
        %v3772 = vpop.xlane.xlu0 %3771
        %3773 = vmax.xlane.f32.xlu0 %v3729
        %v3774 = vpop.xlane.xlu0 %3773
        %3775 = vmax.xlane.f32.xlu0 %v3730
        %v3776 = vpop.xlane.xlu0 %3775
        %3777 = vmax.xlane.f32.xlu0 %v3731
        %v3778 = vpop.xlane.xlu0 %3777
        %3779 = vmax.xlane.f32.xlu0 %v3732
        %v3780 = vpop.xlane.xlu0 %3779
        %3781 = vmax.xlane.f32.xlu0 %v3733
        %v3782 = vpop.xlane.xlu0 %3781
        %v3783 = vmax.f32 %v3735, %v3752
        %v3784 = vmax.f32 %v3736, %v3754
        %v3785 = vmax.f32 %v3737, %v3756
        %v3786 = vmax.f32 %v3738, %v3758
        %v3787 = vmax.f32 %v3739, %v3760
        %v3788 = vmax.f32 %v3740, %v3762
        %v3789 = vmax.f32 %v3741, %v3764
        %v3790 = vmax.f32 %v3742, %v3766
        %v3791 = vmax.f32 %v3743, %v3768
        %v3792 = vmax.f32 %v3744, %v3770
        %v3793 = vmax.f32 %v3745, %v3772
        %v3794 = vmax.f32 %v3746, %v3774
        %v3795 = vmax.f32 %v3747, %v3776
        %v3796 = vmax.f32 %v3748, %v3778
        %v3797 = vmax.f32 %v3749, %v3780
        %v3798 = vmax.f32 %v3750, %v3782
        %v3799 = vsub.f32 %v3735, %v3783
        %v3800 = vsub.f32 %v3736, %v3784
        %v3801 = vsub.f32 %v3737, %v3785
        %v3802 = vsub.f32 %v3738, %v3786
        %v3803 = vsub.f32 %v3739, %v3787
        %v3804 = vsub.f32 %v3740, %v3788
        %v3805 = vsub.f32 %v3741, %v3789
        %v3806 = vsub.f32 %v3742, %v3790
        %v3807 = vsub.f32 %v3743, %v3791
        %v3808 = vsub.f32 %v3744, %v3792
        %v3809 = vsub.f32 %v3745, %v3793
        %v3810 = vsub.f32 %v3746, %v3794
        %v3811 = vsub.f32 %v3747, %v3795
        %v3812 = vsub.f32 %v3748, %v3796
        %v3813 = vsub.f32 %v3749, %v3797
        %v3814 = vsub.f32 %v3750, %v3798
        %v3815 = vmul.f32 %v3799, 1.442695
        %v3816 = vpow.pop %v3815
        %v3817 = vmul.f32 %v3800, 1.442695
        %v3818 = vpow.pop %v3817
        %v3819 = vmul.f32 %v3801, 1.442695
        %v3820 = vpow.pop %v3819
        %v3821 = vmul.f32 %v3802, 1.442695
        %v3822 = vpow.pop %v3821
        %v3823 = vmul.f32 %v3803, 1.442695
        %v3824 = vpow.pop %v3823
        %v3825 = vmul.f32 %v3804, 1.442695
        %v3826 = vpow.pop %v3825
        %v3827 = vmul.f32 %v3805, 1.442695
        %v3828 = vpow.pop %v3827
        %v3829 = vmul.f32 %v3806, 1.442695
        %v3830 = vpow.pop %v3829
        %v3831 = vmul.f32 %v3807, 1.442695
        %v3832 = vpow.pop %v3831
        %v3833 = vmul.f32 %v3808, 1.442695
        %v3834 = vpow.pop %v3833
        %v3835 = vmul.f32 %v3809, 1.442695
        %v3836 = vpow.pop %v3835
        %v3837 = vmul.f32 %v3810, 1.442695
        %v3838 = vpow.pop %v3837
        %v3839 = vmul.f32 %v3811, 1.442695
        %v3840 = vpow.pop %v3839
        %v3841 = vmul.f32 %v3812, 1.442695
        %v3842 = vpow.pop %v3841
        %v3843 = vmul.f32 %v3813, 1.442695
        %v3844 = vpow.pop %v3843
        %v3845 = vmul.f32 %v3814, 1.442695
        %v3846 = vpow.pop %v3845
        %3848 = vset.pattern.permute.xlu0 0
        %3849 = vperm.xlu0 %3848, %v3783
        %v3850 = vpop.permute.xlu0 %3849
        %3853 = vset.pattern.permute.xlu0 0
        %3854 = vperm.xlu0 %3853, %v3784
        %v3855 = vpop.permute.xlu0 %3854
        %3858 = vset.pattern.permute.xlu0 0
        %3859 = vperm.xlu0 %3858, %v3785
        %v3860 = vpop.permute.xlu0 %3859
        %3863 = vset.pattern.permute.xlu0 0
        %3864 = vperm.xlu0 %3863, %v3786
        %v3865 = vpop.permute.xlu0 %3864
        %3868 = vset.pattern.permute.xlu0 0
        %3869 = vperm.xlu0 %3868, %v3787
        %v3870 = vpop.permute.xlu0 %3869
        %3873 = vset.pattern.permute.xlu0 0
        %3874 = vperm.xlu0 %3873, %v3788
        %v3875 = vpop.permute.xlu0 %3874
        %3878 = vset.pattern.permute.xlu0 0
        %3879 = vperm.xlu0 %3878, %v3789
        %v3880 = vpop.permute.xlu0 %3879
        %3883 = vset.pattern.permute.xlu0 0
        %3884 = vperm.xlu0 %3883, %v3790
        %v3885 = vpop.permute.xlu0 %3884
        %3888 = vset.pattern.permute.xlu0 0
        %3889 = vperm.xlu0 %3888, %v3791
        %v3890 = vpop.permute.xlu0 %3889
        %3893 = vset.pattern.permute.xlu0 0
        %3894 = vperm.xlu0 %3893, %v3792
        %v3895 = vpop.permute.xlu0 %3894
        %3898 = vset.pattern.permute.xlu0 0
        %3899 = vperm.xlu0 %3898, %v3793
        %v3900 = vpop.permute.xlu0 %3899
        %3903 = vset.pattern.permute.xlu0 0
        %3904 = vperm.xlu0 %3903, %v3794
        %v3905 = vpop.permute.xlu0 %3904
        %3908 = vset.pattern.permute.xlu0 0
        %3909 = vperm.xlu0 %3908, %v3795
        %v3910 = vpop.permute.xlu0 %3909
        %3913 = vset.pattern.permute.xlu0 0
        %3914 = vperm.xlu0 %3913, %v3796
        %v3915 = vpop.permute.xlu0 %3914
        %3918 = vset.pattern.permute.xlu0 0
        %3919 = vperm.xlu0 %3918, %v3797
        %v3920 = vpop.permute.xlu0 %3919
        %3923 = vset.pattern.permute.xlu0 0
        %3924 = vperm.xlu0 %3923, %v3798
        %v3925 = vpop.permute.xlu0 %3924
        %v3927 = vsub.f32 %v3718, %v3850
        %v3928 = vsub.f32 %v3719, %v3855
        %v3929 = vsub.f32 %v3720, %v3860
        %v3930 = vsub.f32 %v3721, %v3865
        %v3931 = vsub.f32 %v3722, %v3870
        %v3932 = vsub.f32 %v3723, %v3875
        %v3933 = vsub.f32 %v3724, %v3880
        %v3934 = vsub.f32 %v3725, %v3885
        %v3935 = vsub.f32 %v3726, %v3890
        %v3936 = vsub.f32 %v3727, %v3895
        %v3937 = vsub.f32 %v3728, %v3900
        %v3938 = vsub.f32 %v3729, %v3905
        %v3939 = vsub.f32 %v3730, %v3910
        %v3940 = vsub.f32 %v3731, %v3915
        %v3941 = vsub.f32 %v3732, %v3920
        %v3942 = vsub.f32 %v3733, %v3925
        %v3943 = vmul.f32 %v3927, 1.442695
        %v3944 = vpow.pop %v3943
        %v3945 = vmul.f32 %v3928, 1.442695
        %v3946 = vpow.pop %v3945
        %v3947 = vmul.f32 %v3929, 1.442695
        %v3948 = vpow.pop %v3947
        %v3949 = vmul.f32 %v3930, 1.442695
        %v3950 = vpow.pop %v3949
        %v3951 = vmul.f32 %v3931, 1.442695
        %v3952 = vpow.pop %v3951
        %v3953 = vmul.f32 %v3932, 1.442695
        %v3954 = vpow.pop %v3953
        %v3955 = vmul.f32 %v3933, 1.442695
        %v3956 = vpow.pop %v3955
        %v3957 = vmul.f32 %v3934, 1.442695
        %v3958 = vpow.pop %v3957
        %v3959 = vmul.f32 %v3935, 1.442695
        %v3960 = vpow.pop %v3959
        %v3961 = vmul.f32 %v3936, 1.442695
        %v3962 = vpow.pop %v3961
        %v3963 = vmul.f32 %v3937, 1.442695
        %v3964 = vpow.pop %v3963
        %v3965 = vmul.f32 %v3938, 1.442695
        %v3966 = vpow.pop %v3965
        %v3967 = vmul.f32 %v3939, 1.442695
        %v3968 = vpow.pop %v3967
        %v3969 = vmul.f32 %v3940, 1.442695
        %v3970 = vpow.pop %v3969
        %v3971 = vmul.f32 %v3941, 1.442695
        %v3972 = vpow.pop %v3971
        %v3973 = vmul.f32 %v3942, 1.442695
        %v3974 = vpow.pop %v3973
        %v3975 = vmul.f32 %v3944, %v692
        %v3976 = vmul.f32 %v3946, %v693
        %v3977 = vmul.f32 %v3948, %v694
        %v3978 = vmul.f32 %v3950, %v695
        %v3979 = vmul.f32 %v3952, %v696
        %v3980 = vmul.f32 %v3954, %v697
        %v3981 = vmul.f32 %v3956, %v698
        %v3982 = vmul.f32 %v3958, %v699
        %v3983 = vmul.f32 %v3960, %v700
        %v3984 = vmul.f32 %v3962, %v701
        %v3985 = vmul.f32 %v3964, %v702
        %v3986 = vmul.f32 %v3966, %v703
        %v3987 = vmul.f32 %v3968, %v704
        %v3988 = vmul.f32 %v3970, %v705
        %v3989 = vmul.f32 %v3972, %v706
        %v3990 = vmul.f32 %v3974, %v707
        %s3991 = scalar_lea.vmem [#allocation3], 256
        %v3992 = vld [vmem:[%s3991] sm:$0xff]
        %v3993 = vld [vmem:[%s3991 + $0x8] sm:$0xff]
        %v3994 = vld [vmem:[%s3991 + $0x10] sm:$0xff]
        %v3995 = vld [vmem:[%s3991 + $0x18] sm:$0xff]
        %v3996 = vld [vmem:[%s3991 + $0x20] sm:$0xff]
        %v3997 = vld [vmem:[%s3991 + $0x28] sm:$0xff]
        %v3998 = vld [vmem:[%s3991 + $0x30] sm:$0xff]
        %v3999 = vld [vmem:[%s3991 + $0x38] sm:$0xff]
        %v4000 = vld [vmem:[%s3991 + $0x40] sm:$0xff]
        %v4001 = vld [vmem:[%s3991 + $0x48] sm:$0xff]
        %v4002 = vld [vmem:[%s3991 + $0x50] sm:$0xff]
        %v4003 = vld [vmem:[%s3991 + $0x58] sm:$0xff]
        %v4004 = vld [vmem:[%s3991 + $0x60] sm:$0xff]
        %v4005 = vld [vmem:[%s3991 + $0x68] sm:$0xff]
        %v4006 = vld [vmem:[%s3991 + $0x70] sm:$0xff]
        %v4007 = vld [vmem:[%s3991 + $0x78] sm:$0xff]
        %v4008 = vmul.f32 %v3816, %v3992
        %v4009 = vmul.f32 %v3818, %v3993
        %v4010 = vmul.f32 %v3820, %v3994
        %v4011 = vmul.f32 %v3822, %v3995
        %v4012 = vmul.f32 %v3824, %v3996
        %v4013 = vmul.f32 %v3826, %v3997
        %v4014 = vmul.f32 %v3828, %v3998
        %v4015 = vmul.f32 %v3830, %v3999
        %v4016 = vmul.f32 %v3832, %v4000
        %v4017 = vmul.f32 %v3834, %v4001
        %v4018 = vmul.f32 %v3836, %v4002
        %v4019 = vmul.f32 %v3838, %v4003
        %v4020 = vmul.f32 %v3840, %v4004
        %v4021 = vmul.f32 %v3842, %v4005
        %v4022 = vmul.f32 %v3844, %v4006
        %v4023 = vmul.f32 %v3846, %v4007
        %4024 = vadd.xlane.f32.xlu0 %v3975
        %v4025 = vpop.xlane.xlu0 %4024
        %4026 = vadd.xlane.f32.xlu0 %v3976
        %v4027 = vpop.xlane.xlu0 %4026
        %4028 = vadd.xlane.f32.xlu0 %v3977
        %v4029 = vpop.xlane.xlu0 %4028
        %4030 = vadd.xlane.f32.xlu0 %v3978
        %v4031 = vpop.xlane.xlu0 %4030
        %4032 = vadd.xlane.f32.xlu0 %v3979
        %v4033 = vpop.xlane.xlu0 %4032
        %4034 = vadd.xlane.f32.xlu0 %v3980
        %v4035 = vpop.xlane.xlu0 %4034
        %4036 = vadd.xlane.f32.xlu0 %v3981
        %v4037 = vpop.xlane.xlu0 %4036
        %4038 = vadd.xlane.f32.xlu0 %v3982
        %v4039 = vpop.xlane.xlu0 %4038
        %4040 = vadd.xlane.f32.xlu0 %v3983
        %v4041 = vpop.xlane.xlu0 %4040
        %4042 = vadd.xlane.f32.xlu0 %v3984
        %v4043 = vpop.xlane.xlu0 %4042
        %4044 = vadd.xlane.f32.xlu0 %v3985
        %v4045 = vpop.xlane.xlu0 %4044
        %4046 = vadd.xlane.f32.xlu0 %v3986
        %v4047 = vpop.xlane.xlu0 %4046
        %4048 = vadd.xlane.f32.xlu0 %v3987
        %v4049 = vpop.xlane.xlu0 %4048
        %4050 = vadd.xlane.f32.xlu0 %v3988
        %v4051 = vpop.xlane.xlu0 %4050
        %4052 = vadd.xlane.f32.xlu0 %v3989
        %v4053 = vpop.xlane.xlu0 %4052
        %4054 = vadd.xlane.f32.xlu0 %v3990
        %v4055 = vpop.xlane.xlu0 %4054
        %v4056 = vadd.f32 %v4008, %v4025
        %v4057 = vadd.f32 %v4009, %v4027
        %v4058 = vadd.f32 %v4010, %v4029
        %v4059 = vadd.f32 %v4011, %v4031
        %v4060 = vadd.f32 %v4012, %v4033
        %v4061 = vadd.f32 %v4013, %v4035
        %v4062 = vadd.f32 %v4014, %v4037
        %v4063 = vadd.f32 %v4015, %v4039
        %v4064 = vadd.f32 %v4016, %v4041
        %v4065 = vadd.f32 %v4017, %v4043
        %v4066 = vadd.f32 %v4018, %v4045
        %v4067 = vadd.f32 %v4019, %v4047
        %v4068 = vadd.f32 %v4020, %v4049
        %v4069 = vadd.f32 %v4021, %v4051
        %v4070 = vadd.f32 %v4022, %v4053
        %v4071 = vadd.f32 %v4023, %v4055
        %4072 = vst.msk [vmem:[%s3991] sm:$0xff] %vm1883, %v4056
        %4073 = vst.msk [vmem:[%s3991 + $0x8] sm:$0xff] %vm1883, %v4057
        %4074 = vst.msk [vmem:[%s3991 + $0x10] sm:$0xff] %vm1883, %v4058
        %4075 = vst.msk [vmem:[%s3991 + $0x18] sm:$0xff] %vm1883, %v4059
        %4076 = vst.msk [vmem:[%s3991 + $0x20] sm:$0xff] %vm1883, %v4060
        %4077 = vst.msk [vmem:[%s3991 + $0x28] sm:$0xff] %vm1883, %v4061
        %4078 = vst.msk [vmem:[%s3991 + $0x30] sm:$0xff] %vm1883, %v4062
        %4079 = vst.msk [vmem:[%s3991 + $0x38] sm:$0xff] %vm1883, %v4063
        %4080 = vst.msk [vmem:[%s3991 + $0x40] sm:$0xff] %vm1883, %v4064
        %4081 = vst.msk [vmem:[%s3991 + $0x48] sm:$0xff] %vm1883, %v4065
        %4082 = vst.msk [vmem:[%s3991 + $0x50] sm:$0xff] %vm1883, %v4066
        %4083 = vst.msk [vmem:[%s3991 + $0x58] sm:$0xff] %vm1883, %v4067
        %4084 = vst.msk [vmem:[%s3991 + $0x60] sm:$0xff] %vm1883, %v4068
        %4085 = vst.msk [vmem:[%s3991 + $0x68] sm:$0xff] %vm1883, %v4069
        %4086 = vst.msk [vmem:[%s3991 + $0x70] sm:$0xff] %vm1883, %v4070
        %4087 = vst.msk [vmem:[%s3991 + $0x78] sm:$0xff] %vm1883, %v4071
        %v4088 = vld [vmem:[#allocation4 + $0x10] sm:$0xff]
        %v4089 = vld [vmem:[#allocation4 + $0x28] sm:$0xff]
        %v4090 = vld [vmem:[#allocation4 + $0x40] sm:$0xff]
        %v4091 = vld [vmem:[#allocation4 + $0x58] sm:$0xff]
        %v4092 = vld [vmem:[#allocation4 + $0x70] sm:$0xff]
        %v4093 = vld [vmem:[#allocation4 + $0x88] sm:$0xff]
        %v4094 = vld [vmem:[#allocation4 + $0xa0] sm:$0xff]
        %v4095 = vld [vmem:[#allocation4 + $0xb8] sm:$0xff]
        %v4096 = vld [vmem:[#allocation4 + $0xd0] sm:$0xff]
        %v4097 = vld [vmem:[#allocation4 + $0xe8] sm:$0xff]
        %v4098 = vld [vmem:[#allocation4 + $0x100] sm:$0xff]
        %v4099 = vld [vmem:[#allocation4 + $0x118] sm:$0xff]
        %v4100 = vld [vmem:[#allocation4 + $0x130] sm:$0xff]
        %v4101 = vld [vmem:[#allocation4 + $0x148] sm:$0xff]
        %v4102 = vld [vmem:[#allocation4 + $0x160] sm:$0xff]
        %v4103 = vld [vmem:[#allocation4 + $0x178] sm:$0xff]
        %4105 = vset.pattern.permute.xlu0 0
        %4106 = vperm.xlu0 %4105, %v3816
        %v4107 = vpop.permute.xlu0 %4106
        %4110 = vset.pattern.permute.xlu0 0
        %4111 = vperm.xlu0 %4110, %v3818
        %v4112 = vpop.permute.xlu0 %4111
        %4115 = vset.pattern.permute.xlu0 0
        %4116 = vperm.xlu0 %4115, %v3820
        %v4117 = vpop.permute.xlu0 %4116
        %4120 = vset.pattern.permute.xlu0 0
        %4121 = vperm.xlu0 %4120, %v3822
        %v4122 = vpop.permute.xlu0 %4121
        %4125 = vset.pattern.permute.xlu0 0
        %4126 = vperm.xlu0 %4125, %v3824
        %v4127 = vpop.permute.xlu0 %4126
        %4130 = vset.pattern.permute.xlu0 0
        %4131 = vperm.xlu0 %4130, %v3826
        %v4132 = vpop.permute.xlu0 %4131
        %4135 = vset.pattern.permute.xlu0 0
        %4136 = vperm.xlu0 %4135, %v3828
        %v4137 = vpop.permute.xlu0 %4136
        %4140 = vset.pattern.permute.xlu0 0
        %4141 = vperm.xlu0 %4140, %v3830
        %v4142 = vpop.permute.xlu0 %4141
        %4145 = vset.pattern.permute.xlu0 0
        %4146 = vperm.xlu0 %4145, %v3832
        %v4147 = vpop.permute.xlu0 %4146
        %4150 = vset.pattern.permute.xlu0 0
        %4151 = vperm.xlu0 %4150, %v3834
        %v4152 = vpop.permute.xlu0 %4151
        %4155 = vset.pattern.permute.xlu0 0
        %4156 = vperm.xlu0 %4155, %v3836
        %v4157 = vpop.permute.xlu0 %4156
        %4160 = vset.pattern.permute.xlu0 0
        %4161 = vperm.xlu0 %4160, %v3838
        %v4162 = vpop.permute.xlu0 %4161
        %4165 = vset.pattern.permute.xlu0 0
        %4166 = vperm.xlu0 %4165, %v3840
        %v4167 = vpop.permute.xlu0 %4166
        %4170 = vset.pattern.permute.xlu0 0
        %4171 = vperm.xlu0 %4170, %v3842
        %v4172 = vpop.permute.xlu0 %4171
        %4175 = vset.pattern.permute.xlu0 0
        %4176 = vperm.xlu0 %4175, %v3844
        %v4177 = vpop.permute.xlu0 %4176
        %4180 = vset.pattern.permute.xlu0 0
        %4181 = vperm.xlu0 %4180, %v3846
        %v4182 = vpop.permute.xlu0 %4181
        %v4184 = vmul.f32 %v4107, %v4088
        %v4185 = vmul.f32 %v4112, %v4089
        %v4186 = vmul.f32 %v4117, %v4090
        %v4187 = vmul.f32 %v4122, %v4091
        %v4188 = vmul.f32 %v4127, %v4092
        %v4189 = vmul.f32 %v4132, %v4093
        %v4190 = vmul.f32 %v4137, %v4094
        %v4191 = vmul.f32 %v4142, %v4095
        %v4192 = vmul.f32 %v4147, %v4096
        %v4193 = vmul.f32 %v4152, %v4097
        %v4194 = vmul.f32 %v4157, %v4098
        %v4195 = vmul.f32 %v4162, %v4099
        %v4196 = vmul.f32 %v4167, %v4100
        %v4197 = vmul.f32 %v4172, %v4101
        %v4198 = vmul.f32 %v4177, %v4102
        %v4199 = vmul.f32 %v4182, %v4103
        %4200 = vmatprep.subr.mxu0 0.0
        %4201 = vmatpush1.msra.mxu0 %v1111
        %4202 = vmatprep.subr.mxu0 0.0
        %4203 = vmatpush1.msra.mxu0 %v1106
        %4204 = vmatprep.subr.mxu0 0.0
        %4205 = vmatpush1.msra.mxu0 %v1101
        %4206 = vmatprep.subr.mxu0 0.0
        %4207 = vmatpush1.msra.mxu0 %v1096
        %4208 = vmatprep.subr.mxu0 0.0
        %4209 = vmatpush1.msra.mxu0 %v1091
        %4210 = vmatprep.subr.mxu0 0.0
        %4211 = vmatpush1.msra.mxu0 %v1086
        %4212 = vmatprep.subr.mxu0 0.0
        %4213 = vmatpush1.msra.mxu0 %v1081
        %4214 = vmatprep.subr.mxu0 0.0
        %4215 = vmatpush1.msra.mxu0 %v1076
        %4216 = vmatprep.subr.mxu0 0.0
        %4217 = vmatpush1.msra.mxu0 %v1071
        %4218 = vmatprep.subr.mxu0 0.0
        %4219 = vmatpush1.msra.mxu0 %v1066
        %4220 = vmatprep.subr.mxu0 0.0
        %4221 = vmatpush1.msra.mxu0 %v1061
        %4222 = vmatprep.subr.mxu0 0.0
        %4223 = vmatpush1.msra.mxu0 %v1056
        %4224 = vmatprep.subr.mxu0 0.0
        %4225 = vmatpush1.msra.mxu0 %v1051
        %4226 = vmatprep.subr.mxu0 0.0
        %4227 = vmatpush1.msra.mxu0 %v1046
        %4228 = vmatprep.subr.mxu0 0.0
        %4229 = vmatpush1.msra.mxu0 %v1041
        %4230 = vmatprep.subr.mxu0 0.0
        %4231 = vmatpush1.msra.mxu0 %v1036
        %4232 = vmatprep.subr.mxu0 0.0
        %4233 = vmatpush2.msra.mxu0 0.0
        %4234 = vmatprep.subr.mxu0 0.0
        %4235 = vmatpush2.msra.mxu0 0.0
        %4236 = vmatprep.subr.mxu0 0.0
        %4237 = vmatpush2.msra.mxu0 0.0
        %4238 = vmatprep.subr.mxu0 0.0
        %4239 = vmatpush2.msra.mxu0 0.0
        %4240 = vmatprep.subr.mxu0 0.0
        %4241 = vmatpush2.msra.mxu0 0.0
        %4242 = vmatprep.subr.mxu0 0.0
        %4243 = vmatpush2.msra.mxu0 0.0
        %4244 = vmatprep.subr.mxu0 0.0
        %4245 = vmatpush2.msra.mxu0 0.0
        %4246 = vmatprep.subr.mxu0 0.0
        %4247 = vmatpush2.msra.mxu0 0.0
        %4248 = vmatprep.subr.mxu0 0.0
        %4249 = vmatpush2.msra.mxu0 0.0
        %4250 = vmatprep.subr.mxu0 0.0
        %4251 = vmatpush2.msra.mxu0 0.0
        %4252 = vmatprep.subr.mxu0 0.0
        %4253 = vmatpush2.msra.mxu0 0.0
        %4254 = vmatprep.subr.mxu0 0.0
        %4255 = vmatpush2.msra.mxu0 0.0
        %4256 = vmatprep.subr.mxu0 0.0
        %4257 = vmatpush2.msra.mxu0 0.0
        %4258 = vmatprep.subr.mxu0 0.0
        %4259 = vmatpush2.msra.mxu0 0.0
        %4260 = vmatprep.subr.mxu0 0.0
        %4261 = vmatpush2.msra.mxu0 0.0
        %4262 = vmatprep.subr.mxu0 0.0
        %4263 = vmatpush2.msra.mxu0 0.0
        %4264 = vmatprep.mubr.f32.mxu0 0.0
        %4265 = vmatmul.mubr.f32.gmra.mxu0 %v3975
        %v4266 = vpop.f32.mrf.mxu0
        %v4267 = vadd.f32 0.0, %v4266
        %v4268 = vpop.f32.mrf.mxu0
        %4269 = vmatprep.mubr.f32.mxu0 0.0
        %4270 = vmatmul.mubr.f32.gmra.mxu0 %v3976
        %v4271 = vpop.f32.mrf.mxu0
        %v4272 = vadd.f32 0.0, %v4271
        %v4273 = vpop.f32.mrf.mxu0
        %4274 = vmatprep.mubr.f32.mxu0 0.0
        %4275 = vmatmul.mubr.f32.gmra.mxu0 %v3977
        %v4276 = vpop.f32.mrf.mxu0
        %v4277 = vadd.f32 0.0, %v4276
        %v4278 = vpop.f32.mrf.mxu0
        %4279 = vmatprep.mubr.f32.mxu0 0.0
        %4280 = vmatmul.mubr.f32.gmra.mxu0 %v3978
        %v4281 = vpop.f32.mrf.mxu0
        %v4282 = vadd.f32 0.0, %v4281
        %v4283 = vpop.f32.mrf.mxu0
        %4284 = vmatprep.mubr.f32.mxu0 0.0
        %4285 = vmatmul.mubr.f32.gmra.mxu0 %v3979
        %v4286 = vpop.f32.mrf.mxu0
        %v4287 = vadd.f32 0.0, %v4286
        %v4288 = vpop.f32.mrf.mxu0
        %4289 = vmatprep.mubr.f32.mxu0 0.0
        %4290 = vmatmul.mubr.f32.gmra.mxu0 %v3980
        %v4291 = vpop.f32.mrf.mxu0
        %v4292 = vadd.f32 0.0, %v4291
        %v4293 = vpop.f32.mrf.mxu0
        %4294 = vmatprep.mubr.f32.mxu0 0.0
        %4295 = vmatmul.mubr.f32.gmra.mxu0 %v3981
        %v4296 = vpop.f32.mrf.mxu0
        %v4297 = vadd.f32 0.0, %v4296
        %v4298 = vpop.f32.mrf.mxu0
        %4299 = vmatprep.mubr.f32.mxu0 0.0
        %4300 = vmatmul.mubr.f32.gmra.mxu0 %v3982
        %v4301 = vpop.f32.mrf.mxu0
        %v4302 = vadd.f32 0.0, %v4301
        %v4303 = vpop.f32.mrf.mxu0
        %4304 = vmatprep.mubr.f32.mxu0 0.0
        %4305 = vmatmul.mubr.f32.gmra.mxu0 %v3983
        %v4306 = vpop.f32.mrf.mxu0
        %v4307 = vadd.f32 0.0, %v4306
        %v4308 = vpop.f32.mrf.mxu0
        %4309 = vmatprep.mubr.f32.mxu0 0.0
        %4310 = vmatmul.mubr.f32.gmra.mxu0 %v3984
        %v4311 = vpop.f32.mrf.mxu0
        %v4312 = vadd.f32 0.0, %v4311
        %v4313 = vpop.f32.mrf.mxu0
        %4314 = vmatprep.mubr.f32.mxu0 0.0
        %4315 = vmatmul.mubr.f32.gmra.mxu0 %v3985
        %v4316 = vpop.f32.mrf.mxu0
        %v4317 = vadd.f32 0.0, %v4316
        %v4318 = vpop.f32.mrf.mxu0
        %4319 = vmatprep.mubr.f32.mxu0 0.0
        %4320 = vmatmul.mubr.f32.gmra.mxu0 %v3986
        %v4321 = vpop.f32.mrf.mxu0
        %v4322 = vadd.f32 0.0, %v4321
        %v4323 = vpop.f32.mrf.mxu0
        %4324 = vmatprep.mubr.f32.mxu0 0.0
        %4325 = vmatmul.mubr.f32.gmra.mxu0 %v3987
        %v4326 = vpop.f32.mrf.mxu0
        %v4327 = vadd.f32 0.0, %v4326
        %v4328 = vpop.f32.mrf.mxu0
        %4329 = vmatprep.mubr.f32.mxu0 0.0
        %4330 = vmatmul.mubr.f32.gmra.mxu0 %v3988
        %v4331 = vpop.f32.mrf.mxu0
        %v4332 = vadd.f32 0.0, %v4331
        %v4333 = vpop.f32.mrf.mxu0
        %4334 = vmatprep.mubr.f32.mxu0 0.0
        %4335 = vmatmul.mubr.f32.gmra.mxu0 %v3989
        %v4336 = vpop.f32.mrf.mxu0
        %v4337 = vadd.f32 0.0, %v4336
        %v4338 = vpop.f32.mrf.mxu0
        %4339 = vmatprep.mubr.f32.mxu0 0.0
        %4340 = vmatmul.mubr.f32.gmra.mxu0 %v3990
        %v4341 = vpop.f32.mrf.mxu0
        %v4342 = vadd.f32 0.0, %v4341
        %v4343 = vpop.f32.mrf.mxu0
        %4344 = vdwg.mxu0
        %v4345 = vadd.f32 %v4184, %v4267
        %v4346 = vadd.f32 %v4185, %v4272
        %v4347 = vadd.f32 %v4186, %v4277
        %v4348 = vadd.f32 %v4187, %v4282
        %v4349 = vadd.f32 %v4188, %v4287
        %v4350 = vadd.f32 %v4189, %v4292
        %v4351 = vadd.f32 %v4190, %v4297
        %v4352 = vadd.f32 %v4191, %v4302
        %v4353 = vadd.f32 %v4192, %v4307
        %v4354 = vadd.f32 %v4193, %v4312
        %v4355 = vadd.f32 %v4194, %v4317
        %v4356 = vadd.f32 %v4195, %v4322
        %v4357 = vadd.f32 %v4196, %v4327
        %v4358 = vadd.f32 %v4197, %v4332
        %v4359 = vadd.f32 %v4198, %v4337
        %v4360 = vadd.f32 %v4199, %v4342
        %4361 = vst [vmem:[#allocation4 + $0x10] sm:$0xff] %v4345
        %4362 = vst [vmem:[#allocation4 + $0x28] sm:$0xff] %v4346
        %4363 = vst [vmem:[#allocation4 + $0x40] sm:$0xff] %v4347
        %4364 = vst [vmem:[#allocation4 + $0x58] sm:$0xff] %v4348
        %4365 = vst [vmem:[#allocation4 + $0x70] sm:$0xff] %v4349
        %4366 = vst [vmem:[#allocation4 + $0x88] sm:$0xff] %v4350
        %4367 = vst [vmem:[#allocation4 + $0xa0] sm:$0xff] %v4351
        %4368 = vst [vmem:[#allocation4 + $0xb8] sm:$0xff] %v4352
        %4369 = vst [vmem:[#allocation4 + $0xd0] sm:$0xff] %v4353
        %4370 = vst [vmem:[#allocation4 + $0xe8] sm:$0xff] %v4354
        %4371 = vst [vmem:[#allocation4 + $0x100] sm:$0xff] %v4355
        %4372 = vst [vmem:[#allocation4 + $0x118] sm:$0xff] %v4356
        %4373 = vst [vmem:[#allocation4 + $0x130] sm:$0xff] %v4357
        %4374 = vst [vmem:[#allocation4 + $0x148] sm:$0xff] %v4358
        %4375 = vst [vmem:[#allocation4 + $0x160] sm:$0xff] %v4359
        %4376 = vst [vmem:[#allocation4 + $0x178] sm:$0xff] %v4360
        %4377 = vst.msk [vmem:[%s3734] sm:$0xff] %vm1883, %v3783
        %4378 = vst.msk [vmem:[%s3734 + $0x8] sm:$0xff] %vm1883, %v3784
        %4379 = vst.msk [vmem:[%s3734 + $0x10] sm:$0xff] %vm1883, %v3785
        %4380 = vst.msk [vmem:[%s3734 + $0x18] sm:$0xff] %vm1883, %v3786
        %4381 = vst.msk [vmem:[%s3734 + $0x20] sm:$0xff] %vm1883, %v3787
        %4382 = vst.msk [vmem:[%s3734 + $0x28] sm:$0xff] %vm1883, %v3788
        %4383 = vst.msk [vmem:[%s3734 + $0x30] sm:$0xff] %vm1883, %v3789
        %4384 = vst.msk [vmem:[%s3734 + $0x38] sm:$0xff] %vm1883, %v3790
        %4385 = vst.msk [vmem:[%s3734 + $0x40] sm:$0xff] %vm1883, %v3791
        %4386 = vst.msk [vmem:[%s3734 + $0x48] sm:$0xff] %vm1883, %v3792
        %4387 = vst.msk [vmem:[%s3734 + $0x50] sm:$0xff] %vm1883, %v3793
        %4388 = vst.msk [vmem:[%s3734 + $0x58] sm:$0xff] %vm1883, %v3794
        %4389 = vst.msk [vmem:[%s3734 + $0x60] sm:$0xff] %vm1883, %v3795
        %4390 = vst.msk [vmem:[%s3734 + $0x68] sm:$0xff] %vm1883, %v3796
        %4391 = vst.msk [vmem:[%s3734 + $0x70] sm:$0xff] %vm1883, %v3797
        %4392 = vst.msk [vmem:[%s3734 + $0x78] sm:$0xff] %vm1883, %v3798
        %p4393 = scmp.eq.s32.totalorder %s28, 2
        // Predicated region
        $region111: #{tpu_custom_call.1} parent=97 // pred_check
          %p4394 = pneg %p4393
        $region112: #{tpu_custom_call.1} parent=97 // pred_check_branch
          %4396 = sbr.rel (%p4394) target = $region114
        $region113: #{tpu_custom_call.1} parent=97 // pred_region
          %v4397 = vld [vmem:[#allocation4] sm:$0xff]
          %v4398 = vld [vmem:[#allocation4 + $0x18] sm:$0xff]
          %v4399 = vld [vmem:[#allocation4 + $0x30] sm:$0xff]
          %v4400 = vld [vmem:[#allocation4 + $0x48] sm:$0xff]
          %v4401 = vld [vmem:[#allocation4 + $0x60] sm:$0xff]
          %v4402 = vld [vmem:[#allocation4 + $0x78] sm:$0xff]
          %v4403 = vld [vmem:[#allocation4 + $0x90] sm:$0xff]
          %v4404 = vld [vmem:[#allocation4 + $0xa8] sm:$0xff]
          %v4405 = vld [vmem:[#allocation4 + $0xc0] sm:$0xff]
          %v4406 = vld [vmem:[#allocation4 + $0xd8] sm:$0xff]
          %v4407 = vld [vmem:[#allocation4 + $0xf0] sm:$0xff]
          %v4408 = vld [vmem:[#allocation4 + $0x108] sm:$0xff]
          %v4409 = vld [vmem:[#allocation4 + $0x120] sm:$0xff]
          %v4410 = vld [vmem:[#allocation4 + $0x138] sm:$0xff]
          %v4411 = vld [vmem:[#allocation4 + $0x150] sm:$0xff]
          %v4412 = vld [vmem:[#allocation4 + $0x168] sm:$0xff]
          %v4413 = vld [vmem:[#allocation3] sm:$0xff]
          %v4414 = vld [vmem:[#allocation3 + $0x8] sm:$0xff]
          %v4415 = vld [vmem:[#allocation3 + $0x10] sm:$0xff]
          %v4416 = vld [vmem:[#allocation3 + $0x18] sm:$0xff]
          %v4417 = vld [vmem:[#allocation3 + $0x20] sm:$0xff]
          %v4418 = vld [vmem:[#allocation3 + $0x28] sm:$0xff]
          %v4419 = vld [vmem:[#allocation3 + $0x30] sm:$0xff]
          %v4420 = vld [vmem:[#allocation3 + $0x38] sm:$0xff]
          %v4421 = vld [vmem:[#allocation3 + $0x40] sm:$0xff]
          %v4422 = vld [vmem:[#allocation3 + $0x48] sm:$0xff]
          %v4423 = vld [vmem:[#allocation3 + $0x50] sm:$0xff]
          %v4424 = vld [vmem:[#allocation3 + $0x58] sm:$0xff]
          %v4425 = vld [vmem:[#allocation3 + $0x60] sm:$0xff]
          %v4426 = vld [vmem:[#allocation3 + $0x68] sm:$0xff]
          %v4427 = vld [vmem:[#allocation3 + $0x70] sm:$0xff]
          %v4428 = vld [vmem:[#allocation3 + $0x78] sm:$0xff]
          %v4429 = vrcp.pop %v4413
          %v4430 = vmul.f32 1.0, %v4429
          %v4431 = vrcp.pop %v4414
          %v4432 = vmul.f32 1.0, %v4431
          %v4433 = vrcp.pop %v4415
          %v4434 = vmul.f32 1.0, %v4433
          %v4435 = vrcp.pop %v4416
          %v4436 = vmul.f32 1.0, %v4435
          %v4437 = vrcp.pop %v4417
          %v4438 = vmul.f32 1.0, %v4437
          %v4439 = vrcp.pop %v4418
          %v4440 = vmul.f32 1.0, %v4439
          %v4441 = vrcp.pop %v4419
          %v4442 = vmul.f32 1.0, %v4441
          %v4443 = vrcp.pop %v4420
          %v4444 = vmul.f32 1.0, %v4443
          %v4445 = vrcp.pop %v4421
          %v4446 = vmul.f32 1.0, %v4445
          %v4447 = vrcp.pop %v4422
          %v4448 = vmul.f32 1.0, %v4447
          %v4449 = vrcp.pop %v4423
          %v4450 = vmul.f32 1.0, %v4449
          %v4451 = vrcp.pop %v4424
          %v4452 = vmul.f32 1.0, %v4451
          %v4453 = vrcp.pop %v4425
          %v4454 = vmul.f32 1.0, %v4453
          %v4455 = vrcp.pop %v4426
          %v4456 = vmul.f32 1.0, %v4455
          %v4457 = vrcp.pop %v4427
          %v4458 = vmul.f32 1.0, %v4457
          %v4459 = vrcp.pop %v4428
          %v4460 = vmul.f32 1.0, %v4459
          %4462 = vset.pattern.permute.xlu0 0
          %4463 = vperm.xlu0 %4462, %v4430
          %v4464 = vpop.permute.xlu0 %4463
          %4467 = vset.pattern.permute.xlu0 0
          %4468 = vperm.xlu0 %4467, %v4432
          %v4469 = vpop.permute.xlu0 %4468
          %4472 = vset.pattern.permute.xlu0 0
          %4473 = vperm.xlu0 %4472, %v4434
          %v4474 = vpop.permute.xlu0 %4473
          %4477 = vset.pattern.permute.xlu0 0
          %4478 = vperm.xlu0 %4477, %v4436
          %v4479 = vpop.permute.xlu0 %4478
          %4482 = vset.pattern.permute.xlu0 0
          %4483 = vperm.xlu0 %4482, %v4438
          %v4484 = vpop.permute.xlu0 %4483
          %4487 = vset.pattern.permute.xlu0 0
          %4488 = vperm.xlu0 %4487, %v4440
          %v4489 = vpop.permute.xlu0 %4488
          %4492 = vset.pattern.permute.xlu0 0
          %4493 = vperm.xlu0 %4492, %v4442
          %v4494 = vpop.permute.xlu0 %4493
          %4497 = vset.pattern.permute.xlu0 0
          %4498 = vperm.xlu0 %4497, %v4444
          %v4499 = vpop.permute.xlu0 %4498
          %4502 = vset.pattern.permute.xlu0 0
          %4503 = vperm.xlu0 %4502, %v4446
          %v4504 = vpop.permute.xlu0 %4503
          %4507 = vset.pattern.permute.xlu0 0
          %4508 = vperm.xlu0 %4507, %v4448
          %v4509 = vpop.permute.xlu0 %4508
          %4512 = vset.pattern.permute.xlu0 0
          %4513 = vperm.xlu0 %4512, %v4450
          %v4514 = vpop.permute.xlu0 %4513
          %4517 = vset.pattern.permute.xlu0 0
          %4518 = vperm.xlu0 %4517, %v4452
          %v4519 = vpop.permute.xlu0 %4518
          %4522 = vset.pattern.permute.xlu0 0
          %4523 = vperm.xlu0 %4522, %v4454
          %v4524 = vpop.permute.xlu0 %4523
          %4527 = vset.pattern.permute.xlu0 0
          %4528 = vperm.xlu0 %4527, %v4456
          %v4529 = vpop.permute.xlu0 %4528
          %4532 = vset.pattern.permute.xlu0 0
          %4533 = vperm.xlu0 %4532, %v4458
          %v4534 = vpop.permute.xlu0 %4533
          %4537 = vset.pattern.permute.xlu0 0
          %4538 = vperm.xlu0 %4537, %v4460
          %v4539 = vpop.permute.xlu0 %4538
          %v4541 = vmul.f32 %v4397, %v4464
          %v4542 = vmul.f32 %v4398, %v4469
          %v4543 = vmul.f32 %v4399, %v4474
          %v4544 = vmul.f32 %v4400, %v4479
          %v4545 = vmul.f32 %v4401, %v4484
          %v4546 = vmul.f32 %v4402, %v4489
          %v4547 = vmul.f32 %v4403, %v4494
          %v4548 = vmul.f32 %v4404, %v4499
          %v4549 = vmul.f32 %v4405, %v4504
          %v4550 = vmul.f32 %v4406, %v4509
          %v4551 = vmul.f32 %v4407, %v4514
          %v4552 = vmul.f32 %v4408, %v4519
          %v4553 = vmul.f32 %v4409, %v4524
          %v4554 = vmul.f32 %v4410, %v4529
          %v4555 = vmul.f32 %v4411, %v4534
          %v4556 = vmul.f32 %v4412, %v4539
          %4557 = vst [vmem:[#allocation4] sm:$0xff] %v4541
          %4558 = vst [vmem:[#allocation4 + $0x18] sm:$0xff] %v4542
          %4559 = vst [vmem:[#allocation4 + $0x30] sm:$0xff] %v4543
          %4560 = vst [vmem:[#allocation4 + $0x48] sm:$0xff] %v4544
          %4561 = vst [vmem:[#allocation4 + $0x60] sm:$0xff] %v4545
          %4562 = vst [vmem:[#allocation4 + $0x78] sm:$0xff] %v4546
          %4563 = vst [vmem:[#allocation4 + $0x90] sm:$0xff] %v4547
          %4564 = vst [vmem:[#allocation4 + $0xa8] sm:$0xff] %v4548
          %4565 = vst [vmem:[#allocation4 + $0xc0] sm:$0xff] %v4549
          %4566 = vst [vmem:[#allocation4 + $0xd8] sm:$0xff] %v4550
          %4567 = vst [vmem:[#allocation4 + $0xf0] sm:$0xff] %v4551
          %4568 = vst [vmem:[#allocation4 + $0x108] sm:$0xff] %v4552
          %4569 = vst [vmem:[#allocation4 + $0x120] sm:$0xff] %v4553
          %4570 = vst [vmem:[#allocation4 + $0x138] sm:$0xff] %v4554
          %4571 = vst [vmem:[#allocation4 + $0x150] sm:$0xff] %v4555
          %4572 = vst [vmem:[#allocation4 + $0x168] sm:$0xff] %v4556
          %v4573 = vld [vmem:[#allocation4 + $0x8] sm:$0xff]
          %v4574 = vld [vmem:[#allocation4 + $0x20] sm:$0xff]
          %v4575 = vld [vmem:[#allocation4 + $0x38] sm:$0xff]
          %v4576 = vld [vmem:[#allocation4 + $0x50] sm:$0xff]
          %v4577 = vld [vmem:[#allocation4 + $0x68] sm:$0xff]
          %v4578 = vld [vmem:[#allocation4 + $0x80] sm:$0xff]
          %v4579 = vld [vmem:[#allocation4 + $0x98] sm:$0xff]
          %v4580 = vld [vmem:[#allocation4 + $0xb0] sm:$0xff]
          %v4581 = vld [vmem:[#allocation4 + $0xc8] sm:$0xff]
          %v4582 = vld [vmem:[#allocation4 + $0xe0] sm:$0xff]
          %v4583 = vld [vmem:[#allocation4 + $0xf8] sm:$0xff]
          %v4584 = vld [vmem:[#allocation4 + $0x110] sm:$0xff]
          %v4585 = vld [vmem:[#allocation4 + $0x128] sm:$0xff]
          %v4586 = vld [vmem:[#allocation4 + $0x140] sm:$0xff]
          %v4587 = vld [vmem:[#allocation4 + $0x158] sm:$0xff]
          %v4588 = vld [vmem:[#allocation4 + $0x170] sm:$0xff]
          %v4589 = vld [vmem:[%s2897] sm:$0xff]
          %v4590 = vld [vmem:[%s2897 + $0x8] sm:$0xff]
          %v4591 = vld [vmem:[%s2897 + $0x10] sm:$0xff]
          %v4592 = vld [vmem:[%s2897 + $0x18] sm:$0xff]
          %v4593 = vld [vmem:[%s2897 + $0x20] sm:$0xff]
          %v4594 = vld [vmem:[%s2897 + $0x28] sm:$0xff]
          %v4595 = vld [vmem:[%s2897 + $0x30] sm:$0xff]
          %v4596 = vld [vmem:[%s2897 + $0x38] sm:$0xff]
          %v4597 = vld [vmem:[%s2897 + $0x40] sm:$0xff]
          %v4598 = vld [vmem:[%s2897 + $0x48] sm:$0xff]
          %v4599 = vld [vmem:[%s2897 + $0x50] sm:$0xff]
          %v4600 = vld [vmem:[%s2897 + $0x58] sm:$0xff]
          %v4601 = vld [vmem:[%s2897 + $0x60] sm:$0xff]
          %v4602 = vld [vmem:[%s2897 + $0x68] sm:$0xff]
          %v4603 = vld [vmem:[%s2897 + $0x70] sm:$0xff]
          %v4604 = vld [vmem:[%s2897 + $0x78] sm:$0xff]
          %v4605 = vrcp.pop %v4589
          %v4606 = vmul.f32 1.0, %v4605
          %v4607 = vrcp.pop %v4590
          %v4608 = vmul.f32 1.0, %v4607
          %v4609 = vrcp.pop %v4591
          %v4610 = vmul.f32 1.0, %v4609
          %v4611 = vrcp.pop %v4592
          %v4612 = vmul.f32 1.0, %v4611
          %v4613 = vrcp.pop %v4593
          %v4614 = vmul.f32 1.0, %v4613
          %v4615 = vrcp.pop %v4594
          %v4616 = vmul.f32 1.0, %v4615
          %v4617 = vrcp.pop %v4595
          %v4618 = vmul.f32 1.0, %v4617
          %v4619 = vrcp.pop %v4596
          %v4620 = vmul.f32 1.0, %v4619
          %v4621 = vrcp.pop %v4597
          %v4622 = vmul.f32 1.0, %v4621
          %v4623 = vrcp.pop %v4598
          %v4624 = vmul.f32 1.0, %v4623
          %v4625 = vrcp.pop %v4599
          %v4626 = vmul.f32 1.0, %v4625
          %v4627 = vrcp.pop %v4600
          %v4628 = vmul.f32 1.0, %v4627
          %v4629 = vrcp.pop %v4601
          %v4630 = vmul.f32 1.0, %v4629
          %v4631 = vrcp.pop %v4602
          %v4632 = vmul.f32 1.0, %v4631
          %v4633 = vrcp.pop %v4603
          %v4634 = vmul.f32 1.0, %v4633
          %v4635 = vrcp.pop %v4604
          %v4636 = vmul.f32 1.0, %v4635
          %4638 = vset.pattern.permute.xlu0 0
          %4639 = vperm.xlu0 %4638, %v4606
          %v4640 = vpop.permute.xlu0 %4639
          %4643 = vset.pattern.permute.xlu0 0
          %4644 = vperm.xlu0 %4643, %v4608
          %v4645 = vpop.permute.xlu0 %4644
          %4648 = vset.pattern.permute.xlu0 0
          %4649 = vperm.xlu0 %4648, %v4610
          %v4650 = vpop.permute.xlu0 %4649
          %4653 = vset.pattern.permute.xlu0 0
          %4654 = vperm.xlu0 %4653, %v4612
          %v4655 = vpop.permute.xlu0 %4654
          %4658 = vset.pattern.permute.xlu0 0
          %4659 = vperm.xlu0 %4658, %v4614
          %v4660 = vpop.permute.xlu0 %4659
          %4663 = vset.pattern.permute.xlu0 0
          %4664 = vperm.xlu0 %4663, %v4616
          %v4665 = vpop.permute.xlu0 %4664
          %4668 = vset.pattern.permute.xlu0 0
          %4669 = vperm.xlu0 %4668, %v4618
          %v4670 = vpop.permute.xlu0 %4669
          %4673 = vset.pattern.permute.xlu0 0
          %4674 = vperm.xlu0 %4673, %v4620
          %v4675 = vpop.permute.xlu0 %4674
          %4678 = vset.pattern.permute.xlu0 0
          %4679 = vperm.xlu0 %4678, %v4622
          %v4680 = vpop.permute.xlu0 %4679
          %4683 = vset.pattern.permute.xlu0 0
          %4684 = vperm.xlu0 %4683, %v4624
          %v4685 = vpop.permute.xlu0 %4684
          %4688 = vset.pattern.permute.xlu0 0
          %4689 = vperm.xlu0 %4688, %v4626
          %v4690 = vpop.permute.xlu0 %4689
          %4693 = vset.pattern.permute.xlu0 0
          %4694 = vperm.xlu0 %4693, %v4628
          %v4695 = vpop.permute.xlu0 %4694
          %4698 = vset.pattern.permute.xlu0 0
          %4699 = vperm.xlu0 %4698, %v4630
          %v4700 = vpop.permute.xlu0 %4699
          %4703 = vset.pattern.permute.xlu0 0
          %4704 = vperm.xlu0 %4703, %v4632
          %v4705 = vpop.permute.xlu0 %4704
          %4708 = vset.pattern.permute.xlu0 0
          %4709 = vperm.xlu0 %4708, %v4634
          %v4710 = vpop.permute.xlu0 %4709
          %4713 = vset.pattern.permute.xlu0 0
          %4714 = vperm.xlu0 %4713, %v4636
          %v4715 = vpop.permute.xlu0 %4714
          %v4717 = vmul.f32 %v4573, %v4640
          %v4718 = vmul.f32 %v4574, %v4645
          %v4719 = vmul.f32 %v4575, %v4650
          %v4720 = vmul.f32 %v4576, %v4655
          %v4721 = vmul.f32 %v4577, %v4660
          %v4722 = vmul.f32 %v4578, %v4665
          %v4723 = vmul.f32 %v4579, %v4670
          %v4724 = vmul.f32 %v4580, %v4675
          %v4725 = vmul.f32 %v4581, %v4680
          %v4726 = vmul.f32 %v4582, %v4685
          %v4727 = vmul.f32 %v4583, %v4690
          %v4728 = vmul.f32 %v4584, %v4695
          %v4729 = vmul.f32 %v4585, %v4700
          %v4730 = vmul.f32 %v4586, %v4705
          %v4731 = vmul.f32 %v4587, %v4710
          %v4732 = vmul.f32 %v4588, %v4715
          %4733 = vst [vmem:[#allocation4 + $0x8] sm:$0xff] %v4717
          %4734 = vst [vmem:[#allocation4 + $0x20] sm:$0xff] %v4718
          %4735 = vst [vmem:[#allocation4 + $0x38] sm:$0xff] %v4719
          %4736 = vst [vmem:[#allocation4 + $0x50] sm:$0xff] %v4720
          %4737 = vst [vmem:[#allocation4 + $0x68] sm:$0xff] %v4721
          %4738 = vst [vmem:[#allocation4 + $0x80] sm:$0xff] %v4722
          %4739 = vst [vmem:[#allocation4 + $0x98] sm:$0xff] %v4723
          %4740 = vst [vmem:[#allocation4 + $0xb0] sm:$0xff] %v4724
          %4741 = vst [vmem:[#allocation4 + $0xc8] sm:$0xff] %v4725
          %4742 = vst [vmem:[#allocation4 + $0xe0] sm:$0xff] %v4726
          %4743 = vst [vmem:[#allocation4 + $0xf8] sm:$0xff] %v4727
          %4744 = vst [vmem:[#allocation4 + $0x110] sm:$0xff] %v4728
          %4745 = vst [vmem:[#allocation4 + $0x128] sm:$0xff] %v4729
          %4746 = vst [vmem:[#allocation4 + $0x140] sm:$0xff] %v4730
          %4747 = vst [vmem:[#allocation4 + $0x158] sm:$0xff] %v4731
          %4748 = vst [vmem:[#allocation4 + $0x170] sm:$0xff] %v4732
          %v4749 = vld [vmem:[#allocation4 + $0x10] sm:$0xff]
          %v4750 = vld [vmem:[#allocation4 + $0x28] sm:$0xff]
          %v4751 = vld [vmem:[#allocation4 + $0x40] sm:$0xff]
          %v4752 = vld [vmem:[#allocation4 + $0x58] sm:$0xff]
          %v4753 = vld [vmem:[#allocation4 + $0x70] sm:$0xff]
          %v4754 = vld [vmem:[#allocation4 + $0x88] sm:$0xff]
          %v4755 = vld [vmem:[#allocation4 + $0xa0] sm:$0xff]
          %v4756 = vld [vmem:[#allocation4 + $0xb8] sm:$0xff]
          %v4757 = vld [vmem:[#allocation4 + $0xd0] sm:$0xff]
          %v4758 = vld [vmem:[#allocation4 + $0xe8] sm:$0xff]
          %v4759 = vld [vmem:[#allocation4 + $0x100] sm:$0xff]
          %v4760 = vld [vmem:[#allocation4 + $0x118] sm:$0xff]
          %v4761 = vld [vmem:[#allocation4 + $0x130] sm:$0xff]
          %v4762 = vld [vmem:[#allocation4 + $0x148] sm:$0xff]
          %v4763 = vld [vmem:[#allocation4 + $0x160] sm:$0xff]
          %v4764 = vld [vmem:[#allocation4 + $0x178] sm:$0xff]
          %v4765 = vld [vmem:[%s3991] sm:$0xff]
          %v4766 = vld [vmem:[%s3991 + $0x8] sm:$0xff]
          %v4767 = vld [vmem:[%s3991 + $0x10] sm:$0xff]
          %v4768 = vld [vmem:[%s3991 + $0x18] sm:$0xff]
          %v4769 = vld [vmem:[%s3991 + $0x20] sm:$0xff]
          %v4770 = vld [vmem:[%s3991 + $0x28] sm:$0xff]
          %v4771 = vld [vmem:[%s3991 + $0x30] sm:$0xff]
          %v4772 = vld [vmem:[%s3991 + $0x38] sm:$0xff]
          %v4773 = vld [vmem:[%s3991 + $0x40] sm:$0xff]
          %v4774 = vld [vmem:[%s3991 + $0x48] sm:$0xff]
          %v4775 = vld [vmem:[%s3991 + $0x50] sm:$0xff]
          %v4776 = vld [vmem:[%s3991 + $0x58] sm:$0xff]
          %v4777 = vld [vmem:[%s3991 + $0x60] sm:$0xff]
          %v4778 = vld [vmem:[%s3991 + $0x68] sm:$0xff]
          %v4779 = vld [vmem:[%s3991 + $0x70] sm:$0xff]
          %v4780 = vld [vmem:[%s3991 + $0x78] sm:$0xff]
          %v4781 = vrcp.pop %v4765
          %v4782 = vmul.f32 1.0, %v4781
          %v4783 = vrcp.pop %v4766
          %v4784 = vmul.f32 1.0, %v4783
          %v4785 = vrcp.pop %v4767
          %v4786 = vmul.f32 1.0, %v4785
          %v4787 = vrcp.pop %v4768
          %v4788 = vmul.f32 1.0, %v4787
          %v4789 = vrcp.pop %v4769
          %v4790 = vmul.f32 1.0, %v4789
          %v4791 = vrcp.pop %v4770
          %v4792 = vmul.f32 1.0, %v4791
          %v4793 = vrcp.pop %v4771
          %v4794 = vmul.f32 1.0, %v4793
          %v4795 = vrcp.pop %v4772
          %v4796 = vmul.f32 1.0, %v4795
          %v4797 = vrcp.pop %v4773
          %v4798 = vmul.f32 1.0, %v4797
          %v4799 = vrcp.pop %v4774
          %v4800 = vmul.f32 1.0, %v4799
          %v4801 = vrcp.pop %v4775
          %v4802 = vmul.f32 1.0, %v4801
          %v4803 = vrcp.pop %v4776
          %v4804 = vmul.f32 1.0, %v4803
          %v4805 = vrcp.pop %v4777
          %v4806 = vmul.f32 1.0, %v4805
          %v4807 = vrcp.pop %v4778
          %v4808 = vmul.f32 1.0, %v4807
          %v4809 = vrcp.pop %v4779
          %v4810 = vmul.f32 1.0, %v4809
          %v4811 = vrcp.pop %v4780
          %v4812 = vmul.f32 1.0, %v4811
          %4814 = vset.pattern.permute.xlu0 0
          %4815 = vperm.xlu0 %4814, %v4782
          %v4816 = vpop.permute.xlu0 %4815
          %4819 = vset.pattern.permute.xlu0 0
          %4820 = vperm.xlu0 %4819, %v4784
          %v4821 = vpop.permute.xlu0 %4820
          %4824 = vset.pattern.permute.xlu0 0
          %4825 = vperm.xlu0 %4824, %v4786
          %v4826 = vpop.permute.xlu0 %4825
          %4829 = vset.pattern.permute.xlu0 0
          %4830 = vperm.xlu0 %4829, %v4788
          %v4831 = vpop.permute.xlu0 %4830
          %4834 = vset.pattern.permute.xlu0 0
          %4835 = vperm.xlu0 %4834, %v4790
          %v4836 = vpop.permute.xlu0 %4835
          %4839 = vset.pattern.permute.xlu0 0
          %4840 = vperm.xlu0 %4839, %v4792
          %v4841 = vpop.permute.xlu0 %4840
          %4844 = vset.pattern.permute.xlu0 0
          %4845 = vperm.xlu0 %4844, %v4794
          %v4846 = vpop.permute.xlu0 %4845
          %4849 = vset.pattern.permute.xlu0 0
          %4850 = vperm.xlu0 %4849, %v4796
          %v4851 = vpop.permute.xlu0 %4850
          %4854 = vset.pattern.permute.xlu0 0
          %4855 = vperm.xlu0 %4854, %v4798
          %v4856 = vpop.permute.xlu0 %4855
          %4859 = vset.pattern.permute.xlu0 0
          %4860 = vperm.xlu0 %4859, %v4800
          %v4861 = vpop.permute.xlu0 %4860
          %4864 = vset.pattern.permute.xlu0 0
          %4865 = vperm.xlu0 %4864, %v4802
          %v4866 = vpop.permute.xlu0 %4865
          %4869 = vset.pattern.permute.xlu0 0
          %4870 = vperm.xlu0 %4869, %v4804
          %v4871 = vpop.permute.xlu0 %4870
          %4874 = vset.pattern.permute.xlu0 0
          %4875 = vperm.xlu0 %4874, %v4806
          %v4876 = vpop.permute.xlu0 %4875
          %4879 = vset.pattern.permute.xlu0 0
          %4880 = vperm.xlu0 %4879, %v4808
          %v4881 = vpop.permute.xlu0 %4880
          %4884 = vset.pattern.permute.xlu0 0
          %4885 = vperm.xlu0 %4884, %v4810
          %v4886 = vpop.permute.xlu0 %4885
          %4889 = vset.pattern.permute.xlu0 0
          %4890 = vperm.xlu0 %4889, %v4812
          %v4891 = vpop.permute.xlu0 %4890
          %v4893 = vmul.f32 %v4749, %v4816
          %v4894 = vmul.f32 %v4750, %v4821
          %v4895 = vmul.f32 %v4751, %v4826
          %v4896 = vmul.f32 %v4752, %v4831
          %v4897 = vmul.f32 %v4753, %v4836
          %v4898 = vmul.f32 %v4754, %v4841
          %v4899 = vmul.f32 %v4755, %v4846
          %v4900 = vmul.f32 %v4756, %v4851
          %v4901 = vmul.f32 %v4757, %v4856
          %v4902 = vmul.f32 %v4758, %v4861
          %v4903 = vmul.f32 %v4759, %v4866
          %v4904 = vmul.f32 %v4760, %v4871
          %v4905 = vmul.f32 %v4761, %v4876
          %v4906 = vmul.f32 %v4762, %v4881
          %v4907 = vmul.f32 %v4763, %v4886
          %v4908 = vmul.f32 %v4764, %v4891
          %4909 = vst [vmem:[#allocation4 + $0x10] sm:$0xff] %v4893
          %4910 = vst [vmem:[#allocation4 + $0x28] sm:$0xff] %v4894
          %4911 = vst [vmem:[#allocation4 + $0x40] sm:$0xff] %v4895
          %4912 = vst [vmem:[#allocation4 + $0x58] sm:$0xff] %v4896
          %4913 = vst [vmem:[#allocation4 + $0x70] sm:$0xff] %v4897
          %4914 = vst [vmem:[#allocation4 + $0x88] sm:$0xff] %v4898
          %4915 = vst [vmem:[#allocation4 + $0xa0] sm:$0xff] %v4899
          %4916 = vst [vmem:[#allocation4 + $0xb8] sm:$0xff] %v4900
          %4917 = vst [vmem:[#allocation4 + $0xd0] sm:$0xff] %v4901
          %4918 = vst [vmem:[#allocation4 + $0xe8] sm:$0xff] %v4902
          %4919 = vst [vmem:[#allocation4 + $0x100] sm:$0xff] %v4903
          %4920 = vst [vmem:[#allocation4 + $0x118] sm:$0xff] %v4904
          %4921 = vst [vmem:[#allocation4 + $0x130] sm:$0xff] %v4905
          %4922 = vst [vmem:[#allocation4 + $0x148] sm:$0xff] %v4906
          %4923 = vst [vmem:[#allocation4 + $0x160] sm:$0xff] %v4907
          %4924 = vst [vmem:[#allocation4 + $0x178] sm:$0xff] %v4908
          %v4925 = vld [vmem:[#allocation4] sm:$0xff]
          %v4926 = vld [vmem:[#allocation4 + $0x8] sm:$0xff]
          %v4927 = vld [vmem:[#allocation4 + $0x10] sm:$0xff]
          %v4928 = vld [vmem:[#allocation4 + $0x18] sm:$0xff]
          %v4929 = vld [vmem:[#allocation4 + $0x20] sm:$0xff]
          %v4930 = vld [vmem:[#allocation4 + $0x28] sm:$0xff]
          %v4931 = vld [vmem:[#allocation4 + $0x30] sm:$0xff]
          %v4932 = vld [vmem:[#allocation4 + $0x38] sm:$0xff]
          %v4933 = vld [vmem:[#allocation4 + $0x40] sm:$0xff]
          %v4934 = vld [vmem:[#allocation4 + $0x48] sm:$0xff]
          %v4935 = vld [vmem:[#allocation4 + $0x50] sm:$0xff]
          %v4936 = vld [vmem:[#allocation4 + $0x58] sm:$0xff]
          %v4937 = vld [vmem:[#allocation4 + $0x60] sm:$0xff]
          %v4938 = vld [vmem:[#allocation4 + $0x68] sm:$0xff]
          %v4939 = vld [vmem:[#allocation4 + $0x70] sm:$0xff]
          %v4940 = vld [vmem:[#allocation4 + $0x78] sm:$0xff]
          %v4941 = vld [vmem:[#allocation4 + $0x80] sm:$0xff]
          %v4942 = vld [vmem:[#allocation4 + $0x88] sm:$0xff]
          %v4943 = vld [vmem:[#allocation4 + $0x90] sm:$0xff]
          %v4944 = vld [vmem:[#allocation4 + $0x98] sm:$0xff]
          %v4945 = vld [vmem:[#allocation4 + $0xa0] sm:$0xff]
          %v4946 = vld [vmem:[#allocation4 + $0xa8] sm:$0xff]
          %v4947 = vld [vmem:[#allocation4 + $0xb0] sm:$0xff]
          %v4948 = vld [vmem:[#allocation4 + $0xb8] sm:$0xff]
          %v4949 = vld [vmem:[#allocation4 + $0xc0] sm:$0xff]
          %v4950 = vld [vmem:[#allocation4 + $0xc8] sm:$0xff]
          %v4951 = vld [vmem:[#allocation4 + $0xd0] sm:$0xff]
          %v4952 = vld [vmem:[#allocation4 + $0xd8] sm:$0xff]
          %v4953 = vld [vmem:[#allocation4 + $0xe0] sm:$0xff]
          %v4954 = vld [vmem:[#allocation4 + $0xe8] sm:$0xff]
          %v4955 = vld [vmem:[#allocation4 + $0xf0] sm:$0xff]
          %v4956 = vld [vmem:[#allocation4 + $0xf8] sm:$0xff]
          %v4957 = vld [vmem:[#allocation4 + $0x100] sm:$0xff]
          %v4958 = vld [vmem:[#allocation4 + $0x108] sm:$0xff]
          %v4959 = vld [vmem:[#allocation4 + $0x110] sm:$0xff]
          %v4960 = vld [vmem:[#allocation4 + $0x118] sm:$0xff]
          %v4961 = vld [vmem:[#allocation4 + $0x120] sm:$0xff]
          %v4962 = vld [vmem:[#allocation4 + $0x128] sm:$0xff]
          %v4963 = vld [vmem:[#allocation4 + $0x130] sm:$0xff]
          %v4964 = vld [vmem:[#allocation4 + $0x138] sm:$0xff]
          %v4965 = vld [vmem:[#allocation4 + $0x140] sm:$0xff]
          %v4966 = vld [vmem:[#allocation4 + $0x148] sm:$0xff]
          %v4967 = vld [vmem:[#allocation4 + $0x150] sm:$0xff]
          %v4968 = vld [vmem:[#allocation4 + $0x158] sm:$0xff]
          %v4969 = vld [vmem:[#allocation4 + $0x160] sm:$0xff]
          %v4970 = vld [vmem:[#allocation4 + $0x168] sm:$0xff]
          %v4971 = vld [vmem:[#allocation4 + $0x170] sm:$0xff]
          %v4972 = vld [vmem:[#allocation4 + $0x178] sm:$0xff]
          %v4973 = vld [vmem:[%s6] sm:$0x7]
          %v4975 = vlaneseq
          %v4976 = vshrl.u32 %v4975, 7
          %v4977 = vsub.s32 0, %v4976
          %v4978 = vrot.slane %v4973, %v4977
          %v4979 = vlaneseq
          %v4980 = vshrl.u32 %v4979, 7
          %v4981 = vsub.s32 1, %v4980
          %v4982 = vrot.slane %v4973, %v4981
          %v4983 = vlaneseq
          %v4984 = vshrl.u32 %v4983, 7
          %v4985 = vsub.s32 2, %v4984
          %v4986 = vrot.slane %v4973, %v4985
          %v4990 = vadd.f32 %v4925, %v4978
          %v4991 = vadd.f32 %v4926, %v4982
          %v4992 = vadd.f32 %v4927, %v4986
          %v4993 = vadd.f32 %v4928, %v4978
          %v4994 = vadd.f32 %v4929, %v4982
          %v4995 = vadd.f32 %v4930, %v4986
          %v4996 = vadd.f32 %v4931, %v4978
          %v4997 = vadd.f32 %v4932, %v4982
          %v4998 = vadd.f32 %v4933, %v4986
          %v4999 = vadd.f32 %v4934, %v4978
          %v5000 = vadd.f32 %v4935, %v4982
          %v5001 = vadd.f32 %v4936, %v4986
          %v5002 = vadd.f32 %v4937, %v4978
          %v5003 = vadd.f32 %v4938, %v4982
          %v5004 = vadd.f32 %v4939, %v4986
          %v5005 = vadd.f32 %v4940, %v4978
          %v5006 = vadd.f32 %v4941, %v4982
          %v5007 = vadd.f32 %v4942, %v4986
          %v5008 = vadd.f32 %v4943, %v4978
          %v5009 = vadd.f32 %v4944, %v4982
          %v5010 = vadd.f32 %v4945, %v4986
          %v5011 = vadd.f32 %v4946, %v4978
          %v5012 = vadd.f32 %v4947, %v4982
          %v5013 = vadd.f32 %v4948, %v4986
          %v5014 = vadd.f32 %v4949, %v4978
          %v5015 = vadd.f32 %v4950, %v4982
          %v5016 = vadd.f32 %v4951, %v4986
          %v5017 = vadd.f32 %v4952, %v4978
          %v5018 = vadd.f32 %v4953, %v4982
          %v5019 = vadd.f32 %v4954, %v4986
          %v5020 = vadd.f32 %v4955, %v4978
          %v5021 = vadd.f32 %v4956, %v4982
          %v5022 = vadd.f32 %v4957, %v4986
          %v5023 = vadd.f32 %v4958, %v4978
          %v5024 = vadd.f32 %v4959, %v4982
          %v5025 = vadd.f32 %v4960, %v4986
          %v5026 = vadd.f32 %v4961, %v4978
          %v5027 = vadd.f32 %v4962, %v4982
          %v5028 = vadd.f32 %v4963, %v4986
          %v5029 = vadd.f32 %v4964, %v4978
          %v5030 = vadd.f32 %v4965, %v4982
          %v5031 = vadd.f32 %v4966, %v4986
          %v5032 = vadd.f32 %v4967, %v4978
          %v5033 = vadd.f32 %v4968, %v4982
          %v5034 = vadd.f32 %v4969, %v4986
          %v5035 = vadd.f32 %v4970, %v4978
          %v5036 = vadd.f32 %v4971, %v4982
          %v5037 = vadd.f32 %v4972, %v4986
          %v5038 = vmax.f32 %v4990, 0.0
          %v5039 = vmax.f32 %v4991, 0.0
          %v5040 = vmax.f32 %v4992, 0.0
          %v5041 = vmax.f32 %v4993, 0.0
          %v5042 = vmax.f32 %v4994, 0.0
          %v5043 = vmax.f32 %v4995, 0.0
          %v5044 = vmax.f32 %v4996, 0.0
          %v5045 = vmax.f32 %v4997, 0.0
          %v5046 = vmax.f32 %v4998, 0.0
          %v5047 = vmax.f32 %v4999, 0.0
          %v5048 = vmax.f32 %v5000, 0.0
          %v5049 = vmax.f32 %v5001, 0.0
          %v5050 = vmax.f32 %v5002, 0.0
          %v5051 = vmax.f32 %v5003, 0.0
          %v5052 = vmax.f32 %v5004, 0.0
          %v5053 = vmax.f32 %v5005, 0.0
          %v5054 = vmax.f32 %v5006, 0.0
          %v5055 = vmax.f32 %v5007, 0.0
          %v5056 = vmax.f32 %v5008, 0.0
          %v5057 = vmax.f32 %v5009, 0.0
          %v5058 = vmax.f32 %v5010, 0.0
          %v5059 = vmax.f32 %v5011, 0.0
          %v5060 = vmax.f32 %v5012, 0.0
          %v5061 = vmax.f32 %v5013, 0.0
          %v5062 = vmax.f32 %v5014, 0.0
          %v5063 = vmax.f32 %v5015, 0.0
          %v5064 = vmax.f32 %v5016, 0.0
          %v5065 = vmax.f32 %v5017, 0.0
          %v5066 = vmax.f32 %v5018, 0.0
          %v5067 = vmax.f32 %v5019, 0.0
          %v5068 = vmax.f32 %v5020, 0.0
          %v5069 = vmax.f32 %v5021, 0.0
          %v5070 = vmax.f32 %v5022, 0.0
          %v5071 = vmax.f32 %v5023, 0.0
          %v5072 = vmax.f32 %v5024, 0.0
          %v5073 = vmax.f32 %v5025, 0.0
          %v5074 = vmax.f32 %v5026, 0.0
          %v5075 = vmax.f32 %v5027, 0.0
          %v5076 = vmax.f32 %v5028, 0.0
          %v5077 = vmax.f32 %v5029, 0.0
          %v5078 = vmax.f32 %v5030, 0.0
          %v5079 = vmax.f32 %v5031, 0.0
          %v5080 = vmax.f32 %v5032, 0.0
          %v5081 = vmax.f32 %v5033, 0.0
          %v5082 = vmax.f32 %v5034, 0.0
          %v5083 = vmax.f32 %v5035, 0.0
          %v5084 = vmax.f32 %v5036, 0.0
          %v5085 = vmax.f32 %v5037, 0.0
          %v5086 = vld [vmem:[#allocation5] sm:$0x77]
          %v5087 = vld [vmem:[#allocation5 + $0x8] sm:$0x7]
          %v5088 = vld [vmem:[%s515] sm:$0x7]
          %5089 = vmatprep.subr.mxu0 %v5084
          %5090 = vmatpush1.msra.mxu0 %v5083
          %5091 = vmatprep.subr.mxu0 %v5081
          %5092 = vmatpush1.msra.mxu0 %v5080
          %5093 = vmatprep.subr.mxu0 %v5078
          %5094 = vmatpush1.msra.mxu0 %v5077
          %5095 = vmatprep.subr.mxu0 %v5075
          %5096 = vmatpush1.msra.mxu0 %v5074
          %5097 = vmatprep.subr.mxu0 %v5072
          %5098 = vmatpush1.msra.mxu0 %v5071
          %5099 = vmatprep.subr.mxu0 %v5069
          %5100 = vmatpush1.msra.mxu0 %v5068
          %5101 = vmatprep.subr.mxu0 %v5066
          %5102 = vmatpush1.msra.mxu0 %v5065
          %5103 = vmatprep.subr.mxu0 %v5063
          %5104 = vmatpush1.msra.mxu0 %v5062
          %5105 = vmatprep.subr.mxu0 %v5060
          %5106 = vmatpush1.msra.mxu0 %v5059
          %5107 = vmatprep.subr.mxu0 %v5057
          %5108 = vmatpush1.msra.mxu0 %v5056
          %5109 = vmatprep.subr.mxu0 %v5054
          %5110 = vmatpush1.msra.mxu0 %v5053
          %5111 = vmatprep.subr.mxu0 %v5051
          %5112 = vmatpush1.msra.mxu0 %v5050
          %5113 = vmatprep.subr.mxu0 %v5048
          %5114 = vmatpush1.msra.mxu0 %v5047
          %5115 = vmatprep.subr.mxu0 %v5045
          %5116 = vmatpush1.msra.mxu0 %v5044
          %5117 = vmatprep.subr.mxu0 %v5042
          %5118 = vmatpush1.msra.mxu0 %v5041
          %5119 = vmatprep.subr.mxu0 %v5039
          %5120 = vmatpush1.msra.mxu0 %v5038
          %5121 = vmatprep.subr.mxu0 0.0
          %5122 = vmatpush2.msra.mxu0 0.0
          %5123 = vmatprep.subr.mxu0 0.0
          %5124 = vmatpush2.msra.mxu0 0.0
          %5125 = vmatprep.subr.mxu0 0.0
          %5126 = vmatpush2.msra.mxu0 0.0
          %5127 = vmatprep.subr.mxu0 0.0
          %5128 = vmatpush2.msra.mxu0 0.0
          %5129 = vmatprep.subr.mxu0 0.0
          %5130 = vmatpush2.msra.mxu0 0.0
          %5131 = vmatprep.subr.mxu0 0.0
          %5132 = vmatpush2.msra.mxu0 0.0
          %5133 = vmatprep.subr.mxu0 0.0
          %5134 = vmatpush2.msra.mxu0 0.0
          %5135 = vmatprep.subr.mxu0 0.0
          %5136 = vmatpush2.msra.mxu0 0.0
          %5137 = vmatprep.subr.mxu0 0.0
          %5138 = vmatpush2.msra.mxu0 0.0
          %5139 = vmatprep.subr.mxu0 0.0
          %5140 = vmatpush2.msra.mxu0 0.0
          %5141 = vmatprep.subr.mxu0 0.0
          %5142 = vmatpush2.msra.mxu0 0.0
          %5143 = vmatprep.subr.mxu0 0.0
          %5144 = vmatpush2.msra.mxu0 0.0
          %5145 = vmatprep.subr.mxu0 0.0
          %5146 = vmatpush2.msra.mxu0 0.0
          %5147 = vmatprep.subr.mxu0 0.0
          %5148 = vmatpush2.msra.mxu0 0.0
          %5149 = vmatprep.subr.mxu0 0.0
          %5150 = vmatpush2.msra.mxu0 0.0
          %5151 = vmatprep.subr.mxu0 0.0
          %5152 = vmatpush2.msra.mxu0 0.0
          %5153 = vmatprep.mubr.f32.mxu0 0.0
          %5154 = vmatmul.mubr.f32.gmra.mxu0 %v5088
          %v5155 = vpop.f32.mrf.mxu0
          %v5156 = vadd.f32 0.0, %v5155
          %v5157 = vpop.f32.mrf.mxu0
          %v5158 = vadd.f32 0.0, %v5157
          %5159 = vdwg.mxu0
          %5160 = vmatprep.subr.mxu0 0.0
          %5161 = vmatpush1.msra.mxu0 %v5085
          %5162 = vmatprep.subr.mxu0 0.0
          %5163 = vmatpush1.msra.mxu0 %v5082
          %5164 = vmatprep.subr.mxu0 0.0
          %5165 = vmatpush1.msra.mxu0 %v5079
          %5166 = vmatprep.subr.mxu0 0.0
          %5167 = vmatpush1.msra.mxu0 %v5076
          %5168 = vmatprep.subr.mxu0 0.0
          %5169 = vmatpush1.msra.mxu0 %v5073
          %5170 = vmatprep.subr.mxu0 0.0
          %5171 = vmatpush1.msra.mxu0 %v5070
          %5172 = vmatprep.subr.mxu0 0.0
          %5173 = vmatpush1.msra.mxu0 %v5067
          %5174 = vmatprep.subr.mxu0 0.0
          %5175 = vmatpush1.msra.mxu0 %v5064
          %5176 = vmatprep.subr.mxu0 0.0
          %5177 = vmatpush1.msra.mxu0 %v5061
          %5178 = vmatprep.subr.mxu0 0.0
          %5179 = vmatpush1.msra.mxu0 %v5058
          %5180 = vmatprep.subr.mxu0 0.0
          %5181 = vmatpush1.msra.mxu0 %v5055
          %5182 = vmatprep.subr.mxu0 0.0
          %5183 = vmatpush1.msra.mxu0 %v5052
          %5184 = vmatprep.subr.mxu0 0.0
          %5185 = vmatpush1.msra.mxu0 %v5049
          %5186 = vmatprep.subr.mxu0 0.0
          %5187 = vmatpush1.msra.mxu0 %v5046
          %5188 = vmatprep.subr.mxu0 0.0
          %5189 = vmatpush1.msra.mxu0 %v5043
          %5190 = vmatprep.subr.mxu0 0.0
          %5191 = vmatpush1.msra.mxu0 %v5040
          %5192 = vmatprep.subr.mxu0 0.0
          %5193 = vmatpush2.msra.mxu0 0.0
          %5194 = vmatprep.subr.mxu0 0.0
          %5195 = vmatpush2.msra.mxu0 0.0
          %5196 = vmatprep.subr.mxu0 0.0
          %5197 = vmatpush2.msra.mxu0 0.0
          %5198 = vmatprep.subr.mxu0 0.0
          %5199 = vmatpush2.msra.mxu0 0.0
          %5200 = vmatprep.subr.mxu0 0.0
          %5201 = vmatpush2.msra.mxu0 0.0
          %5202 = vmatprep.subr.mxu0 0.0
          %5203 = vmatpush2.msra.mxu0 0.0
          %5204 = vmatprep.subr.mxu0 0.0
          %5205 = vmatpush2.msra.mxu0 0.0
          %5206 = vmatprep.subr.mxu0 0.0
          %5207 = vmatpush2.msra.mxu0 0.0
          %5208 = vmatprep.subr.mxu0 0.0
          %5209 = vmatpush2.msra.mxu0 0.0
          %5210 = vmatprep.subr.mxu0 0.0
          %5211 = vmatpush2.msra.mxu0 0.0
          %5212 = vmatprep.subr.mxu0 0.0
          %5213 = vmatpush2.msra.mxu0 0.0
          %5214 = vmatprep.subr.mxu0 0.0
          %5215 = vmatpush2.msra.mxu0 0.0
          %5216 = vmatprep.subr.mxu0 0.0
          %5217 = vmatpush2.msra.mxu0 0.0
          %5218 = vmatprep.subr.mxu0 0.0
          %5219 = vmatpush2.msra.mxu0 0.0
          %5220 = vmatprep.subr.mxu0 0.0
          %5221 = vmatpush2.msra.mxu0 0.0
          %5222 = vmatprep.subr.mxu0 0.0
          %5223 = vmatpush2.msra.mxu0 0.0
          %5224 = vmatprep.mubr.f32.mxu0 0.0
          %5225 = vmatmul.mubr.f32.gmra.mxu0 %v5088
          %v5226 = vpop.f32.mrf.mxu0
          %v5227 = vadd.f32 0.0, %v5226
          %v5228 = vpop.f32.mrf.mxu0
          %5229 = vdwg.mxu0
          %v5232 = vcombine.low %v5156, %v5158
          %v5234 = vadd.f32 %v5086, %v5232
          %v5235 = vadd.f32 %v5087, %v5227
          %5236 = vst [vmem:[#allocation5] sm:$0x77] %v5234
          %5237 = vst [vmem:[#allocation5 + $0x8] sm:$0x7] %v5235
        $region114: #{tpu_custom_call.1} parent=97 // pred_fallthru
          _
        %p5238 = scmp.eq.s32.totalorder %s27, 2
        %p5239 = pnand %p5238, %p4393
        %p5240 = pneg %p5239
        // Predicated region
        $region115: #{tpu_custom_call.1} parent=97 // pred_check
          _
        $region116: #{tpu_custom_call.1} parent=97 // pred_check_branch
          %5242 = sbr.rel (%p5239) target = $region118
        $region117: #{tpu_custom_call.1} parent=97 // pred_region
          %v5243 = vld [vmem:[#allocation5] sm:$0x77]
          %v5244 = vld [vmem:[#allocation5 + $0x8] sm:$0x7]
          %v5245 = vld [vmem:[%s9] sm:$0xff]
          %v5246 = vld [vmem:[%s9 + $0x8] sm:$0xff]
          %v5247 = vld [vmem:[%s9 + $0x10] sm:$0xff]
          %v5248 = vld [vmem:[%s9 + $0x18] sm:$0xff]
          %v5249 = vld [vmem:[%s9 + $0x20] sm:$0xff]
          %v5250 = vld [vmem:[%s9 + $0x28] sm:$0xff]
          %v5251 = vld [vmem:[%s9 + $0x30] sm:$0xff]
          %v5252 = vld [vmem:[%s9 + $0x38] sm:$0xff]
          %v5253 = vld [vmem:[%s9 + $0x40] sm:$0xff]
          %v5254 = vld [vmem:[%s9 + $0x48] sm:$0xff]
          %v5255 = vld [vmem:[%s9 + $0x50] sm:$0xff]
          %v5256 = vld [vmem:[%s9 + $0x58] sm:$0xff]
          %v5257 = vld [vmem:[%s9 + $0x60] sm:$0xff]
          %v5258 = vld [vmem:[%s9 + $0x68] sm:$0xff]
          %v5259 = vld [vmem:[%s9 + $0x70] sm:$0xff]
          %v5260 = vld [vmem:[%s9 + $0x78] sm:$0xff]
          %v5261 = vld [vmem:[%s9 + $0x80] sm:$0xff]
          %v5262 = vld [vmem:[%s9 + $0x88] sm:$0xff]
          %v5263 = vld [vmem:[%s9 + $0x90] sm:$0xff]
          %v5264 = vld [vmem:[%s9 + $0x98] sm:$0xff]
          %v5265 = vld [vmem:[%s9 + $0xa0] sm:$0xff]
          %v5266 = vld [vmem:[%s9 + $0xa8] sm:$0xff]
          %v5267 = vld [vmem:[%s9 + $0xb0] sm:$0xff]
          %v5268 = vld [vmem:[%s9 + $0xb8] sm:$0xff]
          %v5269 = vld [vmem:[%s9 + $0xc0] sm:$0xff]
          %v5270 = vld [vmem:[%s9 + $0xc8] sm:$0xff]
          %v5271 = vld [vmem:[%s9 + $0xd0] sm:$0xff]
          %v5272 = vld [vmem:[%s9 + $0xd8] sm:$0xff]
          %v5273 = vld [vmem:[%s9 + $0xe0] sm:$0xff]
          %v5274 = vld [vmem:[%s9 + $0xe8] sm:$0xff]
          %v5275 = vld [vmem:[%s9 + $0xf0] sm:$0xff]
          %v5276 = vld [vmem:[%s9 + $0xf8] sm:$0xff]
          %v5277 = vld [vmem:[%s9 + $0x100] sm:$0xff]
          %v5278 = vld [vmem:[%s9 + $0x108] sm:$0xff]
          %v5279 = vld [vmem:[%s9 + $0x110] sm:$0xff]
          %v5280 = vld [vmem:[%s9 + $0x118] sm:$0xff]
          %v5281 = vld [vmem:[%s9 + $0x120] sm:$0xff]
          %v5282 = vld [vmem:[%s9 + $0x128] sm:$0xff]
          %v5283 = vld [vmem:[%s9 + $0x130] sm:$0xff]
          %v5284 = vld [vmem:[%s9 + $0x138] sm:$0xff]
          %v5285 = vld [vmem:[%s9 + $0x140] sm:$0xff]
          %v5286 = vld [vmem:[%s9 + $0x148] sm:$0xff]
          %v5287 = vld [vmem:[%s9 + $0x150] sm:$0xff]
          %v5288 = vld [vmem:[%s9 + $0x158] sm:$0xff]
          %v5289 = vld [vmem:[%s9 + $0x160] sm:$0xff]
          %v5290 = vld [vmem:[%s9 + $0x168] sm:$0xff]
          %v5291 = vld [vmem:[%s9 + $0x170] sm:$0xff]
          %v5292 = vld [vmem:[%s9 + $0x178] sm:$0xff]
          %v5293 = vld [vmem:[%s10] sm:$0x1]
          %v5295 = vlaneseq
          %v5296 = vshrl.u32 %v5295, 7
          %v5297 = vsub.s32 0, %v5296
          %v5298 = vrot.slane %v5293, %v5297
          %v5301 = vcombine.high %v5243, %v5243
          %5303 = vmatprep.subr.mxu0 0.0
          %5304 = vmatpush1.msra.mxu0 %v5260
          %5305 = vmatprep.subr.mxu0 0.0
          %5306 = vmatpush1.msra.mxu0 %v5259
          %5307 = vmatprep.subr.mxu0 0.0
          %5308 = vmatpush1.msra.mxu0 %v5258
          %5309 = vmatprep.subr.mxu0 0.0
          %5310 = vmatpush1.msra.mxu0 %v5257
          %5311 = vmatprep.subr.mxu0 0.0
          %5312 = vmatpush1.msra.mxu0 %v5256
          %5313 = vmatprep.subr.mxu0 0.0
          %5314 = vmatpush1.msra.mxu0 %v5255
          %5315 = vmatprep.subr.mxu0 0.0
          %5316 = vmatpush1.msra.mxu0 %v5254
          %5317 = vmatprep.subr.mxu0 0.0
          %5318 = vmatpush1.msra.mxu0 %v5253
          %5319 = vmatprep.subr.mxu0 0.0
          %5320 = vmatpush1.msra.mxu0 %v5252
          %5321 = vmatprep.subr.mxu0 0.0
          %5322 = vmatpush1.msra.mxu0 %v5251
          %5323 = vmatprep.subr.mxu0 0.0
          %5324 = vmatpush1.msra.mxu0 %v5250
          %5325 = vmatprep.subr.mxu0 0.0
          %5326 = vmatpush1.msra.mxu0 %v5249
          %5327 = vmatprep.subr.mxu0 0.0
          %5328 = vmatpush1.msra.mxu0 %v5248
          %5329 = vmatprep.subr.mxu0 0.0
          %5330 = vmatpush1.msra.mxu0 %v5247
          %5331 = vmatprep.subr.mxu0 0.0
          %5332 = vmatpush1.msra.mxu0 %v5246
          %5333 = vmatprep.subr.mxu0 0.0
          %5334 = vmatpush1.msra.mxu0 %v5245
          %5335 = vmatprep.subr.mxu0 0.0
          %5336 = vmatpush2.msra.mxu0 %v5276
          %5337 = vmatprep.subr.mxu0 0.0
          %5338 = vmatpush2.msra.mxu0 %v5275
          %5339 = vmatprep.subr.mxu0 0.0
          %5340 = vmatpush2.msra.mxu0 %v5274
          %5341 = vmatprep.subr.mxu0 0.0
          %5342 = vmatpush2.msra.mxu0 %v5273
          %5343 = vmatprep.subr.mxu0 0.0
          %5344 = vmatpush2.msra.mxu0 %v5272
          %5345 = vmatprep.subr.mxu0 0.0
          %5346 = vmatpush2.msra.mxu0 %v5271
          %5347 = vmatprep.subr.mxu0 0.0
          %5348 = vmatpush2.msra.mxu0 %v5270
          %5349 = vmatprep.subr.mxu0 0.0
          %5350 = vmatpush2.msra.mxu0 %v5269
          %5351 = vmatprep.subr.mxu0 0.0
          %5352 = vmatpush2.msra.mxu0 %v5268
          %5353 = vmatprep.subr.mxu0 0.0
          %5354 = vmatpush2.msra.mxu0 %v5267
          %5355 = vmatprep.subr.mxu0 0.0
          %5356 = vmatpush2.msra.mxu0 %v5266
          %5357 = vmatprep.subr.mxu0 0.0
          %5358 = vmatpush2.msra.mxu0 %v5265
          %5359 = vmatprep.subr.mxu0 0.0
          %5360 = vmatpush2.msra.mxu0 %v5264
          %5361 = vmatprep.subr.mxu0 0.0
          %5362 = vmatpush2.msra.mxu0 %v5263
          %5363 = vmatprep.subr.mxu0 0.0
          %5364 = vmatpush2.msra.mxu0 %v5262
          %5365 = vmatprep.subr.mxu0 0.0
          %5366 = vmatpush2.msra.mxu0 %v5261
          %5367 = vmatprep.mubr.f32.mxu0 %v5301
          %5368 = vmatmul.mubr.f32.gmra.mxu0 %v5243
          %v5369 = vpop.f32.mrf.mxu0
          %v5370 = vadd.f32 %v5298, %v5369
          %v5371 = vpop.f32.mrf.mxu0
          %5372 = vdwg.mxu0
          %5373 = vmatprep.subr.mxu0 0.0
          %5374 = vmatpush1.msra.mxu0 %v5292
          %5375 = vmatprep.subr.mxu0 0.0
          %5376 = vmatpush1.msra.mxu0 %v5291
          %5377 = vmatprep.subr.mxu0 0.0
          %5378 = vmatpush1.msra.mxu0 %v5290
          %5379 = vmatprep.subr.mxu0 0.0
          %5380 = vmatpush1.msra.mxu0 %v5289
          %5381 = vmatprep.subr.mxu0 0.0
          %5382 = vmatpush1.msra.mxu0 %v5288
          %5383 = vmatprep.subr.mxu0 0.0
          %5384 = vmatpush1.msra.mxu0 %v5287
          %5385 = vmatprep.subr.mxu0 0.0
          %5386 = vmatpush1.msra.mxu0 %v5286
          %5387 = vmatprep.subr.mxu0 0.0
          %5388 = vmatpush1.msra.mxu0 %v5285
          %5389 = vmatprep.subr.mxu0 0.0
          %5390 = vmatpush1.msra.mxu0 %v5284
          %5391 = vmatprep.subr.mxu0 0.0
          %5392 = vmatpush1.msra.mxu0 %v5283
          %5393 = vmatprep.subr.mxu0 0.0
          %5394 = vmatpush1.msra.mxu0 %v5282
          %5395 = vmatprep.subr.mxu0 0.0
          %5396 = vmatpush1.msra.mxu0 %v5281
          %5397 = vmatprep.subr.mxu0 0.0
          %5398 = vmatpush1.msra.mxu0 %v5280
          %5399 = vmatprep.subr.mxu0 0.0
          %5400 = vmatpush1.msra.mxu0 %v5279
          %5401 = vmatprep.subr.mxu0 0.0
          %5402 = vmatpush1.msra.mxu0 %v5278
          %5403 = vmatprep.subr.mxu0 0.0
          %5404 = vmatpush1.msra.mxu0 %v5277
          %5405 = vmatprep.subr.mxu0 0.0
          %5406 = vmatpush2.msra.mxu0 0.0
          %5407 = vmatprep.subr.mxu0 0.0
          %5408 = vmatpush2.msra.mxu0 0.0
          %5409 = vmatprep.subr.mxu0 0.0
          %5410 = vmatpush2.msra.mxu0 0.0
          %5411 = vmatprep.subr.mxu0 0.0
          %5412 = vmatpush2.msra.mxu0 0.0
          %5413 = vmatprep.subr.mxu0 0.0
          %5414 = vmatpush2.msra.mxu0 0.0
          %5415 = vmatprep.subr.mxu0 0.0
          %5416 = vmatpush2.msra.mxu0 0.0
          %5417 = vmatprep.subr.mxu0 0.0
          %5418 = vmatpush2.msra.mxu0 0.0
          %5419 = vmatprep.subr.mxu0 0.0
          %5420 = vmatpush2.msra.mxu0 0.0
          %5421 = vmatprep.subr.mxu0 0.0
          %5422 = vmatpush2.msra.mxu0 0.0
          %5423 = vmatprep.subr.mxu0 0.0
          %5424 = vmatpush2.msra.mxu0 0.0
          %5425 = vmatprep.subr.mxu0 0.0
          %5426 = vmatpush2.msra.mxu0 0.0
          %5427 = vmatprep.subr.mxu0 0.0
          %5428 = vmatpush2.msra.mxu0 0.0
          %5429 = vmatprep.subr.mxu0 0.0
          %5430 = vmatpush2.msra.mxu0 0.0
          %5431 = vmatprep.subr.mxu0 0.0
          %5432 = vmatpush2.msra.mxu0 0.0
          %5433 = vmatprep.subr.mxu0 0.0
          %5434 = vmatpush2.msra.mxu0 0.0
          %5435 = vmatprep.subr.mxu0 0.0
          %5436 = vmatpush2.msra.mxu0 0.0
          %5437 = vmatprep.mubr.f32.mxu0 0.0
          %5438 = vmatmul.mubr.f32.gmra.mxu0 %v5244
          %v5439 = vpop.f32.mrf.mxu0
          %v5440 = vadd.f32 %v5370, %v5439
          %v5441 = vpop.f32.mrf.mxu0
          %5442 = vdwg.mxu0
          %vm5443 = vcmask 26624
          %5444 = vst.msk [vmem:[#allocation7] sm:$0x7] %vm5443, %v5440
        $region118: #{tpu_custom_call.1} parent=97 // pred_fallthru
          _
        // Predicated region
        $region119: #{tpu_custom_call.1} parent=97 // pred_check
          %p5445 = pneg %p306
        $region120: #{tpu_custom_call.1} parent=97 // pred_check_branch
          %5447 = sbr.rel (%p5445) target = $region122
        $region121: #{tpu_custom_call.1} parent=97 // pred_region
          %s5449 = ssub.s32 64, 64
          %5450 = vsyncadd [#allocation8], %s5449
          %s5452 = sshll.u32 [#allocation7], 4
          %s5453 = int_to_ptr.vmem [resolvable:$true] %s5452
          %5455 = dma.vmem_to_hbm [thread:$0]  %s5453, 64, %s11, [#allocation8]
        $region122: #{tpu_custom_call.1} parent=97 // pred_fallthru
          _
        // Predicated region
        $region123: #{tpu_custom_call.1} parent=97 // pred_check
          %p5456 = pneg %p306
        $region124: #{tpu_custom_call.1} parent=97 // pred_check_branch
          %5458 = sbr.rel (%p5456) target = $region126
        $region125: #{tpu_custom_call.1} parent=97 // pred_region
          %5459 = dma.done [#allocation8], 64
        $region126: #{tpu_custom_call.1} parent=97 // pred_fallthru
          _
      $region98: #{tpu_custom_call.1} parent=5 // pred_fallthru
        _
      %p5460 = scmp.le.s32.totalorder 2, %s18
      // Predicated region
      $region127: #{tpu_custom_call.1} parent=5 // pred_check
        %p5461 = pneg %p5460
      $region128: #{tpu_custom_call.1} parent=5 // pred_check_branch
        %5463 = sbr.rel (%p5461) target = $region130
      $region129: #{tpu_custom_call.1} parent=5 // pred_region
        %s5464 = ssub.s32 %s18, 2
      $region130: #{tpu_custom_call.1} parent=5 // pred_fallthru
        _
    $region6: #{tpu_custom_call.1} parent=1 // loop_footer
      %s22 = sadd.s32 1, %s18
    $region7: #{tpu_custom_call.1} parent=1 // loop_footer_branch
      %17 = sbr.rel target = $region3
    $region8: #{tpu_custom_call.1} parent=1 // loop_exit
      _
    %5465 = vsyncpa [#allocation8], 1
    %s5466 = scalar_lea.sflag [#allocation8], 1
    %5467 = vsyncpa %s5466, 1

</llo_original>
